<compile_context>
chip_gen: v5e
topology: v5e:2x2
jax: 0.10.0
libtpu: 0.0.40
codegen_flags: <defaults>
</compile_context>

<pallas_src>
import functools

import jax
import jax.numpy as jnp
from jax import lax
from jax.experimental import pallas as pl
from jax.experimental.pallas import tpu as pltpu


# ----------------------------------------------------------------------------
# Pallas kernel: (OC, K) @ (K, TM) + bias, fused activation, lane-dense output
# ----------------------------------------------------------------------------
def _matmul_bias_act_kernel(w_ref, x_ref, b_ref, o_ref, *, act):
    # w_ref: (OC, K) bf16, x_ref: (K, TM) bf16, b_ref: (OC, 1) f32
    acc = jnp.dot(w_ref[...], x_ref[...], preferred_element_type=jnp.float32)
    acc = acc + b_ref[...]                    # (OC, TM) + (OC, 1) lane-broadcast
    if act == "relu":
        acc = jnp.maximum(acc, 0.0)
    elif act == "tanh":
        acc = jnp.tanh(acc)
    o_ref[...] = acc.astype(o_ref.dtype)      # cast only at the store


def matmul_bias_act(w2d, patches, bias2d, act, out_dtype):
    """w2d: (OC, K) bf16, patches: (K, M) bf16, bias2d: (OC, 1) f32 -> (OC, M)."""
    OC, K = w2d.shape
    _, M = patches.shape
    if M >= 2048:
        # Two balanced, 128-aligned blocks: shards across v7x's 2 TensorCores;
        # negligible extra cost on single-TC v5e/v6e.
        tm = ((pl.cdiv(M, 2) + 127) // 128) * 128
        grid = (2,)
    else:
        # Single full-M block: grid is a serial loop on one TC, tiling would
        # only add per-step overhead for this tiny model.
        tm = M
        grid = (1,)
    kern = functools.partial(_matmul_bias_act_kernel, act=act)
    return pl.pallas_call(
        kern,
        out_shape=jax.ShapeDtypeStruct((OC, M), out_dtype),
        grid=grid,
        in_specs=[
            pl.BlockSpec((OC, K), lambda m: (0, 0)),   # weight resident in VMEM
            pl.BlockSpec((K, tm), lambda m: (0, m)),   # M-sharded patches
            pl.BlockSpec((OC, 1), lambda m: (0, 0)),   # bias
        ],
        out_specs=pl.BlockSpec((OC, tm), lambda m: (0, m)),
        compiler_params=pltpu.CompilerParams(dimension_semantics=("parallel",)),
    )(w2d, patches, bias2d)


# ----------------------------------------------------------------------------
# Layer wrappers (thin XLA glue, compute in Pallas).
# All activations are channel-major bf16: (C, N, H, W).
# ----------------------------------------------------------------------------
def _im2col_cm(x, kh, kw, stride, padding):
    """x: (C, N, H, W) -> patches (kh*kw*C, N*OH*OW), K order = (kh, kw, c)."""
    C, N, H, W = x.shape
    if padding > 0:
        x = jnp.pad(x, ((0, 0), (0, 0), (padding, padding), (padding, padding)))
    Hp, Wp = H + 2 * padding, W + 2 * padding
    OH = (Hp - kh) // stride + 1
    OW = (Wp - kw) // stride + 1
    cols = []
    for i in range(kh):
        for j in range(kw):
            v = x[:, :,
                  i:i + stride * (OH - 1) + 1:stride,
                  j:j + stride * (OW - 1) + 1:stride]        # (C, N, OH, OW)
            cols.append(v.reshape(C, N * OH * OW))
    patches = jnp.concatenate(cols, axis=0)                  # (kh*kw*C, M)
    return patches, OH, OW


def conv2d_cm(x, w2d, b2d, kh, kw, stride, padding, act, out_dtype):
    """x: (C, N, H, W) bf16; w2d: (OC, kh*kw*C) bf16 (K order (kh, kw, c))."""
    N = x.shape[1]
    patches, OH, OW = _im2col_cm(x, kh, kw, stride, padding)
    OC = w2d.shape[0]
    out = matmul_bias_act(w2d, patches, b2d, act, out_dtype)  # (OC, N*OH*OW)
    return out.reshape(OC, N, OH, OW)


def conv_transpose2d_cm(x, w2d, b2d, kh, kw, stride, padding, act, out_dtype):
    """Transposed conv == stride-1 conv on (interior-dilated + padded) input with
    the pre-flipped / channel-swapped kernel (already baked into w2d)."""
    # TODO(synk): assumes square kernels / symmetric padding (true for this model).
    pad_amt = kh - 1 - padding
    zero = jnp.array(0, x.dtype)
    xd = lax.pad(x, zero, ((0, 0, 0), (0, 0, 0),
                           (pad_amt, pad_amt, stride - 1),
                           (pad_amt, pad_amt, stride - 1)))
    return conv2d_cm(xd, w2d, b2d, kh, kw, stride=1, padding=0,
                     act=act, out_dtype=out_dtype)


def maxpool2d_cm(x, k, stride):
    """x: (C, N, H, W) -> (C, N, OH, OW).  Pure XLA: 3 maxes over strided
    slices, fuses with the neighbouring im2col glue (no pallas launch)."""
    C, N, H, W = x.shape
    OH = (H - k) // stride + 1
    OW = (W - k) // stride + 1
    out = None
    for i in range(k):
        for j in range(k):
            v = x[:, :,
                  i:i + stride * (OH - 1) + 1:stride,
                  j:j + stride * (OW - 1) + 1:stride]
            out = v if out is None else jnp.maximum(out, v)
    return out


# ----------------------------------------------------------------------------
# Parameters
# ----------------------------------------------------------------------------
def init_params(seed=0):
    """PyTorch-layout parameters (Conv2d: (OC,C,KH,KW); ConvT: (Cin,Cout,KH,KW))."""
    key = jax.random.PRNGKey(seed)
    ks = jax.random.split(key, 10)

    def uinit(k, shape, fan_in):
        bound = 1.0 / (fan_in ** 0.5)
        return jax.random.uniform(k, shape, jnp.float32, -bound, bound)

    return {
        "enc1_w": uinit(ks[0], (48, 3, 3, 3), 3 * 3 * 3),
        "enc1_b": uinit(ks[1], (48,), 3 * 3 * 3),
        "enc2_w": uinit(ks[2], (8, 48, 3, 3), 48 * 3 * 3),
        "enc2_b": uinit(ks[3], (8,), 48 * 3 * 3),
        "dec1_w": uinit(ks[4], (8, 48, 3, 3), 48 * 3 * 3),
        "dec1_b": uinit(ks[5], (48,), 48 * 3 * 3),
        "dec2_w": uinit(ks[6], (48, 8, 5, 5), 8 * 5 * 5),
        "dec2_b": uinit(ks[7], (8,), 8 * 5 * 5),
        "dec3_w": uinit(ks[8], (8, 3, 2, 2), 3 * 2 * 2),
        "dec3_b": uinit(ks[9], (3,), 3 * 2 * 2),
    }


def prepare_params(params):
    """Hoist all weight preprocessing out of the jitted forward: weights go to the
    kernel-ready (OC, KH*KW*C) bf16 layout, biases to (OC, 1) f32."""
    def prep_conv(w, b):
        OC, C, KH, KW = w.shape
        w2d = w.transpose(0, 2, 3, 1).reshape(OC, KH * KW * C).astype(jnp.bfloat16)
        return w2d, b.reshape(OC, 1).astype(jnp.float32)

    def prep_convT(w, b):
        # (Cin, Cout, KH, KW) -> flipped forward-conv kernel (Cout, Cin, KH, KW)
        w_conv = jnp.flip(w, axis=(2, 3)).transpose(1, 0, 2, 3)
        return prep_conv(w_conv, b)

    p = {}
    p["enc1_w"], p["enc1_b"] = prep_conv(params["enc1_w"], params["enc1_b"])
    p["enc2_w"], p["enc2_b"] = prep_conv(params["enc2_w"], params["enc2_b"])
    p["dec1_w"], p["dec1_b"] = prep_convT(params["dec1_w"], params["dec1_b"])
    p["dec2_w"], p["dec2_b"] = prep_convT(params["dec2_w"], params["dec2_b"])
    p["dec3_w"], p["dec3_b"] = prep_convT(params["dec3_w"], params["dec3_b"])
    return p


# ----------------------------------------------------------------------------
# Model forward (NCHW f32 in / NCHW f32 out; channel-major bf16 internally)
# ----------------------------------------------------------------------------
@jax.jit
def autoencoder_forward(x, p):
    # NCHW -> CNHW and f32 -> bf16 exactly once.
    # NOTE: bf16 MXU inputs / bf16 intermediates trade ~1e-2 rel. error vs. the
    # f32 PyTorch reference for 2x less inter-layer memory traffic (accumulation
    # and bias/activation math remain f32).
    x = jnp.transpose(x, (1, 0, 2, 3)).astype(jnp.bfloat16)
    # encoder
    x = conv2d_cm(x, p["enc1_w"], p["enc1_b"], 3, 3, stride=1, padding=1,
                  act="relu", out_dtype=jnp.bfloat16)
    x = maxpool2d_cm(x, k=2, stride=2)
    x = conv2d_cm(x, p["enc2_w"], p["enc2_b"], 3, 3, stride=2, padding=1,
                  act="relu", out_dtype=jnp.bfloat16)
    x = maxpool2d_cm(x, k=2, stride=1)
    # decoder
    x = conv_transpose2d_cm(x, p["dec1_w"], p["dec1_b"], 3, 3, stride=2, padding=0,
                            act="relu", out_dtype=jnp.bfloat16)
    x = conv_transpose2d_cm(x, p["dec2_w"], p["dec2_b"], 5, 5, stride=3, padding=1,
                            act="relu", out_dtype=jnp.bfloat16)
    x = conv_transpose2d_cm(x, p["dec3_w"], p["dec3_b"], 2, 2, stride=2, padding=1,
                            act="tanh", out_dtype=jnp.float32)
    return jnp.transpose(x, (1, 0, 2, 3))              # CNHW -> NCHW (once)


if __name__ == "__main__":
    key = jax.random.PRNGKey(0)
    x = jax.random.normal(key, (2, 3, 16, 16), dtype=jnp.float32)  # NCHW
    params = prepare_params(init_params(seed=0))

    out = autoencoder_forward(x, params)
    out = jax.block_until_ready(out)

    # PyTorch shape trace for 16x16 input:
    # enc: 16->16->8->4->3 ; dec: 3->7->21->40, 3 channels at the output.
    assert out.shape == (2, 3, 40, 40), out.shape
    assert out.dtype == jnp.float32
    assert bool(jnp.all(jnp.isfinite(out)))
    assert bool(jnp.all(jnp.abs(out) <= 1.0 + 1e-6))  # tanh range
    print("KERNEL_OK")
</pallas_src>

<mosaic_0001>
module attributes {stable_mosaic.version = 11 : i64} {
  func.func @_matmul_bias_act_kernel(%arg0: i32, %arg1: memref<48x27xbf16, #tpu.memory_space<vmem>>, %arg2: memref<27x512xbf16, #tpu.memory_space<vmem>>, %arg3: memref<48x1xf32, #tpu.memory_space<vmem>>, %arg4: memref<48x512xbf16, #tpu.memory_space<vmem>>) attributes {dimension_semantics = [#tpu.dimension_semantics<parallel>], iteration_bounds = array<i64: 1>, scalar_prefetch = 0 : i64, scratch_operands = 0 : i64, tpu.core_type = #tpu.core_type<tc>, window_params = [{pipeline_mode = #tpu.pipeline_mode<synchronous>, transform_indices = @transform_0, window_bounds = array<i64: 48, 27>}, {transform_indices = @transform_1, window_bounds = array<i64: 27, 512>}, {pipeline_mode = #tpu.pipeline_mode<synchronous>, transform_indices = @transform_2, window_bounds = array<i64: 48, 1>}, {transform_indices = @transform_3, window_bounds = array<i64: 48, 512>}]} {
    %c0 = arith.constant 0 : index
    %c0_0 = arith.constant 0 : index
    %0 = vector.load %arg1[%c0, %c0_0] : memref<48x27xbf16, #tpu.memory_space<vmem>>, vector<48x27xbf16>
    %c0_1 = arith.constant 0 : index
    %c0_2 = arith.constant 0 : index
    %1 = vector.load %arg2[%c0_1, %c0_2] : memref<27x512xbf16, #tpu.memory_space<vmem>>, vector<27x512xbf16>
    %cst = arith.constant dense<0.000000e+00> : vector<48x512xf32>
    %2 = tpu.matmul %0, %1, %cst {dimension_numbers = #tpu.dot_dimension_numbers<[1], [0], [0], [1], [0, 0, 1, 1], [], []>} : vector<48x27xbf16>, vector<27x512xbf16>, vector<48x512xf32> -> vector<48x512xf32>
    %c0_3 = arith.constant 0 : index
    %c0_4 = arith.constant 0 : index
    %3 = vector.load %arg3[%c0_3, %c0_4] : memref<48x1xf32, #tpu.memory_space<vmem>>, vector<48x1xf32>
    %4 = vector.broadcast %3 : vector<48x1xf32> to vector<48x512xf32>
    %5 = arith.addf %2, %4 : vector<48x512xf32>
    %cst_5 = arith.constant 0.000000e+00 : f32
    %6 = vector.broadcast %cst_5 : f32 to vector<48x512xf32>
    %7 = arith.maximumf %5, %6 : vector<48x512xf32>
    %8 = arith.truncf %7 : vector<48x512xf32> to vector<48x512xbf16>
    %c0_6 = arith.constant 0 : index
    %c0_7 = arith.constant 0 : index
    %9 = vector.load %arg4[%c0_6, %c0_7] : memref<48x512xbf16, #tpu.memory_space<vmem>>, vector<48x512xbf16>
    tpu.vector_store %arg4[%c0_6, %c0_7], %8 {strides = array<i32>} : memref<48x512xbf16, #tpu.memory_space<vmem>>, vector<48x512xbf16>,
    return
  }
  func.func @transform_0(%arg0: i32) -> (i32, i32) {
    %c0_i32 = arith.constant 0 : i32
    %c0_i32_0 = arith.constant 0 : i32
    %c0_i32_1 = arith.constant 0 : i32
    return %c0_i32, %c0_i32_0 : i32, i32
  }
  func.func @transform_1(%arg0: i32) -> (i32, i32) {
    %c0_i32 = arith.constant 0 : i32
    %c0_i32_0 = arith.constant 0 : i32
    return %c0_i32, %arg0 : i32, i32
  }
  func.func @transform_2(%arg0: i32) -> (i32, i32) {
    %c0_i32 = arith.constant 0 : i32
    %c0_i32_0 = arith.constant 0 : i32
    %c0_i32_1 = arith.constant 0 : i32
    return %c0_i32, %c0_i32_0 : i32, i32
  }
  func.func @transform_3(%arg0: i32) -> (i32, i32) {
    %c0_i32 = arith.constant 0 : i32
    %c0_i32_0 = arith.constant 0 : i32
    return %c0_i32, %arg0 : i32, i32
  }
}

module attributes {stable_mosaic.version = 11 : i64} {
  func.func @_matmul_bias_act_kernel(%arg0: i32, %arg1: memref<8x432xbf16, #tpu.memory_space<vmem>>, %arg2: memref<432x32xbf16, #tpu.memory_space<vmem>>, %arg3: memref<8x1xf32, #tpu.memory_space<vmem>>, %arg4: memref<8x32xbf16, #tpu.memory_space<vmem>>) attributes {dimension_semantics = [#tpu.dimension_semantics<parallel>], iteration_bounds = array<i64: 1>, scalar_prefetch = 0 : i64, scratch_operands = 0 : i64, tpu.core_type = #tpu.core_type<tc>, window_params = [{pipeline_mode = #tpu.pipeline_mode<synchronous>, transform_indices = @transform_0, window_bounds = array<i64: 8, 432>}, {transform_indices = @transform_1, window_bounds = array<i64: 432, 32>}, {pipeline_mode = #tpu.pipeline_mode<synchronous>, transform_indices = @transform_2, window_bounds = array<i64: 8, 1>}, {transform_indices = @transform_3, window_bounds = array<i64: 8, 32>}]} {
    %c0 = arith.constant 0 : index
    %c0_0 = arith.constant 0 : index
    %0 = vector.load %arg1[%c0, %c0_0] : memref<8x432xbf16, #tpu.memory_space<vmem>>, vector<8x432xbf16>
    %c0_1 = arith.constant 0 : index
    %c0_2 = arith.constant 0 : index
    %1 = vector.load %arg2[%c0_1, %c0_2] : memref<432x32xbf16, #tpu.memory_space<vmem>>, vector<432x32xbf16>
    %cst = arith.constant dense<0.000000e+00> : vector<8x32xf32>
    %2 = tpu.matmul %0, %1, %cst {dimension_numbers = #tpu.dot_dimension_numbers<[1], [0], [0], [1], [0, 0, 1, 1], [], []>} : vector<8x432xbf16>, vector<432x32xbf16>, vector<8x32xf32> -> vector<8x32xf32>
    %c0_3 = arith.constant 0 : index
    %c0_4 = arith.constant 0 : index
    %3 = vector.load %arg3[%c0_3, %c0_4] : memref<8x1xf32, #tpu.memory_space<vmem>>, vector<8x1xf32>
    %4 = vector.broadcast %3 : vector<8x1xf32> to vector<8x32xf32>
    %5 = arith.addf %2, %4 : vector<8x32xf32>
    %cst_5 = arith.constant 0.000000e+00 : f32
    %6 = vector.broadcast %cst_5 : f32 to vector<8x32xf32>
    %7 = arith.maximumf %5, %6 : vector<8x32xf32>
    %8 = arith.truncf %7 : vector<8x32xf32> to vector<8x32xbf16>
    %c0_6 = arith.constant 0 : index
    %c0_7 = arith.constant 0 : index
    %9 = vector.load %arg4[%c0_6, %c0_7] : memref<8x32xbf16, #tpu.memory_space<vmem>>, vector<8x32xbf16>
    tpu.vector_store %arg4[%c0_6, %c0_7], %8 {strides = array<i32>} : memref<8x32xbf16, #tpu.memory_space<vmem>>, vector<8x32xbf16>,
    return
  }
  func.func @transform_0(%arg0: i32) -> (i32, i32) {
    %c0_i32 = arith.constant 0 : i32
    %c0_i32_0 = arith.constant 0 : i32
    %c0_i32_1 = arith.constant 0 : i32
    return %c0_i32, %c0_i32_0 : i32, i32
  }
  func.func @transform_1(%arg0: i32) -> (i32, i32) {
    %c0_i32 = arith.constant 0 : i32
    %c0_i32_0 = arith.constant 0 : i32
    return %c0_i32, %arg0 : i32, i32
  }
  func.func @transform_2(%arg0: i32) -> (i32, i32) {
    %c0_i32 = arith.constant 0 : i32
    %c0_i32_0 = arith.constant 0 : i32
    %c0_i32_1 = arith.constant 0 : i32
    return %c0_i32, %c0_i32_0 : i32, i32
  }
  func.func @transform_3(%arg0: i32) -> (i32, i32) {
    %c0_i32 = arith.constant 0 : i32
    %c0_i32_0 = arith.constant 0 : i32
    return %c0_i32, %arg0 : i32, i32
  }
}

module attributes {stable_mosaic.version = 11 : i64} {
  func.func @_matmul_bias_act_kernel(%arg0: i32, %arg1: memref<48x72xbf16, #tpu.memory_space<vmem>>, %arg2: memref<72x98xbf16, #tpu.memory_space<vmem>>, %arg3: memref<48x1xf32, #tpu.memory_space<vmem>>, %arg4: memref<48x98xbf16, #tpu.memory_space<vmem>>) attributes {dimension_semantics = [#tpu.dimension_semantics<parallel>], iteration_bounds = array<i64: 1>, scalar_prefetch = 0 : i64, scratch_operands = 0 : i64, tpu.core_type = #tpu.core_type<tc>, window_params = [{pipeline_mode = #tpu.pipeline_mode<synchronous>, transform_indices = @transform_0, window_bounds = array<i64: 48, 72>}, {transform_indices = @transform_1, window_bounds = array<i64: 72, 98>}, {pipeline_mode = #tpu.pipeline_mode<synchronous>, transform_indices = @transform_2, window_bounds = array<i64: 48, 1>}, {transform_indices = @transform_3, window_bounds = array<i64: 48, 98>}]} {
    %c0 = arith.constant 0 : index
    %c0_0 = arith.constant 0 : index
    %0 = vector.load %arg1[%c0, %c0_0] : memref<48x72xbf16, #tpu.memory_space<vmem>>, vector<48x72xbf16>
    %c0_1 = arith.constant 0 : index
    %c0_2 = arith.constant 0 : index
    %1 = vector.load %arg2[%c0_1, %c0_2] : memref<72x98xbf16, #tpu.memory_space<vmem>>, vector<72x98xbf16>
    %cst = arith.constant dense<0.000000e+00> : vector<48x98xf32>
    %2 = tpu.matmul %0, %1, %cst {dimension_numbers = #tpu.dot_dimension_numbers<[1], [0], [0], [1], [0, 0, 1, 1], [], []>} : vector<48x72xbf16>, vector<72x98xbf16>, vector<48x98xf32> -> vector<48x98xf32>
    %c0_3 = arith.constant 0 : index
    %c0_4 = arith.constant 0 : index
    %3 = vector.load %arg3[%c0_3, %c0_4] : memref<48x1xf32, #tpu.memory_space<vmem>>, vector<48x1xf32>
    %4 = vector.broadcast %3 : vector<48x1xf32> to vector<48x98xf32>
    %5 = arith.addf %2, %4 : vector<48x98xf32>
    %cst_5 = arith.constant 0.000000e+00 : f32
    %6 = vector.broadcast %cst_5 : f32 to vector<48x98xf32>
    %7 = arith.maximumf %5, %6 : vector<48x98xf32>
    %8 = arith.truncf %7 : vector<48x98xf32> to vector<48x98xbf16>
    %c0_6 = arith.constant 0 : index
    %c0_7 = arith.constant 0 : index
    %9 = vector.load %arg4[%c0_6, %c0_7] : memref<48x98xbf16, #tpu.memory_space<vmem>>, vector<48x98xbf16>
    tpu.vector_store %arg4[%c0_6, %c0_7], %8 {strides = array<i32>} : memref<48x98xbf16, #tpu.memory_space<vmem>>, vector<48x98xbf16>,
    return
  }
  func.func @transform_0(%arg0: i32) -> (i32, i32) {
    %c0_i32 = arith.constant 0 : i32
    %c0_i32_0 = arith.constant 0 : i32
    %c0_i32_1 = arith.constant 0 : i32
    return %c0_i32, %c0_i32_0 : i32, i32
  }
  func.func @transform_1(%arg0: i32) -> (i32, i32) {
    %c0_i32 = arith.constant 0 : i32
    %c0_i32_0 = arith.constant 0 : i32
    return %c0_i32, %arg0 : i32, i32
  }
  func.func @transform_2(%arg0: i32) -> (i32, i32) {
    %c0_i32 = arith.constant 0 : i32
    %c0_i32_0 = arith.constant 0 : i32
    %c0_i32_1 = arith.constant 0 : i32
    return %c0_i32, %c0_i32_0 : i32, i32
  }
  func.func @transform_3(%arg0: i32) -> (i32, i32) {
    %c0_i32 = arith.constant 0 : i32
    %c0_i32_0 = arith.constant 0 : i32
    return %c0_i32, %arg0 : i32, i32
  }
}

module attributes {stable_mosaic.version = 11 : i64} {
  func.func @_matmul_bias_act_kernel(%arg0: i32, %arg1: memref<8x1200xbf16, #tpu.memory_space<vmem>>, %arg2: memref<1200x882xbf16, #tpu.memory_space<vmem>>, %arg3: memref<8x1xf32, #tpu.memory_space<vmem>>, %arg4: memref<8x882xbf16, #tpu.memory_space<vmem>>) attributes {dimension_semantics = [#tpu.dimension_semantics<parallel>], iteration_bounds = array<i64: 1>, scalar_prefetch = 0 : i64, scratch_operands = 0 : i64, tpu.core_type = #tpu.core_type<tc>, window_params = [{pipeline_mode = #tpu.pipeline_mode<synchronous>, transform_indices = @transform_0, window_bounds = array<i64: 8, 1200>}, {transform_indices = @transform_1, window_bounds = array<i64: 1200, 882>}, {pipeline_mode = #tpu.pipeline_mode<synchronous>, transform_indices = @transform_2, window_bounds = array<i64: 8, 1>}, {transform_indices = @transform_3, window_bounds = array<i64: 8, 882>}]} {
    %c0 = arith.constant 0 : index
    %c0_0 = arith.constant 0 : index
    %0 = vector.load %arg1[%c0, %c0_0] : memref<8x1200xbf16, #tpu.memory_space<vmem>>, vector<8x1200xbf16>
    %c0_1 = arith.constant 0 : index
    %c0_2 = arith.constant 0 : index
    %1 = vector.load %arg2[%c0_1, %c0_2] : memref<1200x882xbf16, #tpu.memory_space<vmem>>, vector<1200x882xbf16>
    %cst = arith.constant dense<0.000000e+00> : vector<8x882xf32>
    %2 = tpu.matmul %0, %1, %cst {dimension_numbers = #tpu.dot_dimension_numbers<[1], [0], [0], [1], [0, 0, 1, 1], [], []>} : vector<8x1200xbf16>, vector<1200x882xbf16>, vector<8x882xf32> -> vector<8x882xf32>
    %c0_3 = arith.constant 0 : index
    %c0_4 = arith.constant 0 : index
    %3 = vector.load %arg3[%c0_3, %c0_4] : memref<8x1xf32, #tpu.memory_space<vmem>>, vector<8x1xf32>
    %4 = vector.broadcast %3 : vector<8x1xf32> to vector<8x882xf32>
    %5 = arith.addf %2, %4 : vector<8x882xf32>
    %cst_5 = arith.constant 0.000000e+00 : f32
    %6 = vector.broadcast %cst_5 : f32 to vector<8x882xf32>
    %7 = arith.maximumf %5, %6 : vector<8x882xf32>
    %8 = arith.truncf %7 : vector<8x882xf32> to vector<8x882xbf16>
    %c0_6 = arith.constant 0 : index
    %c0_7 = arith.constant 0 : index
    %9 = vector.load %arg4[%c0_6, %c0_7] : memref<8x882xbf16, #tpu.memory_space<vmem>>, vector<8x882xbf16>
    tpu.vector_store %arg4[%c0_6, %c0_7], %8 {strides = array<i32>} : memref<8x882xbf16, #tpu.memory_space<vmem>>, vector<8x882xbf16>,
    return
  }
  func.func @transform_0(%arg0: i32) -> (i32, i32) {
    %c0_i32 = arith.constant 0 : i32
    %c0_i32_0 = arith.constant 0 : i32
    %c0_i32_1 = arith.constant 0 : i32
    return %c0_i32, %c0_i32_0 : i32, i32
  }
  func.func @transform_1(%arg0: i32) -> (i32, i32) {
    %c0_i32 = arith.constant 0 : i32
    %c0_i32_0 = arith.constant 0 : i32
    return %c0_i32, %arg0 : i32, i32
  }
  func.func @transform_2(%arg0: i32) -> (i32, i32) {
    %c0_i32 = arith.constant 0 : i32
    %c0_i32_0 = arith.constant 0 : i32
    %c0_i32_1 = arith.constant 0 : i32
    return %c0_i32, %c0_i32_0 : i32, i32
  }
  func.func @transform_3(%arg0: i32) -> (i32, i32) {
    %c0_i32 = arith.constant 0 : i32
    %c0_i32_0 = arith.constant 0 : i32
    return %c0_i32, %arg0 : i32, i32
  }
}

module attributes {stable_mosaic.version = 11 : i64} {
  func.func @_matmul_bias_act_kernel(%arg0: i32, %arg1: memref<3x32xbf16, #tpu.memory_space<vmem>>, %arg2: memref<32x1664xbf16, #tpu.memory_space<vmem>>, %arg3: memref<3x1xf32, #tpu.memory_space<vmem>>, %arg4: memref<3x1664xf32, #tpu.memory_space<vmem>>) attributes {dimension_semantics = [#tpu.dimension_semantics<parallel>], iteration_bounds = array<i64: 2>, scalar_prefetch = 0 : i64, scratch_operands = 0 : i64, tpu.core_type = #tpu.core_type<tc>, window_params = [{pipeline_mode = #tpu.pipeline_mode<synchronous>, transform_indices = @transform_0, window_bounds = array<i64: 3, 32>}, {transform_indices = @transform_1, window_bounds = array<i64: 32, 1664>}, {pipeline_mode = #tpu.pipeline_mode<synchronous>, transform_indices = @transform_2, window_bounds = array<i64: 3, 1>}, {transform_indices = @transform_3, window_bounds = array<i64: 3, 1664>}]} {
    %c0 = arith.constant 0 : index
    %c0_0 = arith.constant 0 : index
    %0 = vector.load %arg1[%c0, %c0_0] : memref<3x32xbf16, #tpu.memory_space<vmem>>, vector<3x32xbf16>
    %c0_1 = arith.constant 0 : index
    %c0_2 = arith.constant 0 : index
    %1 = vector.load %arg2[%c0_1, %c0_2] : memref<32x1664xbf16, #tpu.memory_space<vmem>>, vector<32x1664xbf16>
    %cst = arith.constant dense<0.000000e+00> : vector<3x1664xf32>
    %2 = tpu.matmul %0, %1, %cst {dimension_numbers = #tpu.dot_dimension_numbers<[1], [0], [0], [1], [0, 0, 1, 1], [], []>} : vector<3x32xbf16>, vector<32x1664xbf16>, vector<3x1664xf32> -> vector<3x1664xf32>
    %c0_3 = arith.constant 0 : index
    %c0_4 = arith.constant 0 : index
    %3 = vector.load %arg3[%c0_3, %c0_4] : memref<3x1xf32, #tpu.memory_space<vmem>>, vector<3x1xf32>
    %4 = vector.broadcast %3 : vector<3x1xf32> to vector<3x1664xf32>
    %5 = arith.addf %2, %4 : vector<3x1664xf32>
    %6 = math.tanh %5 : vector<3x1664xf32>
    %c0_5 = arith.constant 0 : index
    %c0_6 = arith.constant 0 : index
    %7 = vector.load %arg4[%c0_5, %c0_6] : memref<3x1664xf32, #tpu.memory_space<vmem>>, vector<3x1664xf32>
    tpu.vector_store %arg4[%c0_5, %c0_6], %6 {strides = array<i32>} : memref<3x1664xf32, #tpu.memory_space<vmem>>, vector<3x1664xf32>,
    return
  }
  func.func @transform_0(%arg0: i32) -> (i32, i32) {
    %c0_i32 = arith.constant 0 : i32
    %c0_i32_0 = arith.constant 0 : i32
    %c0_i32_1 = arith.constant 0 : i32
    return %c0_i32, %c0_i32_0 : i32, i32
  }
  func.func @transform_1(%arg0: i32) -> (i32, i32) {
    %c0_i32 = arith.constant 0 : i32
    %c0_i32_0 = arith.constant 0 : i32
    return %c0_i32, %arg0 : i32, i32
  }
  func.func @transform_2(%arg0: i32) -> (i32, i32) {
    %c0_i32 = arith.constant 0 : i32
    %c0_i32_0 = arith.constant 0 : i32
    %c0_i32_1 = arith.constant 0 : i32
    return %c0_i32, %c0_i32_0 : i32, i32
  }
  func.func @transform_3(%arg0: i32) -> (i32, i32) {
    %c0_i32 = arith.constant 0 : i32
    %c0_i32_0 = arith.constant 0 : i32
    return %c0_i32, %arg0 : i32, i32
  }
}

</mosaic_0001>

<llo_original>
// kernel: autoencoder_forward.5
$region0: #{autoencoder_forward.5}
  #allocation0 [shape = 'u32[]', space=smem, size = 0x4, offset = 0x4, fixed_abs, tag = 'smem constant byte address 0x4 - core index']
  #allocation1 [shape = 'u32[72,128]{1,0:T(1,128)}', space=vmem, size = 0x9000, scoped, tag = 'internal scratch']
  %s0 = inlined_call_operand.vmem [shape: bf16[48,27], index: 0, kind: input, shape index: {}]
  %s1 = inlined_call_operand.vmem [shape: bf16[27,512], index: 1, kind: input, shape index: {}]
  %s2 = inlined_call_operand.vmem [shape: f32[48,1], index: 2, kind: input, shape index: {}]
  %s3 = inlined_call_operand.vmem [shape: bf16[48,512], index: 3, kind: output, shape index: {}]
  %s4 = sld [smem:[#allocation0]]
  $region22: #{autoencoder_forward.5} parent=0
    _
  %s6 = ssub.s32 1, %s4
  %s7 = scalar_select 0, %s6, %s4
  // Predicated region
  $region2: #{autoencoder_forward.5} parent=0 // pred_check
    _
  $region3: #{autoencoder_forward.5} parent=0 // pred_check_branch
    %9 = sbr.rel (0) target = $region5
  $region4: #{autoencoder_forward.5} parent=0 // pred_region
    _
  $region5: #{autoencoder_forward.5} parent=0 // pred_fallthru
    _
  // Predicated region
  $region6: #{autoencoder_forward.5} parent=0 // pred_check
    _
  $region7: #{autoencoder_forward.5} parent=0 // pred_check_branch
    %11 = sbr.rel (0) target = $region9
  $region8: #{autoencoder_forward.5} parent=0 // pred_region
    _
  $region9: #{autoencoder_forward.5} parent=0 // pred_fallthru
    _
  // Predicated region
  $region10: #{autoencoder_forward.5} parent=0 // pred_check
    _
  $region11: #{autoencoder_forward.5} parent=0 // pred_check_branch
    %13 = sbr.rel (0) target = $region13
  $region12: #{autoencoder_forward.5} parent=0 // pred_region
    _
  $region13: #{autoencoder_forward.5} parent=0 // pred_fallthru
    _
  %v15 = vld [vmem:[%s0] sm:$0xf]
  %v16 = vld [vmem:[%s0 + $0x4] sm:$0xf]
  %v17 = vld [vmem:[%s0 + $0x8] sm:$0xf]
  %v18 = vld [vmem:[%s0 + $0xc] sm:$0xf]
  %v19 = vld [vmem:[%s0 + $0x10] sm:$0xf]
  %v20 = vld [vmem:[%s0 + $0x14] sm:$0xf]
  %v21 = vld [vmem:[%s1] sm:$0xff]
  %v22 = vld [vmem:[%s1 + $0x8] sm:$0xff]
  %v23 = vld [vmem:[%s1 + $0x10] sm:$0xff]
  %v24 = vld [vmem:[%s1 + $0x18] sm:$0xff]
  %v25 = vld [vmem:[%s1 + $0x20] sm:$0xff]
  %v26 = vld [vmem:[%s1 + $0x28] sm:$0xff]
  %v27 = vld [vmem:[%s1 + $0x30] sm:$0x33]
  %v28 = vld [vmem:[%s1 + $0x38] sm:$0x33]
  %v29 = vld [vmem:[%s2] sm:$0xff]
  %v30 = vld [vmem:[%s2 + $0x8] sm:$0xff]
  %v31 = vld [vmem:[%s2 + $0x10] sm:$0xff]
  %v32 = vld [vmem:[%s2 + $0x18] sm:$0xff]
  %v33 = vld [vmem:[%s2 + $0x20] sm:$0xff]
  %v34 = vld [vmem:[%s2 + $0x28] sm:$0xff]
  %36 = vset.pattern.permute.xlu0 0
  %37 = vperm.xlu0 %36, %v29
  %v38 = vpop.permute.xlu0 %37
  %41 = vset.pattern.permute.xlu0 0
  %42 = vperm.xlu0 %41, %v30
  %v43 = vpop.permute.xlu0 %42
  %46 = vset.pattern.permute.xlu0 0
  %47 = vperm.xlu0 %46, %v31
  %v48 = vpop.permute.xlu0 %47
  %51 = vset.pattern.permute.xlu0 0
  %52 = vperm.xlu0 %51, %v32
  %v53 = vpop.permute.xlu0 %52
  %56 = vset.pattern.permute.xlu0 0
  %57 = vperm.xlu0 %56, %v33
  %v58 = vpop.permute.xlu0 %57
  %61 = vset.pattern.permute.xlu0 0
  %62 = vperm.xlu0 %61, %v34
  %v63 = vpop.permute.xlu0 %62
  %v71 = vunpack.c.l.b16 %v15
  %v72 = vunpack.c.l.b16 %v16
  %v73 = vunpack.c.l.b16 %v17
  %v74 = vunpack.c.l.b16 %v18
  %v75 = vunpack.c.l.b16 %v19
  %v76 = vunpack.c.l.b16 %v20
  %v77 = vpack.c.b16 %v72, %v71
  %v78 = vpack.c.b16 %v74, %v73
  %v79 = vpack.c.b16 %v76, %v75
  %v88 = vunpack.c.l.b16 %v21
  %v89 = vunpack.c.h.b16 %v21
  %v90 = vunpack.c.l.b16 %v22
  %v91 = vunpack.c.h.b16 %v22
  %v92 = vunpack.c.l.b16 %v23
  %v93 = vunpack.c.h.b16 %v23
  %v94 = vunpack.c.l.b16 %v24
  %v95 = vunpack.c.h.b16 %v24
  %v96 = vunpack.c.l.b16 %v25
  %v97 = vunpack.c.h.b16 %v25
  %v98 = vunpack.c.l.b16 %v26
  %v99 = vunpack.c.h.b16 %v26
  %v100 = vunpack.c.l.b16 %v27
  %v101 = vunpack.c.h.b16 %v27
  %v102 = vunpack.c.l.b16 %v28
  %v103 = vunpack.c.h.b16 %v28
  %v104 = vpack.c.b16 %v92, %v88
  %v105 = vpack.c.b16 %v93, %v89
  %v106 = vpack.c.b16 %v94, %v90
  %v107 = vpack.c.b16 %v95, %v91
  %v108 = vpack.c.b16 %v100, %v96
  %v109 = vpack.c.b16 %v101, %v97
  %v110 = vpack.c.b16 %v102, %v98
  %v111 = vpack.c.b16 %v103, %v99
  %vm116 = vcmask 220160
  %v118 = vsel %vm116, %v77, 0
  %v121 = vsel %vm116, %v78, 0
  %v124 = vsel %vm116, %v79, 0
  %vm126 = vcmask 1044480
  %vm127 = vcmask 1045504
  %v128 = vsel %vm126, 4294967295, 65535
  %v129 = vsel %vm127, %v128, 0
  %v131 = vand.u32 %v108, %v129
  %v134 = vand.u32 %v109, %v129
  %v137 = vand.u32 %v110, %v129
  %v140 = vand.u32 %v111, %v129
  %142 = vmatpush.bf16.msra.mxu0 0
  %143 = vmatpush.bf16.msra.mxu0 0
  %144 = vmatpush.bf16.msra.mxu0 0
  %145 = vmatpush.bf16.msra.mxu0 0
  %146 = vmatpush.bf16.msra.mxu0 0
  %147 = vmatpush.bf16.msra.mxu0 0
  %148 = vmatpush.bf16.msra.mxu0 %v131
  %149 = vmatpush.bf16.msra.mxu0 %v104
  %150 = vmatmul.bf16.gmra.mxu0 %v118
  %v151 = vpop.f32.mrf.mxu0
  %v152 = vadd.f32 %v38, %v151
  %v153 = vpop.f32.mrf.mxu0
  %v154 = vadd.f32 %v43, %v153
  %155 = vmatmul.bf16.gmra.mxu0 %v121
  %v156 = vpop.f32.mrf.mxu0
  %v157 = vadd.f32 %v48, %v156
  %v158 = vpop.f32.mrf.mxu0
  %v159 = vadd.f32 %v53, %v158
  %160 = vmatmul.bf16.gmra.mxu0 %v124
  %v161 = vpop.f32.mrf.mxu0
  %v162 = vadd.f32 %v58, %v161
  %v163 = vpop.f32.mrf.mxu0
  %v164 = vadd.f32 %v63, %v163
  %165 = vdwg.mxu0
  %166 = vmatpush.bf16.msra.mxu0 0
  %167 = vmatpush.bf16.msra.mxu0 0
  %168 = vmatpush.bf16.msra.mxu0 0
  %169 = vmatpush.bf16.msra.mxu0 0
  %170 = vmatpush.bf16.msra.mxu0 0
  %171 = vmatpush.bf16.msra.mxu0 0
  %172 = vmatpush.bf16.msra.mxu0 %v134
  %173 = vmatpush.bf16.msra.mxu0 %v105
  %174 = vmatmul.bf16.gmra.mxu0 %v118
  %v175 = vpop.f32.mrf.mxu0
  %v176 = vadd.f32 %v38, %v175
  %v177 = vpop.f32.mrf.mxu0
  %v178 = vadd.f32 %v43, %v177
  %179 = vmatmul.bf16.gmra.mxu0 %v121
  %v180 = vpop.f32.mrf.mxu0
  %v181 = vadd.f32 %v48, %v180
  %v182 = vpop.f32.mrf.mxu0
  %v183 = vadd.f32 %v53, %v182
  %184 = vmatmul.bf16.gmra.mxu0 %v124
  %v185 = vpop.f32.mrf.mxu0
  %v186 = vadd.f32 %v58, %v185
  %v187 = vpop.f32.mrf.mxu0
  %v188 = vadd.f32 %v63, %v187
  %189 = vdwg.mxu0
  %190 = vmatpush.bf16.msra.mxu0 0
  %191 = vmatpush.bf16.msra.mxu0 0
  %192 = vmatpush.bf16.msra.mxu0 0
  %193 = vmatpush.bf16.msra.mxu0 0
  %194 = vmatpush.bf16.msra.mxu0 0
  %195 = vmatpush.bf16.msra.mxu0 0
  %196 = vmatpush.bf16.msra.mxu0 %v137
  %197 = vmatpush.bf16.msra.mxu0 %v106
  %198 = vmatmul.bf16.gmra.mxu0 %v118
  %v199 = vpop.f32.mrf.mxu0
  %v200 = vadd.f32 %v38, %v199
  %v201 = vpop.f32.mrf.mxu0
  %v202 = vadd.f32 %v43, %v201
  %203 = vmatmul.bf16.gmra.mxu0 %v121
  %v204 = vpop.f32.mrf.mxu0
  %v205 = vadd.f32 %v48, %v204
  %v206 = vpop.f32.mrf.mxu0
  %v207 = vadd.f32 %v53, %v206
  %208 = vmatmul.bf16.gmra.mxu0 %v124
  %v209 = vpop.f32.mrf.mxu0
  %v210 = vadd.f32 %v58, %v209
  %v211 = vpop.f32.mrf.mxu0
  %v212 = vadd.f32 %v63, %v211
  %213 = vdwg.mxu0
  %214 = vmatpush.bf16.msra.mxu0 0
  %215 = vmatpush.bf16.msra.mxu0 0
  %216 = vmatpush.bf16.msra.mxu0 0
  %217 = vmatpush.bf16.msra.mxu0 0
  %218 = vmatpush.bf16.msra.mxu0 0
  %219 = vmatpush.bf16.msra.mxu0 0
  %220 = vmatpush.bf16.msra.mxu0 %v140
  %221 = vmatpush.bf16.msra.mxu0 %v107
  %222 = vmatmul.bf16.gmra.mxu0 %v118
  %v223 = vpop.f32.mrf.mxu0
  %v224 = vadd.f32 %v38, %v223
  %v225 = vpop.f32.mrf.mxu0
  %v226 = vadd.f32 %v43, %v225
  %227 = vmatmul.bf16.gmra.mxu0 %v121
  %v228 = vpop.f32.mrf.mxu0
  %v229 = vadd.f32 %v48, %v228
  %v230 = vpop.f32.mrf.mxu0
  %v231 = vadd.f32 %v53, %v230
  %232 = vmatmul.bf16.gmra.mxu0 %v124
  %v233 = vpop.f32.mrf.mxu0
  %v234 = vadd.f32 %v58, %v233
  %v235 = vpop.f32.mrf.mxu0
  %v236 = vadd.f32 %v63, %v235
  %237 = vdwg.mxu0
  %v238 = vmax.f32 %v152, 0.0
  %v239 = vmax.f32 %v176, 0.0
  %v240 = vmax.f32 %v200, 0.0
  %v241 = vmax.f32 %v224, 0.0
  %v242 = vmax.f32 %v154, 0.0
  %v243 = vmax.f32 %v178, 0.0
  %v244 = vmax.f32 %v202, 0.0
  %v245 = vmax.f32 %v226, 0.0
  %v246 = vmax.f32 %v157, 0.0
  %v247 = vmax.f32 %v181, 0.0
  %v248 = vmax.f32 %v205, 0.0
  %v249 = vmax.f32 %v229, 0.0
  %v250 = vmax.f32 %v159, 0.0
  %v251 = vmax.f32 %v183, 0.0
  %v252 = vmax.f32 %v207, 0.0
  %v253 = vmax.f32 %v231, 0.0
  %v254 = vmax.f32 %v162, 0.0
  %v255 = vmax.f32 %v186, 0.0
  %v256 = vmax.f32 %v210, 0.0
  %v257 = vmax.f32 %v234, 0.0
  %v258 = vmax.f32 %v164, 0.0
  %v259 = vmax.f32 %v188, 0.0
  %v260 = vmax.f32 %v212, 0.0
  %v261 = vmax.f32 %v236, 0.0
  %v262 = vpack.c.bf16 %v239, %v238
  %v263 = vpack.c.bf16 %v241, %v240
  %v264 = vpack.c.bf16 %v243, %v242
  %v265 = vpack.c.bf16 %v245, %v244
  %v266 = vpack.c.bf16 %v247, %v246
  %v267 = vpack.c.bf16 %v249, %v248
  %v268 = vpack.c.bf16 %v251, %v250
  %v269 = vpack.c.bf16 %v253, %v252
  %v270 = vpack.c.bf16 %v255, %v254
  %v271 = vpack.c.bf16 %v257, %v256
  %v272 = vpack.c.bf16 %v259, %v258
  %v273 = vpack.c.bf16 %v261, %v260
  %274 = vst [vmem:[%s3] sm:$0xff] %v262
  %275 = vst [vmem:[%s3 + $0x8] sm:$0xff] %v263
  %276 = vst [vmem:[%s3 + $0x10] sm:$0xff] %v264
  %277 = vst [vmem:[%s3 + $0x18] sm:$0xff] %v265
  %278 = vst [vmem:[%s3 + $0x20] sm:$0xff] %v266
  %279 = vst [vmem:[%s3 + $0x28] sm:$0xff] %v267
  %280 = vst [vmem:[%s3 + $0x30] sm:$0xff] %v268
  %281 = vst [vmem:[%s3 + $0x38] sm:$0xff] %v269
  %282 = vst [vmem:[%s3 + $0x40] sm:$0xff] %v270
  %283 = vst [vmem:[%s3 + $0x48] sm:$0xff] %v271
  %284 = vst [vmem:[%s3 + $0x50] sm:$0xff] %v272
  %285 = vst [vmem:[%s3 + $0x58] sm:$0xff] %v273
  // Predicated region
  $region14: #{autoencoder_forward.5} parent=0 // pred_check
    _
  $region15: #{autoencoder_forward.5} parent=0 // pred_check_branch
    %287 = sbr.rel (0) target = $region17
  $region16: #{autoencoder_forward.5} parent=0 // pred_region
    _
  $region17: #{autoencoder_forward.5} parent=0 // pred_fallthru
    _
  // Predicated region
  $region18: #{autoencoder_forward.5} parent=0 // pred_check
    _
  $region19: #{autoencoder_forward.5} parent=0 // pred_check_branch
    %289 = sbr.rel (0) target = $region21
  $region20: #{autoencoder_forward.5} parent=0 // pred_region
    _
  $region21: #{autoencoder_forward.5} parent=0 // pred_fallthru
    _

// kernel: autoencoder_forward.6
$region0: #{autoencoder_forward.6}
  #allocation0 [shape = 'u32[]', space=smem, size = 0x4, offset = 0x4, fixed_abs, tag = 'smem constant byte address 0x4 - core index']
  #allocation1 [shape = 'u32[72,128]{1,0:T(1,128)}', space=vmem, size = 0x9000, scoped, tag = 'internal scratch']
  %s0 = inlined_call_operand.vmem [shape: bf16[8,432], index: 0, kind: input, shape index: {}]
  %s1 = inlined_call_operand.vmem [shape: bf16[432,32], index: 1, kind: input, shape index: {}]
  %s2 = inlined_call_operand.vmem [shape: f32[8,1], index: 2, kind: input, shape index: {}]
  %s3 = inlined_call_operand.vmem [shape: bf16[8,32], index: 3, kind: output, shape index: {}]
  %s4 = sld [smem:[#allocation0]]
  $region22: #{autoencoder_forward.6} parent=0
    _
  %s6 = ssub.s32 1, %s4
  %s7 = scalar_select 0, %s6, %s4
  // Predicated region
  $region2: #{autoencoder_forward.6} parent=0 // pred_check
    _
  $region3: #{autoencoder_forward.6} parent=0 // pred_check_branch
    %9 = sbr.rel (0) target = $region5
  $region4: #{autoencoder_forward.6} parent=0 // pred_region
    _
  $region5: #{autoencoder_forward.6} parent=0 // pred_fallthru
    _
  // Predicated region
  $region6: #{autoencoder_forward.6} parent=0 // pred_check
    _
  $region7: #{autoencoder_forward.6} parent=0 // pred_check_branch
    %11 = sbr.rel (0) target = $region9
  $region8: #{autoencoder_forward.6} parent=0 // pred_region
    _
  $region9: #{autoencoder_forward.6} parent=0 // pred_fallthru
    _
  // Predicated region
  $region10: #{autoencoder_forward.6} parent=0 // pred_check
    _
  $region11: #{autoencoder_forward.6} parent=0 // pred_check_branch
    %13 = sbr.rel (0) target = $region13
  $region12: #{autoencoder_forward.6} parent=0 // pred_region
    _
  $region13: #{autoencoder_forward.6} parent=0 // pred_fallthru
    _
  %v15 = vld [vmem:[%s0] sm:$0xff]
  %v16 = vld [vmem:[%s0 + $0x8] sm:$0xff]
  %v17 = vld [vmem:[%s1] sm:$0xf]
  %v18 = vld [vmem:[%s1 + $0x4] sm:$0xf]
  %v19 = vld [vmem:[%s1 + $0x8] sm:$0xf]
  %v20 = vld [vmem:[%s1 + $0xc] sm:$0xf]
  %v21 = vld [vmem:[%s1 + $0x10] sm:$0xf]
  %v22 = vld [vmem:[%s1 + $0x14] sm:$0xf]
  %v23 = vld [vmem:[%s1 + $0x18] sm:$0xf]
  %v24 = vld [vmem:[%s1 + $0x1c] sm:$0xf]
  %v25 = vld [vmem:[%s1 + $0x20] sm:$0xf]
  %v26 = vld [vmem:[%s1 + $0x24] sm:$0xf]
  %v27 = vld [vmem:[%s1 + $0x28] sm:$0xf]
  %v28 = vld [vmem:[%s1 + $0x2c] sm:$0xf]
  %v29 = vld [vmem:[%s1 + $0x30] sm:$0xf]
  %v30 = vld [vmem:[%s1 + $0x34] sm:$0xf]
  %v31 = vld [vmem:[%s1 + $0x38] sm:$0xf]
  %v32 = vld [vmem:[%s1 + $0x3c] sm:$0xf]
  %v33 = vld [vmem:[%s1 + $0x40] sm:$0xf]
  %v34 = vld [vmem:[%s1 + $0x44] sm:$0xf]
  %v35 = vld [vmem:[%s1 + $0x48] sm:$0xf]
  %v36 = vld [vmem:[%s1 + $0x4c] sm:$0xf]
  %v37 = vld [vmem:[%s1 + $0x50] sm:$0xf]
  %v38 = vld [vmem:[%s1 + $0x54] sm:$0xf]
  %v39 = vld [vmem:[%s1 + $0x58] sm:$0xf]
  %v40 = vld [vmem:[%s1 + $0x5c] sm:$0xf]
  %v41 = vld [vmem:[%s1 + $0x60] sm:$0xf]
  %v42 = vld [vmem:[%s1 + $0x64] sm:$0xf]
  %v43 = vld [vmem:[%s1 + $0x68] sm:$0xf]
  %v44 = vld [vmem:[%s1 + $0x6c] sm:$0xf]
  %v45 = vld [vmem:[%s1 + $0x70] sm:$0xf]
  %v46 = vld [vmem:[%s1 + $0x74] sm:$0xf]
  %v47 = vld [vmem:[%s1 + $0x78] sm:$0xf]
  %v48 = vld [vmem:[%s1 + $0x7c] sm:$0xf]
  %v49 = vld [vmem:[%s1 + $0x80] sm:$0xf]
  %v50 = vld [vmem:[%s1 + $0x84] sm:$0xf]
  %v51 = vld [vmem:[%s1 + $0x88] sm:$0xf]
  %v52 = vld [vmem:[%s1 + $0x8c] sm:$0xf]
  %v53 = vld [vmem:[%s1 + $0x90] sm:$0xf]
  %v54 = vld [vmem:[%s1 + $0x94] sm:$0xf]
  %v55 = vld [vmem:[%s1 + $0x98] sm:$0xf]
  %v56 = vld [vmem:[%s1 + $0x9c] sm:$0xf]
  %v57 = vld [vmem:[%s1 + $0xa0] sm:$0xf]
  %v58 = vld [vmem:[%s1 + $0xa4] sm:$0xf]
  %v59 = vld [vmem:[%s1 + $0xa8] sm:$0xf]
  %v60 = vld [vmem:[%s1 + $0xac] sm:$0xf]
  %v61 = vld [vmem:[%s1 + $0xb0] sm:$0xf]
  %v62 = vld [vmem:[%s1 + $0xb4] sm:$0xf]
  %v63 = vld [vmem:[%s1 + $0xb8] sm:$0xf]
  %v64 = vld [vmem:[%s1 + $0xbc] sm:$0xf]
  %v65 = vld [vmem:[%s1 + $0xc0] sm:$0xf]
  %v66 = vld [vmem:[%s1 + $0xc4] sm:$0xf]
  %v67 = vld [vmem:[%s1 + $0xc8] sm:$0xf]
  %v68 = vld [vmem:[%s1 + $0xcc] sm:$0xf]
  %v69 = vld [vmem:[%s1 + $0xd0] sm:$0xf]
  %v70 = vld [vmem:[%s1 + $0xd4] sm:$0xf]
  %v71 = vld [vmem:[%s2] sm:$0xff]
  %73 = vset.pattern.permute.xlu0 0
  %74 = vperm.xlu0 %73, %v71
  %v75 = vpop.permute.xlu0 %74
  %v79 = vunpack.c.l.b16 %v15
  %v80 = vunpack.c.h.b16 %v15
  %v81 = vunpack.c.l.b16 %v16
  %v82 = vunpack.c.h.b16 %v16
  %v83 = vpack.c.b16 %v79, %v79
  %v84 = vpack.c.b16 %v80, %v80
  %v85 = vpack.c.b16 %v81, %v81
  %v86 = vpack.c.b16 %v82, %v82
  %v144 = vunpack.c.l.b16 %v17
  %v145 = vunpack.c.l.b16 %v18
  %v146 = vunpack.c.l.b16 %v19
  %v147 = vunpack.c.l.b16 %v20
  %v148 = vunpack.c.l.b16 %v21
  %v149 = vunpack.c.l.b16 %v22
  %v150 = vunpack.c.l.b16 %v23
  %v151 = vunpack.c.l.b16 %v24
  %v152 = vunpack.c.l.b16 %v25
  %v153 = vunpack.c.l.b16 %v26
  %v154 = vunpack.c.l.b16 %v27
  %v155 = vunpack.c.l.b16 %v28
  %v156 = vunpack.c.l.b16 %v29
  %v157 = vunpack.c.l.b16 %v30
  %v158 = vunpack.c.l.b16 %v31
  %v159 = vunpack.c.l.b16 %v32
  %v160 = vunpack.c.l.b16 %v33
  %v161 = vunpack.c.l.b16 %v34
  %v162 = vunpack.c.l.b16 %v35
  %v163 = vunpack.c.l.b16 %v36
  %v164 = vunpack.c.l.b16 %v37
  %v165 = vunpack.c.l.b16 %v38
  %v166 = vunpack.c.l.b16 %v39
  %v167 = vunpack.c.l.b16 %v40
  %v168 = vunpack.c.l.b16 %v41
  %v169 = vunpack.c.l.b16 %v42
  %v170 = vunpack.c.l.b16 %v43
  %v171 = vunpack.c.l.b16 %v44
  %v172 = vunpack.c.l.b16 %v45
  %v173 = vunpack.c.l.b16 %v46
  %v174 = vunpack.c.l.b16 %v47
  %v175 = vunpack.c.l.b16 %v48
  %v176 = vunpack.c.l.b16 %v49
  %v177 = vunpack.c.l.b16 %v50
  %v178 = vunpack.c.l.b16 %v51
  %v179 = vunpack.c.l.b16 %v52
  %v180 = vunpack.c.l.b16 %v53
  %v181 = vunpack.c.l.b16 %v54
  %v182 = vunpack.c.l.b16 %v55
  %v183 = vunpack.c.l.b16 %v56
  %v184 = vunpack.c.l.b16 %v57
  %v185 = vunpack.c.l.b16 %v58
  %v186 = vunpack.c.l.b16 %v59
  %v187 = vunpack.c.l.b16 %v60
  %v188 = vunpack.c.l.b16 %v61
  %v189 = vunpack.c.l.b16 %v62
  %v190 = vunpack.c.l.b16 %v63
  %v191 = vunpack.c.l.b16 %v64
  %v192 = vunpack.c.l.b16 %v65
  %v193 = vunpack.c.l.b16 %v66
  %v194 = vunpack.c.l.b16 %v67
  %v195 = vunpack.c.l.b16 %v68
  %v196 = vunpack.c.l.b16 %v69
  %v197 = vunpack.c.l.b16 %v70
  %v198 = vpack.c.b16 %v145, %v144
  %v199 = vpack.c.b16 %v147, %v146
  %v200 = vpack.c.b16 %v149, %v148
  %v201 = vpack.c.b16 %v151, %v150
  %v202 = vpack.c.b16 %v153, %v152
  %v203 = vpack.c.b16 %v155, %v154
  %v204 = vpack.c.b16 %v157, %v156
  %v205 = vpack.c.b16 %v159, %v158
  %v206 = vpack.c.b16 %v161, %v160
  %v207 = vpack.c.b16 %v163, %v162
  %v208 = vpack.c.b16 %v165, %v164
  %v209 = vpack.c.b16 %v167, %v166
  %v210 = vpack.c.b16 %v169, %v168
  %v211 = vpack.c.b16 %v171, %v170
  %v212 = vpack.c.b16 %v173, %v172
  %v213 = vpack.c.b16 %v175, %v174
  %v214 = vpack.c.b16 %v177, %v176
  %v215 = vpack.c.b16 %v179, %v178
  %v216 = vpack.c.b16 %v181, %v180
  %v217 = vpack.c.b16 %v183, %v182
  %v218 = vpack.c.b16 %v185, %v184
  %v219 = vpack.c.b16 %v187, %v186
  %v220 = vpack.c.b16 %v189, %v188
  %v221 = vpack.c.b16 %v191, %v190
  %v222 = vpack.c.b16 %v193, %v192
  %v223 = vpack.c.b16 %v195, %v194
  %v224 = vpack.c.b16 %v197, %v196
  %vm252 = vcmask 392192
  %v254 = vsel %vm252, %v86, 0
  %256 = vmatpush.bf16.msra.mxu0 %v205
  %257 = vmatpush.bf16.msra.mxu0 %v204
  %258 = vmatpush.bf16.msra.mxu0 %v203
  %259 = vmatpush.bf16.msra.mxu0 %v202
  %260 = vmatpush.bf16.msra.mxu0 %v201
  %261 = vmatpush.bf16.msra.mxu0 %v200
  %262 = vmatpush.bf16.msra.mxu0 %v199
  %263 = vmatpush.bf16.msra.mxu0 %v198
  %264 = vmatmul.bf16.gmra.mxu0 %v83
  %v265 = vpop.f32.mrf.mxu0
  %v266 = vadd.f32 %v75, %v265
  %v267 = vpop.f32.mrf.mxu0
  %268 = vdwg.mxu0
  %269 = vmatpush.bf16.msra.mxu0 %v213
  %270 = vmatpush.bf16.msra.mxu0 %v212
  %271 = vmatpush.bf16.msra.mxu0 %v211
  %272 = vmatpush.bf16.msra.mxu0 %v210
  %273 = vmatpush.bf16.msra.mxu0 %v209
  %274 = vmatpush.bf16.msra.mxu0 %v208
  %275 = vmatpush.bf16.msra.mxu0 %v207
  %276 = vmatpush.bf16.msra.mxu0 %v206
  %277 = vmatmul.bf16.gmra.mxu0 %v84
  %v278 = vpop.f32.mrf.mxu0
  %v279 = vadd.f32 %v266, %v278
  %v280 = vpop.f32.mrf.mxu0
  %281 = vdwg.mxu0
  %282 = vmatpush.bf16.msra.mxu0 %v221
  %283 = vmatpush.bf16.msra.mxu0 %v220
  %284 = vmatpush.bf16.msra.mxu0 %v219
  %285 = vmatpush.bf16.msra.mxu0 %v218
  %286 = vmatpush.bf16.msra.mxu0 %v217
  %287 = vmatpush.bf16.msra.mxu0 %v216
  %288 = vmatpush.bf16.msra.mxu0 %v215
  %289 = vmatpush.bf16.msra.mxu0 %v214
  %290 = vmatmul.bf16.gmra.mxu0 %v85
  %v291 = vpop.f32.mrf.mxu0
  %v292 = vadd.f32 %v279, %v291
  %v293 = vpop.f32.mrf.mxu0
  %294 = vdwg.mxu0
  %295 = vmatpush.bf16.msra.mxu0 0
  %296 = vmatpush.bf16.msra.mxu0 0
  %297 = vmatpush.bf16.msra.mxu0 0
  %298 = vmatpush.bf16.msra.mxu0 0
  %299 = vmatpush.bf16.msra.mxu0 0
  %300 = vmatpush.bf16.msra.mxu0 %v224
  %301 = vmatpush.bf16.msra.mxu0 %v223
  %302 = vmatpush.bf16.msra.mxu0 %v222
  %303 = vmatmul.bf16.gmra.mxu0 %v254
  %v304 = vpop.f32.mrf.mxu0
  %v305 = vadd.f32 %v292, %v304
  %v306 = vpop.f32.mrf.mxu0
  %307 = vdwg.mxu0
  %v308 = vmax.f32 %v305, 0.0
  %v309 = vpack.c.bf16 %v308, %v308
  %vm310 = vcmask 257024
  %311 = vst.msk [vmem:[%s3] sm:$0xf] %vm310, %v309
  // Predicated region
  $region14: #{autoencoder_forward.6} parent=0 // pred_check
    _
  $region15: #{autoencoder_forward.6} parent=0 // pred_check_branch
    %313 = sbr.rel (0) target = $region17
  $region16: #{autoencoder_forward.6} parent=0 // pred_region
    _
  $region17: #{autoencoder_forward.6} parent=0 // pred_fallthru
    _
  // Predicated region
  $region18: #{autoencoder_forward.6} parent=0 // pred_check
    _
  $region19: #{autoencoder_forward.6} parent=0 // pred_check_branch
    %315 = sbr.rel (0) target = $region21
  $region20: #{autoencoder_forward.6} parent=0 // pred_region
    _
  $region21: #{autoencoder_forward.6} parent=0 // pred_fallthru
    _

// kernel: autoencoder_forward.7
$region0: #{autoencoder_forward.7}
  #allocation0 [shape = 'u32[]', space=smem, size = 0x4, offset = 0x4, fixed_abs, tag = 'smem constant byte address 0x4 - core index']
  #allocation1 [shape = 'u32[72,128]{1,0:T(1,128)}', space=vmem, size = 0x9000, scoped, tag = 'internal scratch']
  %s0 = inlined_call_operand.vmem [shape: bf16[48,72], index: 0, kind: input, shape index: {}]
  %s1 = inlined_call_operand.vmem [shape: bf16[72,98], index: 1, kind: input, shape index: {}]
  %s2 = inlined_call_operand.vmem [shape: f32[48,1], index: 2, kind: input, shape index: {}]
  %s3 = inlined_call_operand.vmem [shape: bf16[48,98], index: 3, kind: output, shape index: {}]
  %s4 = sld [smem:[#allocation0]]
  $region22: #{autoencoder_forward.7} parent=0
    _
  %s6 = ssub.s32 1, %s4
  %s7 = scalar_select 0, %s6, %s4
  // Predicated region
  $region2: #{autoencoder_forward.7} parent=0 // pred_check
    _
  $region3: #{autoencoder_forward.7} parent=0 // pred_check_branch
    %9 = sbr.rel (0) target = $region5
  $region4: #{autoencoder_forward.7} parent=0 // pred_region
    _
  $region5: #{autoencoder_forward.7} parent=0 // pred_fallthru
    _
  // Predicated region
  $region6: #{autoencoder_forward.7} parent=0 // pred_check
    _
  $region7: #{autoencoder_forward.7} parent=0 // pred_check_branch
    %11 = sbr.rel (0) target = $region9
  $region8: #{autoencoder_forward.7} parent=0 // pred_region
    _
  $region9: #{autoencoder_forward.7} parent=0 // pred_fallthru
    _
  // Predicated region
  $region10: #{autoencoder_forward.7} parent=0 // pred_check
    _
  $region11: #{autoencoder_forward.7} parent=0 // pred_check_branch
    %13 = sbr.rel (0) target = $region13
  $region12: #{autoencoder_forward.7} parent=0 // pred_region
    _
  $region13: #{autoencoder_forward.7} parent=0 // pred_fallthru
    _
  %v15 = vld [vmem:[%s0] sm:$0xf]
  %v16 = vld [vmem:[%s0 + $0x4] sm:$0xf]
  %v17 = vld [vmem:[%s0 + $0x8] sm:$0xf]
  %v18 = vld [vmem:[%s0 + $0xc] sm:$0xf]
  %v19 = vld [vmem:[%s0 + $0x10] sm:$0xf]
  %v20 = vld [vmem:[%s0 + $0x14] sm:$0xf]
  %v21 = vld [vmem:[%s1] sm:$0xf]
  %v22 = vld [vmem:[%s1 + $0x4] sm:$0xf]
  %v23 = vld [vmem:[%s1 + $0x8] sm:$0xf]
  %v24 = vld [vmem:[%s1 + $0xc] sm:$0xf]
  %v25 = vld [vmem:[%s1 + $0x10] sm:$0xf]
  %v26 = vld [vmem:[%s1 + $0x14] sm:$0xf]
  %v27 = vld [vmem:[%s1 + $0x18] sm:$0xf]
  %v28 = vld [vmem:[%s1 + $0x1c] sm:$0xf]
  %v29 = vld [vmem:[%s1 + $0x20] sm:$0xf]
  %v30 = vld [vmem:[%s2] sm:$0xff]
  %v31 = vld [vmem:[%s2 + $0x8] sm:$0xff]
  %v32 = vld [vmem:[%s2 + $0x10] sm:$0xff]
  %v33 = vld [vmem:[%s2 + $0x18] sm:$0xff]
  %v34 = vld [vmem:[%s2 + $0x20] sm:$0xff]
  %v35 = vld [vmem:[%s2 + $0x28] sm:$0xff]
  %37 = vset.pattern.permute.xlu0 0
  %38 = vperm.xlu0 %37, %v30
  %v39 = vpop.permute.xlu0 %38
  %42 = vset.pattern.permute.xlu0 0
  %43 = vperm.xlu0 %42, %v31
  %v44 = vpop.permute.xlu0 %43
  %47 = vset.pattern.permute.xlu0 0
  %48 = vperm.xlu0 %47, %v32
  %v49 = vpop.permute.xlu0 %48
  %52 = vset.pattern.permute.xlu0 0
  %53 = vperm.xlu0 %52, %v33
  %v54 = vpop.permute.xlu0 %53
  %57 = vset.pattern.permute.xlu0 0
  %58 = vperm.xlu0 %57, %v34
  %v59 = vpop.permute.xlu0 %58
  %62 = vset.pattern.permute.xlu0 0
  %63 = vperm.xlu0 %62, %v35
  %v64 = vpop.permute.xlu0 %63
  %v72 = vunpack.c.l.b16 %v15
  %v73 = vunpack.c.l.b16 %v16
  %v74 = vunpack.c.l.b16 %v17
  %v75 = vunpack.c.l.b16 %v18
  %v76 = vunpack.c.l.b16 %v19
  %v77 = vunpack.c.l.b16 %v20
  %v78 = vpack.c.b16 %v73, %v72
  %v79 = vpack.c.b16 %v75, %v74
  %v80 = vpack.c.b16 %v77, %v76
  %v90 = vunpack.c.l.b16 %v21
  %v91 = vunpack.c.l.b16 %v22
  %v92 = vunpack.c.l.b16 %v23
  %v93 = vunpack.c.l.b16 %v24
  %v94 = vunpack.c.l.b16 %v25
  %v95 = vunpack.c.l.b16 %v26
  %v96 = vunpack.c.l.b16 %v27
  %v97 = vunpack.c.l.b16 %v28
  %v98 = vunpack.c.l.b16 %v29
  %v99 = vpack.c.b16 %v91, %v90
  %v100 = vpack.c.b16 %v93, %v92
  %v101 = vpack.c.b16 %v95, %v94
  %v102 = vpack.c.b16 %v97, %v96
  %v103 = vpack.c.b16 %v98, %v98
  %vm108 = vcmask 588800
  %v110 = vsel %vm108, %v78, 0
  %v113 = vsel %vm108, %v79, 0
  %v116 = vsel %vm108, %v80, 0
  %vm118 = vcmask 1043456
  %v120 = vsel %vm118, %v103, 0
  %122 = vmatpush.bf16.msra.mxu0 0
  %123 = vmatpush.bf16.msra.mxu0 0
  %124 = vmatpush.bf16.msra.mxu0 0
  %125 = vmatpush.bf16.msra.mxu0 %v120
  %126 = vmatpush.bf16.msra.mxu0 %v102
  %127 = vmatpush.bf16.msra.mxu0 %v101
  %128 = vmatpush.bf16.msra.mxu0 %v100
  %129 = vmatpush.bf16.msra.mxu0 %v99
  %130 = vmatmul.bf16.gmra.mxu0 %v110
  %v131 = vpop.f32.mrf.mxu0
  %v132 = vadd.f32 %v39, %v131
  %v133 = vpop.f32.mrf.mxu0
  %v134 = vadd.f32 %v44, %v133
  %135 = vmatmul.bf16.gmra.mxu0 %v113
  %v136 = vpop.f32.mrf.mxu0
  %v137 = vadd.f32 %v49, %v136
  %v138 = vpop.f32.mrf.mxu0
  %v139 = vadd.f32 %v54, %v138
  %140 = vmatmul.bf16.gmra.mxu0 %v116
  %v141 = vpop.f32.mrf.mxu0
  %v142 = vadd.f32 %v59, %v141
  %v143 = vpop.f32.mrf.mxu0
  %v144 = vadd.f32 %v64, %v143
  %145 = vdwg.mxu0
  %v146 = vmax.f32 %v132, 0.0
  %v147 = vmax.f32 %v134, 0.0
  %v148 = vmax.f32 %v137, 0.0
  %v149 = vmax.f32 %v139, 0.0
  %v150 = vmax.f32 %v142, 0.0
  %v151 = vmax.f32 %v144, 0.0
  %v152 = vpack.c.bf16 %v146, %v146
  %v153 = vpack.c.bf16 %v147, %v147
  %v154 = vpack.c.bf16 %v148, %v148
  %v155 = vpack.c.bf16 %v149, %v149
  %v156 = vpack.c.bf16 %v150, %v150
  %v157 = vpack.c.bf16 %v151, %v151
  %vm158 = vcmask 797696
  %159 = vst.msk [vmem:[%s3] sm:$0xf] %vm158, %v152
  %160 = vst.msk [vmem:[%s3 + $0x4] sm:$0xf] %vm158, %v153
  %161 = vst.msk [vmem:[%s3 + $0x8] sm:$0xf] %vm158, %v154
  %162 = vst.msk [vmem:[%s3 + $0xc] sm:$0xf] %vm158, %v155
  %163 = vst.msk [vmem:[%s3 + $0x10] sm:$0xf] %vm158, %v156
  %164 = vst.msk [vmem:[%s3 + $0x14] sm:$0xf] %vm158, %v157
  // Predicated region
  $region14: #{autoencoder_forward.7} parent=0 // pred_check
    _
  $region15: #{autoencoder_forward.7} parent=0 // pred_check_branch
    %166 = sbr.rel (0) target = $region17
  $region16: #{autoencoder_forward.7} parent=0 // pred_region
    _
  $region17: #{autoencoder_forward.7} parent=0 // pred_fallthru
    _
  // Predicated region
  $region18: #{autoencoder_forward.7} parent=0 // pred_check
    _
  $region19: #{autoencoder_forward.7} parent=0 // pred_check_branch
    %168 = sbr.rel (0) target = $region21
  $region20: #{autoencoder_forward.7} parent=0 // pred_region
    _
  $region21: #{autoencoder_forward.7} parent=0 // pred_fallthru
    _

// kernel: autoencoder_forward.9
$region0: #{autoencoder_forward.9}
  #allocation0 [shape = 'u32[]', space=smem, size = 0x4, offset = 0x4, fixed_abs, tag = 'smem constant byte address 0x4 - core index']
  #allocation1 [shape = 'u32[72,128]{1,0:T(1,128)}', space=vmem, size = 0x9000, scoped, tag = 'internal scratch']
  %s0 = inlined_call_operand.vmem [shape: bf16[3,32], index: 0, kind: input, shape index: {}]
  %s1 = inlined_call_operand.vmem [shape: bf16[32,3200], index: 1, kind: input, shape index: {}]
  %s2 = inlined_call_operand.vmem [shape: f32[3,1], index: 2, kind: input, shape index: {}]
  %s3 = inlined_call_operand.vmem [shape: f32[3,3200], index: 3, kind: output, shape index: {}]
  %s4 = sld [smem:[#allocation0]]
  $region173: #{autoencoder_forward.9} parent=0
    _
  %s6 = ssub.s32 1, %s4
  %s7 = scalar_select 0, %s6, %s4
  $region1: #{autoencoder_forward.9} parent=0
    #allocation2 [shape = 'u8[212992]{0}', space=vmem, size = 0x34000, scoped, tag = 'input window, operand 1']
    #allocation3 [shape = 'u8[53248]{0}', space=vmem, size = 0xd000, scoped, tag = 'output window, operand 0']
    loop: start=0, step=1, limit=4
    $region2: #{autoencoder_forward.9} parent=1 // loop_pre_header
      _
    $region3: #{autoencoder_forward.9} parent=1 // loop_header
      %s9 = sphi 0, %s13
      %p10 = scmp.ge.s32.totalorder %s9, 4
      %s17 = sphi 0, %s17
      %s19 = sphi 0, %s17
      %s20 = sphi 0, %s19
      %s34 = sphi 0, %s20
      %s40 = sphi 0, %s42
      %s43 = sphi 0, %s40
      %s44 = sphi 0, %s43
      %s60 = sphi 0, %s44
      %s64 = sphi 0, %s64
      %s66 = sphi 0, %s64
      %s67 = sphi 0, %s66
      %s81 = sphi 0, %s67
      %s87 = sphi 0, %s89
      %s90 = sphi 0, %s87
      %s91 = sphi 0, %s90
      %s107 = sphi 0, %s91
    $region4: #{autoencoder_forward.9} parent=1 // loop_header_branch
      %12 = sbr.rel (%p10) target = $region8
    $region5: #{autoencoder_forward.9} parent=1 // loop_body
      %s14 = ssub.s32 %s9, 1
      %s15 = ssub.s32 %s9, 2
      %s16 = sadd.s32 %s9, 1
      %s18 = sadd.s32 %s17, 1
      %p21 = scmp.eq.s32.totalorder %s9, 1
      %p22 = scmp.ne.s32.totalorder %s17, %s19
      %p23 = scmp.eq.s32.totalorder %s9, 0
      %p24 = por %p22, %p23
      %p25 = scmp.ne.s32.totalorder %s17, %s19
      %p26 = scmp.eq.s32.totalorder %s14, 1
      %p27 = por %p25, %p26
      %p28 = scmp.ne.s32.totalorder %s19, %s20
      %p29 = scmp.eq.s32.totalorder %s14, 0
      %p30 = por %p28, %p29
      %p31 = scmp.ne.s32.totalorder %s19, %s20
      %p32 = scmp.eq.s32.totalorder %s15, 1
      %p33 = por %p31, %p32
      %p35 = scmp.ne.s32.totalorder %s20, %s34
      %p36 = scmp.eq.s32.totalorder %s15, 0
      %p37 = por %p35, %p36
      %s38 = ssub.s32 %s9, %s16
      %p39 = scmp.eq.s32.totalorder %s38, 0
      %s41 = sadd.s32 %s40, 1
      %s42 = scalar_select %p39, %s40, %s41
      %p45 = pneg %p39
      %p46 = scmp.eq.s32.totalorder %s9, 1
      %p47 = por %p45, %p46
      %p48 = scmp.ne.s32.totalorder %s40, %s43
      %p49 = scmp.eq.s32.totalorder %s9, 0
      %p50 = por %p48, %p49
      %p51 = scmp.ne.s32.totalorder %s40, %s43
      %p52 = scmp.eq.s32.totalorder %s14, 1
      %p53 = por %p51, %p52
      %p54 = scmp.ne.s32.totalorder %s43, %s44
      %p55 = scmp.eq.s32.totalorder %s14, 0
      %p56 = por %p54, %p55
      %p57 = scmp.ne.s32.totalorder %s43, %s44
      %p58 = scmp.eq.s32.totalorder %s15, 1
      %p59 = por %p57, %p58
      %p61 = scmp.ne.s32.totalorder %s44, %s60
      %p62 = scmp.eq.s32.totalorder %s15, 0
      %p63 = por %p61, %p62
      %s65 = sadd.s32 %s64, 1
      %p68 = scmp.eq.s32.totalorder %s9, 1
      %p69 = scmp.ne.s32.totalorder %s64, %s66
      %p70 = scmp.eq.s32.totalorder %s9, 0
      %p71 = por %p69, %p70
      %p72 = scmp.ne.s32.totalorder %s64, %s66
      %p73 = scmp.eq.s32.totalorder %s14, 1
      %p74 = por %p72, %p73
      %p75 = scmp.ne.s32.totalorder %s66, %s67
      %p76 = scmp.eq.s32.totalorder %s14, 0
      %p77 = por %p75, %p76
      %p78 = scmp.ne.s32.totalorder %s66, %s67
      %p79 = scmp.eq.s32.totalorder %s15, 1
      %p80 = por %p78, %p79
      %p82 = scmp.ne.s32.totalorder %s67, %s81
      %p83 = scmp.eq.s32.totalorder %s15, 0
      %p84 = por %p82, %p83
      %s85 = ssub.s32 %s9, %s16
      %p86 = scmp.eq.s32.totalorder %s85, 0
      %s88 = sadd.s32 %s87, 1
      %s89 = scalar_select %p86, %s87, %s88
      %p92 = pneg %p86
      %p93 = scmp.eq.s32.totalorder %s9, 1
      %p94 = por %p92, %p93
      %p95 = scmp.ne.s32.totalorder %s87, %s90
      %p96 = scmp.eq.s32.totalorder %s9, 0
      %p97 = por %p95, %p96
      %p98 = scmp.ne.s32.totalorder %s87, %s90
      %p99 = scmp.eq.s32.totalorder %s14, 1
      %p100 = por %p98, %p99
      %p101 = scmp.ne.s32.totalorder %s90, %s91
      %p102 = scmp.eq.s32.totalorder %s14, 0
      %p103 = por %p101, %p102
      %p104 = scmp.ne.s32.totalorder %s90, %s91
      %p105 = scmp.eq.s32.totalorder %s15, 1
      %p106 = por %p104, %p105
      %p108 = scmp.ne.s32.totalorder %s91, %s107
      %p109 = scmp.eq.s32.totalorder %s15, 0
      %p110 = por %p108, %p109
      %p111 = scmp.le.s32.totalorder 1, %s9
      %p112 = scmp.lt.s32.totalorder %s9, 3
      %p113 = pnand %p111, %p112
      %p114 = pneg %p113
      // Predicated region
      $region9: #{autoencoder_forward.9} parent=5 // pred_check
        _
      $region10: #{autoencoder_forward.9} parent=5 // pred_check_branch
        %116 = sbr.rel (%p113) target = $region12
      $region11: #{autoencoder_forward.9} parent=5 // pred_region
        %s117 = ssub.s32 %s9, 1
        // Predicated region
        $region13: #{autoencoder_forward.9} parent=11 // pred_check
          %p118 = pneg %p30
        $region14: #{autoencoder_forward.9} parent=11 // pred_check_branch
          %120 = sbr.rel (%p118) target = $region16
        $region15: #{autoencoder_forward.9} parent=11 // pred_region
          _
        $region16: #{autoencoder_forward.9} parent=11 // pred_fallthru
          _
        // Predicated region
        $region17: #{autoencoder_forward.9} parent=11 // pred_check
          %p121 = pneg %p77
        $region18: #{autoencoder_forward.9} parent=11 // pred_check_branch
          %123 = sbr.rel (%p121) target = $region20
        $region19: #{autoencoder_forward.9} parent=11 // pred_region
          _
        $region20: #{autoencoder_forward.9} parent=11 // pred_fallthru
          _
      $region12: #{autoencoder_forward.9} parent=5 // pred_fallthru
        _
      %p124 = scmp.lt.s32.totalorder %s9, 2
      // Predicated region
      $region21: #{autoencoder_forward.9} parent=5 // pred_check
        %p125 = pneg %p124
      $region22: #{autoencoder_forward.9} parent=5 // pred_check_branch
        %127 = sbr.rel (%p125) target = $region24
      $region23: #{autoencoder_forward.9} parent=5 // pred_region
        // Predicated region
        $region25: #{autoencoder_forward.9} parent=23 // pred_check
          %p128 = pneg %p50
        $region26: #{autoencoder_forward.9} parent=23 // pred_check_branch
          %130 = sbr.rel (%p128) target = $region28
        $region27: #{autoencoder_forward.9} parent=23 // pred_region
          %s131 = sand.u32 %s40, 1
          %s132 = sand.u32 %s40, 1
          %s133 = smul.addr %s132, 208
          %s134 = scalar_lea.vmem [#allocation2], %s133
          %s135 = smul.u32 13, %s9
          %s136 = ssub.s32 25, %s135
          %p137 = scmp.lt.s32.totalorder %s136, 13
          %s138 = scalar_select %p137, %s136, 13
          %s139 = smul.u32 16, %s138
          %p140 = scmp.ne.s32.totalorder 0, %s139
          %s141 = smul.addr %s135, 4
          %s142 = scalar_lea.vmem %s1, %s141
          %s143 = smul.u32 %s138, 4
          // Predicated region
          $region29: #{autoencoder_forward.9} parent=27 // pred_check
            %p144 = pneg %p140
          $region30: #{autoencoder_forward.9} parent=27 // pred_check_branch
            %146 = sbr.rel (%p144) target = $region32
          $region31: #{autoencoder_forward.9} parent=27 // pred_region
            %p147 = scmp.lt.u32.totalorder %s143, 8
            %p148 = pneg %p147
            // Predicated region
            $region33: #{autoencoder_forward.9} parent=31 // pred_check
              _
            $region34: #{autoencoder_forward.9} parent=31 // pred_check_branch
              %150 = sbr.rel (%p147) target = $region36
            $region35: #{autoencoder_forward.9} parent=31 // pred_region
              %s172 = sand.u32 %s143, 7
              %p173 = scmp.eq.s32.totalorder %s172, 0
              // Predicated region
              $region48: #{autoencoder_forward.9} parent=35 // pred_check
                %p174 = pneg %p173
              $region49: #{autoencoder_forward.9} parent=35 // pred_check_branch
                %176 = sbr.rel (%p174) target = $region51
              $region50: #{autoencoder_forward.9} parent=35 // pred_region
                %s177 = sshrl.u32 %s143, 3
                %s178 = sshrl.u32 %s177, 3
                // While loop
                $region52: #{autoencoder_forward.9} parent=50 // loop_pre_header
                  _
                $region53: #{autoencoder_forward.9} parent=50 // loop_header
                  %s180 = sphi 0, %s182
                  %p181 = scmp.ge.s32.totalorder %s180, %s178
                  %s185 = sphi 0, %s254
                  %s186 = sphi %s142, %s257
                  %s187 = sphi %s134, %s258
                $region54: #{autoencoder_forward.9} parent=50 // loop_header_branch
                  %184 = sbr.rel (%p181) target = $region58
                $region55: #{autoencoder_forward.9} parent=50 // loop_body
                  %v188 = vld [vmem:[%s186] sm:$0xff]
                  %189 = vst [vmem:[%s187] sm:$0xff] %v188
                  %v190 = vld [vmem:[%s186 + $0x8] sm:$0xff]
                  %191 = vst [vmem:[%s187 + $0x8] sm:$0xff] %v190
                  %v192 = vld [vmem:[%s186 + $0x10] sm:$0xff]
                  %193 = vst [vmem:[%s187 + $0x10] sm:$0xff] %v192
                  %v194 = vld [vmem:[%s186 + $0x18] sm:$0xff]
                  %195 = vst [vmem:[%s187 + $0x18] sm:$0xff] %v194
                  %v196 = vld [vmem:[%s186 + $0x20] sm:$0xff]
                  %197 = vst [vmem:[%s187 + $0x20] sm:$0xff] %v196
                  %v198 = vld [vmem:[%s186 + $0x28] sm:$0xff]
                  %199 = vst [vmem:[%s187 + $0x28] sm:$0xff] %v198
                  %v200 = vld [vmem:[%s186 + $0x30] sm:$0xff]
                  %201 = vst [vmem:[%s187 + $0x30] sm:$0xff] %v200
                  %v202 = vld [vmem:[%s186 + $0x38] sm:$0xff]
                  %203 = vst [vmem:[%s187 + $0x38] sm:$0xff] %v202
                  %v204 = vld [vmem:[%s186 + $0x64] sm:$0xff]
                  %205 = vst [vmem:[%s187 + $0x34] sm:$0xff] %v204
                  %v206 = vld [vmem:[%s186 + $0x6c] sm:$0xff]
                  %207 = vst [vmem:[%s187 + $0x3c] sm:$0xff] %v206
                  %v208 = vld [vmem:[%s186 + $0x74] sm:$0xff]
                  %209 = vst [vmem:[%s187 + $0x44] sm:$0xff] %v208
                  %v210 = vld [vmem:[%s186 + $0x7c] sm:$0xff]
                  %211 = vst [vmem:[%s187 + $0x4c] sm:$0xff] %v210
                  %v212 = vld [vmem:[%s186 + $0x84] sm:$0xff]
                  %213 = vst [vmem:[%s187 + $0x54] sm:$0xff] %v212
                  %v214 = vld [vmem:[%s186 + $0x8c] sm:$0xff]
                  %215 = vst [vmem:[%s187 + $0x5c] sm:$0xff] %v214
                  %v216 = vld [vmem:[%s186 + $0x94] sm:$0xff]
                  %217 = vst [vmem:[%s187 + $0x64] sm:$0xff] %v216
                  %v218 = vld [vmem:[%s186 + $0x9c] sm:$0xff]
                  %219 = vst [vmem:[%s187 + $0x6c] sm:$0xff] %v218
                  %v220 = vld [vmem:[%s186 + $0xc8] sm:$0xff]
                  %221 = vst [vmem:[%s187 + $0x68] sm:$0xff] %v220
                  %v222 = vld [vmem:[%s186 + $0xd0] sm:$0xff]
                  %223 = vst [vmem:[%s187 + $0x70] sm:$0xff] %v222
                  %v224 = vld [vmem:[%s186 + $0xd8] sm:$0xff]
                  %225 = vst [vmem:[%s187 + $0x78] sm:$0xff] %v224
                  %v226 = vld [vmem:[%s186 + $0xe0] sm:$0xff]
                  %227 = vst [vmem:[%s187 + $0x80] sm:$0xff] %v226
                  %v228 = vld [vmem:[%s186 + $0xe8] sm:$0xff]
                  %229 = vst [vmem:[%s187 + $0x88] sm:$0xff] %v228
                  %v230 = vld [vmem:[%s186 + $0xf0] sm:$0xff]
                  %231 = vst [vmem:[%s187 + $0x90] sm:$0xff] %v230
                  %v232 = vld [vmem:[%s186 + $0xf8] sm:$0xff]
                  %233 = vst [vmem:[%s187 + $0x98] sm:$0xff] %v232
                  %v234 = vld [vmem:[%s186 + $0x100] sm:$0xff]
                  %235 = vst [vmem:[%s187 + $0xa0] sm:$0xff] %v234
                  %v236 = vld [vmem:[%s186 + $0x12c] sm:$0xff]
                  %237 = vst [vmem:[%s187 + $0x9c] sm:$0xff] %v236
                  %v238 = vld [vmem:[%s186 + $0x134] sm:$0xff]
                  %239 = vst [vmem:[%s187 + $0xa4] sm:$0xff] %v238
                  %v240 = vld [vmem:[%s186 + $0x13c] sm:$0xff]
                  %241 = vst [vmem:[%s187 + $0xac] sm:$0xff] %v240
                  %v242 = vld [vmem:[%s186 + $0x144] sm:$0xff]
                  %243 = vst [vmem:[%s187 + $0xb4] sm:$0xff] %v242
                  %v244 = vld [vmem:[%s186 + $0x14c] sm:$0xff]
                  %245 = vst [vmem:[%s187 + $0xbc] sm:$0xff] %v244
                  %v246 = vld [vmem:[%s186 + $0x154] sm:$0xff]
                  %247 = vst [vmem:[%s187 + $0xc4] sm:$0xff] %v246
                  %v248 = vld [vmem:[%s186 + $0x15c] sm:$0xff]
                  %249 = vst [vmem:[%s187 + $0xcc] sm:$0xff] %v248
                  %v250 = vld [vmem:[%s186 + $0x164] sm:$0xff]
                  %251 = vst [vmem:[%s187 + $0xd4] sm:$0xff] %v250
                  %s252 = sadd.s32 1, %s185
                  %p253 = scmp.ge.s32.totalorder %s252, %s178
                  %s254 = scalar_select %p253, 0, %s252
                  %s255 = smul.u32 %s254, 64
                  %s256 = smul.u32 %s254, 64
                  %s257 = scalar_lea.vmem %s142, %s255
                  %s258 = scalar_lea.vmem %s134, %s256 [#allocation2]
                $region56: #{autoencoder_forward.9} parent=50 // loop_footer
                  %s182 = sadd.s32 %s180, 1
                $region57: #{autoencoder_forward.9} parent=50 // loop_footer_branch
                  %179 = sbr.rel target = $region53
                $region58: #{autoencoder_forward.9} parent=50 // loop_exit
                  _
                %s259 = sshrl.u32 %s177, 3
                %s260 = sand.u32 %s177, 7
                %s261 = smul.u32 %s259, 8
                %s262 = smul.u32 8, %s261
                %s263 = scalar_lea.vmem %s142, %s262
                %s264 = smul.u32 8, %s261
                %s265 = scalar_lea.vmem %s134, %s264 [#allocation2]
                // While loop
                $region59: #{autoencoder_forward.9} parent=50 // loop_pre_header
                  _
                $region60: #{autoencoder_forward.9} parent=50 // loop_header
                  %s267 = sphi 0, %s269
                  %p268 = scmp.ge.s32.totalorder %s267, %s260
                  %s272 = sphi 0, %s285
                  %s273 = sphi %s263, %s288
                  %s274 = sphi %s265, %s289
                $region61: #{autoencoder_forward.9} parent=50 // loop_header_branch
                  %271 = sbr.rel (%p268) target = $region65
                $region62: #{autoencoder_forward.9} parent=50 // loop_body
                  %v275 = vld [vmem:[%s273] sm:$0xff]
                  %276 = vst [vmem:[%s274] sm:$0xff] %v275
                  %v277 = vld [vmem:[%s273 + $0x64] sm:$0xff]
                  %278 = vst [vmem:[%s274 + $0x34] sm:$0xff] %v277
                  %v279 = vld [vmem:[%s273 + $0xc8] sm:$0xff]
                  %280 = vst [vmem:[%s274 + $0x68] sm:$0xff] %v279
                  %v281 = vld [vmem:[%s273 + $0x12c] sm:$0xff]
                  %282 = vst [vmem:[%s274 + $0x9c] sm:$0xff] %v281
                  %s283 = sadd.s32 1, %s272
                  %p284 = scmp.ge.s32.totalorder %s283, %s260
                  %s285 = scalar_select %p284, 0, %s283
                  %s286 = smul.u32 %s285, 8
                  %s287 = smul.u32 %s285, 8
                  %s288 = scalar_lea.vmem %s263, %s286
                  %s289 = scalar_lea.vmem %s265, %s287 [#allocation2]
                $region63: #{autoencoder_forward.9} parent=50 // loop_footer
                  %s269 = sadd.s32 %s267, 1
                $region64: #{autoencoder_forward.9} parent=50 // loop_footer_branch
                  %266 = sbr.rel target = $region60
                $region65: #{autoencoder_forward.9} parent=50 // loop_exit
                  _
              $region51: #{autoencoder_forward.9} parent=35 // pred_fallthru
                _
              %p290 = pneg %p173
              // Predicated region
              $region66: #{autoencoder_forward.9} parent=35 // pred_check
                _
              $region67: #{autoencoder_forward.9} parent=35 // pred_check_branch
                %292 = sbr.rel (%p173) target = $region69
              $region68: #{autoencoder_forward.9} parent=35 // pred_region
                %s293 = sand.u32 %s143, 7
                %s294 = ssub.s32 %s143, %s293
                %s295 = scalar_lea.vmem %s142, %s294
                %s296 = ssub.s32 %s143, %s293
                %s297 = scalar_lea.vmem %s134, %s296 [#allocation2]
                %s298 = sshrl.u32 %s143, 3
                %s299 = sshrl.u32 %s298, 3
                // While loop
                $region70: #{autoencoder_forward.9} parent=68 // loop_pre_header
                  _
                $region71: #{autoencoder_forward.9} parent=68 // loop_header
                  %s301 = sphi 0, %s303
                  %p302 = scmp.ge.s32.totalorder %s301, %s299
                  %s306 = sphi 0, %s375
                  %s307 = sphi %s142, %s378
                  %s308 = sphi %s134, %s379
                $region72: #{autoencoder_forward.9} parent=68 // loop_header_branch
                  %305 = sbr.rel (%p302) target = $region76
                $region73: #{autoencoder_forward.9} parent=68 // loop_body
                  %v309 = vld [vmem:[%s307] sm:$0xff]
                  %310 = vst [vmem:[%s308] sm:$0xff] %v309
                  %v311 = vld [vmem:[%s307 + $0x8] sm:$0xff]
                  %312 = vst [vmem:[%s308 + $0x8] sm:$0xff] %v311
                  %v313 = vld [vmem:[%s307 + $0x10] sm:$0xff]
                  %314 = vst [vmem:[%s308 + $0x10] sm:$0xff] %v313
                  %v315 = vld [vmem:[%s307 + $0x18] sm:$0xff]
                  %316 = vst [vmem:[%s308 + $0x18] sm:$0xff] %v315
                  %v317 = vld [vmem:[%s307 + $0x20] sm:$0xff]
                  %318 = vst [vmem:[%s308 + $0x20] sm:$0xff] %v317
                  %v319 = vld [vmem:[%s307 + $0x28] sm:$0xff]
                  %320 = vst [vmem:[%s308 + $0x28] sm:$0xff] %v319
                  %v321 = vld [vmem:[%s307 + $0x30] sm:$0xff]
                  %322 = vst [vmem:[%s308 + $0x30] sm:$0xff] %v321
                  %v323 = vld [vmem:[%s307 + $0x38] sm:$0xff]
                  %324 = vst [vmem:[%s308 + $0x38] sm:$0xff] %v323
                  %v325 = vld [vmem:[%s307 + $0x64] sm:$0xff]
                  %326 = vst [vmem:[%s308 + $0x34] sm:$0xff] %v325
                  %v327 = vld [vmem:[%s307 + $0x6c] sm:$0xff]
                  %328 = vst [vmem:[%s308 + $0x3c] sm:$0xff] %v327
                  %v329 = vld [vmem:[%s307 + $0x74] sm:$0xff]
                  %330 = vst [vmem:[%s308 + $0x44] sm:$0xff] %v329
                  %v331 = vld [vmem:[%s307 + $0x7c] sm:$0xff]
                  %332 = vst [vmem:[%s308 + $0x4c] sm:$0xff] %v331
                  %v333 = vld [vmem:[%s307 + $0x84] sm:$0xff]
                  %334 = vst [vmem:[%s308 + $0x54] sm:$0xff] %v333
                  %v335 = vld [vmem:[%s307 + $0x8c] sm:$0xff]
                  %336 = vst [vmem:[%s308 + $0x5c] sm:$0xff] %v335
                  %v337 = vld [vmem:[%s307 + $0x94] sm:$0xff]
                  %338 = vst [vmem:[%s308 + $0x64] sm:$0xff] %v337
                  %v339 = vld [vmem:[%s307 + $0x9c] sm:$0xff]
                  %340 = vst [vmem:[%s308 + $0x6c] sm:$0xff] %v339
                  %v341 = vld [vmem:[%s307 + $0xc8] sm:$0xff]
                  %342 = vst [vmem:[%s308 + $0x68] sm:$0xff] %v341
                  %v343 = vld [vmem:[%s307 + $0xd0] sm:$0xff]
                  %344 = vst [vmem:[%s308 + $0x70] sm:$0xff] %v343
                  %v345 = vld [vmem:[%s307 + $0xd8] sm:$0xff]
                  %346 = vst [vmem:[%s308 + $0x78] sm:$0xff] %v345
                  %v347 = vld [vmem:[%s307 + $0xe0] sm:$0xff]
                  %348 = vst [vmem:[%s308 + $0x80] sm:$0xff] %v347
                  %v349 = vld [vmem:[%s307 + $0xe8] sm:$0xff]
                  %350 = vst [vmem:[%s308 + $0x88] sm:$0xff] %v349
                  %v351 = vld [vmem:[%s307 + $0xf0] sm:$0xff]
                  %352 = vst [vmem:[%s308 + $0x90] sm:$0xff] %v351
                  %v353 = vld [vmem:[%s307 + $0xf8] sm:$0xff]
                  %354 = vst [vmem:[%s308 + $0x98] sm:$0xff] %v353
                  %v355 = vld [vmem:[%s307 + $0x100] sm:$0xff]
                  %356 = vst [vmem:[%s308 + $0xa0] sm:$0xff] %v355
                  %v357 = vld [vmem:[%s307 + $0x12c] sm:$0xff]
                  %358 = vst [vmem:[%s308 + $0x9c] sm:$0xff] %v357
                  %v359 = vld [vmem:[%s307 + $0x134] sm:$0xff]
                  %360 = vst [vmem:[%s308 + $0xa4] sm:$0xff] %v359
                  %v361 = vld [vmem:[%s307 + $0x13c] sm:$0xff]
                  %362 = vst [vmem:[%s308 + $0xac] sm:$0xff] %v361
                  %v363 = vld [vmem:[%s307 + $0x144] sm:$0xff]
                  %364 = vst [vmem:[%s308 + $0xb4] sm:$0xff] %v363
                  %v365 = vld [vmem:[%s307 + $0x14c] sm:$0xff]
                  %366 = vst [vmem:[%s308 + $0xbc] sm:$0xff] %v365
                  %v367 = vld [vmem:[%s307 + $0x154] sm:$0xff]
                  %368 = vst [vmem:[%s308 + $0xc4] sm:$0xff] %v367
                  %v369 = vld [vmem:[%s307 + $0x15c] sm:$0xff]
                  %370 = vst [vmem:[%s308 + $0xcc] sm:$0xff] %v369
                  %v371 = vld [vmem:[%s307 + $0x164] sm:$0xff]
                  %372 = vst [vmem:[%s308 + $0xd4] sm:$0xff] %v371
                  %s373 = sadd.s32 1, %s306
                  %p374 = scmp.ge.s32.totalorder %s373, %s299
                  %s375 = scalar_select %p374, 0, %s373
                  %s376 = smul.u32 %s375, 64
                  %s377 = smul.u32 %s375, 64
                  %s378 = scalar_lea.vmem %s142, %s376
                  %s379 = scalar_lea.vmem %s134, %s377 [#allocation2]
                $region74: #{autoencoder_forward.9} parent=68 // loop_footer
                  %s303 = sadd.s32 %s301, 1
                $region75: #{autoencoder_forward.9} parent=68 // loop_footer_branch
                  %300 = sbr.rel target = $region71
                $region76: #{autoencoder_forward.9} parent=68 // loop_exit
                  _
                %s380 = sshrl.u32 %s298, 3
                %s381 = sand.u32 %s298, 7
                %s382 = smul.u32 %s380, 8
                %s383 = smul.u32 8, %s382
                %s384 = scalar_lea.vmem %s142, %s383
                %s385 = smul.u32 8, %s382
                %s386 = scalar_lea.vmem %s134, %s385 [#allocation2]
                // While loop
                $region77: #{autoencoder_forward.9} parent=68 // loop_pre_header
                  _
                $region78: #{autoencoder_forward.9} parent=68 // loop_header
                  %s388 = sphi 0, %s390
                  %p389 = scmp.ge.s32.totalorder %s388, %s381
                  %s393 = sphi 0, %s406
                  %s394 = sphi %s384, %s409
                  %s395 = sphi %s386, %s410
                $region79: #{autoencoder_forward.9} parent=68 // loop_header_branch
                  %392 = sbr.rel (%p389) target = $region83
                $region80: #{autoencoder_forward.9} parent=68 // loop_body
                  %v396 = vld [vmem:[%s394] sm:$0xff]
                  %397 = vst [vmem:[%s395] sm:$0xff] %v396
                  %v398 = vld [vmem:[%s394 + $0x64] sm:$0xff]
                  %399 = vst [vmem:[%s395 + $0x34] sm:$0xff] %v398
                  %v400 = vld [vmem:[%s394 + $0xc8] sm:$0xff]
                  %401 = vst [vmem:[%s395 + $0x68] sm:$0xff] %v400
                  %v402 = vld [vmem:[%s394 + $0x12c] sm:$0xff]
                  %403 = vst [vmem:[%s395 + $0x9c] sm:$0xff] %v402
                  %s404 = sadd.s32 1, %s393
                  %p405 = scmp.ge.s32.totalorder %s404, %s381
                  %s406 = scalar_select %p405, 0, %s404
                  %s407 = smul.u32 %s406, 8
                  %s408 = smul.u32 %s406, 8
                  %s409 = scalar_lea.vmem %s384, %s407
                  %s410 = scalar_lea.vmem %s386, %s408 [#allocation2]
                $region81: #{autoencoder_forward.9} parent=68 // loop_footer
                  %s390 = sadd.s32 %s388, 1
                $region82: #{autoencoder_forward.9} parent=68 // loop_footer_branch
                  %387 = sbr.rel target = $region78
                $region83: #{autoencoder_forward.9} parent=68 // loop_exit
                  _
                %s411 = sshll.u32 1, %s293
                %s412 = ssub.s32 %s411, 1
                loop: start=0, step=1, limit=1
                $region84: #{autoencoder_forward.9} parent=68 // loop_pre_header
                  _
                $region85: #{autoencoder_forward.9} parent=68 // loop_header
                  %s414 = sphi 0, %s418
                  %p415 = scmp.ge.s32.totalorder %s414, 1
                  %s419 = sphi %s295, %s295
                  %s420 = sphi %s297, %s297
                $region86: #{autoencoder_forward.9} parent=68 // loop_header_branch
                  %417 = sbr.rel (%p415) target = $region90
                $region87: #{autoencoder_forward.9} parent=68 // loop_body
                  %v421 = vld [vmem:[%s419] sm:%s412]
                  %422 = vst [vmem:[%s420] sm:%s412] %v421
                  %v423 = vld [vmem:[%s419 + $0x64] sm:%s412]
                  %424 = vst [vmem:[%s420 + $0x34] sm:%s412] %v423
                  %v425 = vld [vmem:[%s419 + $0xc8] sm:%s412]
                  %426 = vst [vmem:[%s420 + $0x68] sm:%s412] %v425
                  %v427 = vld [vmem:[%s419 + $0x12c] sm:%s412]
                  %428 = vst [vmem:[%s420 + $0x9c] sm:%s412] %v427
                $region88: #{autoencoder_forward.9} parent=68 // loop_footer
                  %s418 = sadd.s32 1, %s414
                $region89: #{autoencoder_forward.9} parent=68 // loop_footer_branch
                  %413 = sbr.rel target = $region85
                $region90: #{autoencoder_forward.9} parent=68 // loop_exit
                  _
              $region69: #{autoencoder_forward.9} parent=35 // pred_fallthru
                _
            $region36: #{autoencoder_forward.9} parent=31 // pred_fallthru
              _
            // Predicated region
            $region37: #{autoencoder_forward.9} parent=31 // pred_check
              %p151 = pneg %p147
            $region38: #{autoencoder_forward.9} parent=31 // pred_check_branch
              %153 = sbr.rel (%p151) target = $region40
            $region39: #{autoencoder_forward.9} parent=31 // pred_region
              %s154 = sshll.u32 1, %s143
              %s155 = ssub.s32 %s154, 1
              loop: start=0, step=1, limit=1
              $region41: #{autoencoder_forward.9} parent=39 // loop_pre_header
                _
              $region42: #{autoencoder_forward.9} parent=39 // loop_header
                %s157 = sphi 0, %s161
                %p158 = scmp.ge.s32.totalorder %s157, 1
                %s162 = sphi %s142, %s142
                %s163 = sphi %s134, %s134
              $region43: #{autoencoder_forward.9} parent=39 // loop_header_branch
                %160 = sbr.rel (%p158) target = $region47
              $region44: #{autoencoder_forward.9} parent=39 // loop_body
                %v164 = vld [vmem:[%s162] sm:%s155]
                %165 = vst [vmem:[%s163] sm:%s155] %v164
                %v166 = vld [vmem:[%s162 + $0x64] sm:%s155]
                %167 = vst [vmem:[%s163 + $0x34] sm:%s155] %v166
                %v168 = vld [vmem:[%s162 + $0xc8] sm:%s155]
                %169 = vst [vmem:[%s163 + $0x68] sm:%s155] %v168
                %v170 = vld [vmem:[%s162 + $0x12c] sm:%s155]
                %171 = vst [vmem:[%s163 + $0x9c] sm:%s155] %v170
              $region45: #{autoencoder_forward.9} parent=39 // loop_footer
                %s161 = sadd.s32 1, %s157
              $region46: #{autoencoder_forward.9} parent=39 // loop_footer_branch
                %156 = sbr.rel target = $region42
              $region47: #{autoencoder_forward.9} parent=39 // loop_exit
                _
            $region40: #{autoencoder_forward.9} parent=31 // pred_fallthru
              _
          $region32: #{autoencoder_forward.9} parent=27 // pred_fallthru
            _
          %429 = vnop
        $region28: #{autoencoder_forward.9} parent=23 // pred_fallthru
          _
      $region24: #{autoencoder_forward.9} parent=5 // pred_fallthru
        _
      %p430 = scmp.le.s32.totalorder 1, %s9
      %p431 = scmp.lt.s32.totalorder %s9, 3
      %p432 = pnand %p430, %p431
      %p433 = pneg %p432
      // Predicated region
      $region91: #{autoencoder_forward.9} parent=5 // pred_check
        _
      $region92: #{autoencoder_forward.9} parent=5 // pred_check_branch
        %435 = sbr.rel (%p432) target = $region94
      $region93: #{autoencoder_forward.9} parent=5 // pred_region
        %s436 = ssub.s32 %s9, 1
        %s437 = sand.u32 %s43, 1
        %s438 = sand.u32 %s43, 1
        %s439 = smul.addr %s438, 208
        %s440 = scalar_lea.vmem [#allocation2], %s439
        // Predicated region
        $region95: #{autoencoder_forward.9} parent=93 // pred_check
          %p441 = pneg %p56
        $region96: #{autoencoder_forward.9} parent=93 // pred_check_branch
          %443 = sbr.rel (%p441) target = $region98
        $region97: #{autoencoder_forward.9} parent=93 // pred_region
          _
        $region98: #{autoencoder_forward.9} parent=93 // pred_fallthru
          _
        %p444 = pneg %p30
        %p445 = pneg %p27
        %s446 = sand.u32 %s43, 1
        %s447 = sand.u32 %s43, 1
        %s448 = smul.addr %s447, 208
        %s449 = scalar_lea.vmem [#allocation2], %s448
        %p450 = pneg %p56
        %p451 = pneg %p53
        %p452 = pneg %p77
        %p453 = pneg %p74
        %p454 = pneg %p103
        %p455 = pneg %p100
        %s456 = sand.u32 %s90, 1
        %s457 = sand.u32 %s90, 1
        %s458 = smul.addr %s457, 52
        %s459 = scalar_lea.vmem [#allocation3], %s458
        %s460 = smul.u32 13, %s14
        %s461 = ssub.s32 25, %s460
        %p462 = scmp.lt.s32.totalorder %s461, 13
        %s463 = scalar_select %p462, %s461, 13
        %s464 = smul.u32 16, %s463
        %s465 = smul.u32 13, %s14
        %s466 = ssub.s32 25, %s465
        %p467 = scmp.lt.s32.totalorder %s466, 13
        %s468 = scalar_select %p467, %s466, 13
        %s469 = smul.u32 4, %s468
        %v471 = vld [vmem:[%s0] sm:$0x3]
        %v472 = vld [vmem:[%s440] sm:$0xff]
        %v473 = vld [vmem:[%s440 + $0x8] sm:$0xff]
        %v474 = vld [vmem:[%s440 + $0x10] sm:$0xff]
        %v475 = vld [vmem:[%s440 + $0x18] sm:$0xff]
        %v476 = vld [vmem:[%s440 + $0x20] sm:$0xff]
        %v477 = vld [vmem:[%s440 + $0x28] sm:$0xff]
        %v478 = vld [vmem:[%s440 + $0x30] sm:$0xf]
        %v479 = vld [vmem:[%s440 + $0x34] sm:$0xff]
        %v480 = vld [vmem:[%s440 + $0x3c] sm:$0xff]
        %v481 = vld [vmem:[%s440 + $0x44] sm:$0xff]
        %v482 = vld [vmem:[%s440 + $0x4c] sm:$0xff]
        %v483 = vld [vmem:[%s440 + $0x54] sm:$0xff]
        %v484 = vld [vmem:[%s440 + $0x5c] sm:$0xff]
        %v485 = vld [vmem:[%s440 + $0x64] sm:$0xf]
        %v486 = vld [vmem:[%s440 + $0x68] sm:$0xff]
        %v487 = vld [vmem:[%s440 + $0x70] sm:$0xff]
        %v488 = vld [vmem:[%s440 + $0x78] sm:$0xff]
        %v489 = vld [vmem:[%s440 + $0x80] sm:$0xff]
        %v490 = vld [vmem:[%s440 + $0x88] sm:$0xff]
        %v491 = vld [vmem:[%s440 + $0x90] sm:$0xff]
        %v492 = vld [vmem:[%s440 + $0x98] sm:$0xf]
        %v493 = vld [vmem:[%s440 + $0x9c] sm:$0xff]
        %v494 = vld [vmem:[%s440 + $0xa4] sm:$0xff]
        %v495 = vld [vmem:[%s440 + $0xac] sm:$0xff]
        %v496 = vld [vmem:[%s440 + $0xb4] sm:$0xff]
        %v497 = vld [vmem:[%s440 + $0xbc] sm:$0xff]
        %v498 = vld [vmem:[%s440 + $0xc4] sm:$0xff]
        %v499 = vld [vmem:[%s440 + $0xcc] sm:$0xf]
        %v500 = vld [vmem:[%s2] sm:$0x7]
        %502 = vset.pattern.permute.xlu0 0
        %503 = vperm.xlu0 %502, %v500
        %v504 = vpop.permute.xlu0 %503
        %v534 = vunpack.c.l.b16 %v472
        %v535 = vunpack.c.h.b16 %v472
        %v536 = vunpack.c.l.b16 %v473
        %v537 = vunpack.c.h.b16 %v473
        %v538 = vunpack.c.l.b16 %v474
        %v539 = vunpack.c.h.b16 %v474
        %v540 = vunpack.c.l.b16 %v475
        %v541 = vunpack.c.h.b16 %v475
        %v542 = vunpack.c.l.b16 %v476
        %v543 = vunpack.c.h.b16 %v476
        %v544 = vunpack.c.l.b16 %v477
        %v545 = vunpack.c.h.b16 %v477
        %v546 = vunpack.c.l.b16 %v478
        %v547 = vunpack.c.l.b16 %v479
        %v548 = vunpack.c.h.b16 %v479
        %v549 = vunpack.c.l.b16 %v480
        %v550 = vunpack.c.h.b16 %v480
        %v551 = vunpack.c.l.b16 %v481
        %v552 = vunpack.c.h.b16 %v481
        %v553 = vunpack.c.l.b16 %v482
        %v554 = vunpack.c.h.b16 %v482
        %v555 = vunpack.c.l.b16 %v483
        %v556 = vunpack.c.h.b16 %v483
        %v557 = vunpack.c.l.b16 %v484
        %v558 = vunpack.c.h.b16 %v484
        %v559 = vunpack.c.l.b16 %v485
        %v560 = vunpack.c.l.b16 %v486
        %v561 = vunpack.c.h.b16 %v486
        %v562 = vunpack.c.l.b16 %v487
        %v563 = vunpack.c.h.b16 %v487
        %v564 = vunpack.c.l.b16 %v488
        %v565 = vunpack.c.h.b16 %v488
        %v566 = vunpack.c.l.b16 %v489
        %v567 = vunpack.c.h.b16 %v489
        %v568 = vunpack.c.l.b16 %v490
        %v569 = vunpack.c.h.b16 %v490
        %v570 = vunpack.c.l.b16 %v491
        %v571 = vunpack.c.h.b16 %v491
        %v572 = vunpack.c.l.b16 %v492
        %v573 = vunpack.c.l.b16 %v493
        %v574 = vunpack.c.h.b16 %v493
        %v575 = vunpack.c.l.b16 %v494
        %v576 = vunpack.c.h.b16 %v494
        %v577 = vunpack.c.l.b16 %v495
        %v578 = vunpack.c.h.b16 %v495
        %v579 = vunpack.c.l.b16 %v496
        %v580 = vunpack.c.h.b16 %v496
        %v581 = vunpack.c.l.b16 %v497
        %v582 = vunpack.c.h.b16 %v497
        %v583 = vunpack.c.l.b16 %v498
        %v584 = vunpack.c.h.b16 %v498
        %v585 = vunpack.c.l.b16 %v499
        %v586 = vpack.c.b16 %v547, %v534
        %v587 = vpack.c.b16 %v548, %v535
        %v588 = vpack.c.b16 %v549, %v536
        %v589 = vpack.c.b16 %v550, %v537
        %v590 = vpack.c.b16 %v551, %v538
        %v591 = vpack.c.b16 %v552, %v539
        %v592 = vpack.c.b16 %v553, %v540
        %v593 = vpack.c.b16 %v554, %v541
        %v594 = vpack.c.b16 %v555, %v542
        %v595 = vpack.c.b16 %v556, %v543
        %v596 = vpack.c.b16 %v557, %v544
        %v597 = vpack.c.b16 %v558, %v545
        %v598 = vpack.c.b16 %v559, %v546
        %v599 = vpack.c.b16 %v573, %v560
        %v600 = vpack.c.b16 %v574, %v561
        %v601 = vpack.c.b16 %v575, %v562
        %v602 = vpack.c.b16 %v576, %v563
        %v603 = vpack.c.b16 %v577, %v564
        %v604 = vpack.c.b16 %v578, %v565
        %v605 = vpack.c.b16 %v579, %v566
        %v606 = vpack.c.b16 %v580, %v567
        %v607 = vpack.c.b16 %v581, %v568
        %v608 = vpack.c.b16 %v582, %v569
        %v609 = vpack.c.b16 %v583, %v570
        %v610 = vpack.c.b16 %v584, %v571
        %v611 = vpack.c.b16 %v585, %v572
        %vm638 = vcmask 261120
        %v640 = vsel %vm638, %v471, 0
        %642 = vmatpush.bf16.msra.mxu0 0
        %643 = vmatpush.bf16.msra.mxu0 0
        %644 = vmatpush.bf16.msra.mxu0 0
        %645 = vmatpush.bf16.msra.mxu0 0
        %646 = vmatpush.bf16.msra.mxu0 0
        %647 = vmatpush.bf16.msra.mxu0 0
        %648 = vmatpush.bf16.msra.mxu0 %v599
        %649 = vmatpush.bf16.msra.mxu0 %v586
        %650 = vmatmul.bf16.gmra.mxu0 %v640
        %v651 = vpop.f32.mrf.mxu0
        %v652 = vadd.f32 %v504, %v651
        %v653 = vpop.f32.mrf.mxu0
        %654 = vdwg.mxu0
        %655 = vmatpush.bf16.msra.mxu0 0
        %656 = vmatpush.bf16.msra.mxu0 0
        %657 = vmatpush.bf16.msra.mxu0 0
        %658 = vmatpush.bf16.msra.mxu0 0
        %659 = vmatpush.bf16.msra.mxu0 0
        %660 = vmatpush.bf16.msra.mxu0 0
        %661 = vmatpush.bf16.msra.mxu0 %v600
        %662 = vmatpush.bf16.msra.mxu0 %v587
        %663 = vmatmul.bf16.gmra.mxu0 %v640
        %v664 = vpop.f32.mrf.mxu0
        %v665 = vadd.f32 %v504, %v664
        %v666 = vpop.f32.mrf.mxu0
        %667 = vdwg.mxu0
        %668 = vmatpush.bf16.msra.mxu0 0
        %669 = vmatpush.bf16.msra.mxu0 0
        %670 = vmatpush.bf16.msra.mxu0 0
        %671 = vmatpush.bf16.msra.mxu0 0
        %672 = vmatpush.bf16.msra.mxu0 0
        %673 = vmatpush.bf16.msra.mxu0 0
        %674 = vmatpush.bf16.msra.mxu0 %v601
        %675 = vmatpush.bf16.msra.mxu0 %v588
        %676 = vmatmul.bf16.gmra.mxu0 %v640
        %v677 = vpop.f32.mrf.mxu0
        %v678 = vadd.f32 %v504, %v677
        %v679 = vpop.f32.mrf.mxu0
        %680 = vdwg.mxu0
        %681 = vmatpush.bf16.msra.mxu0 0
        %682 = vmatpush.bf16.msra.mxu0 0
        %683 = vmatpush.bf16.msra.mxu0 0
        %684 = vmatpush.bf16.msra.mxu0 0
        %685 = vmatpush.bf16.msra.mxu0 0
        %686 = vmatpush.bf16.msra.mxu0 0
        %687 = vmatpush.bf16.msra.mxu0 %v602
        %688 = vmatpush.bf16.msra.mxu0 %v589
        %689 = vmatmul.bf16.gmra.mxu0 %v640
        %v690 = vpop.f32.mrf.mxu0
        %v691 = vadd.f32 %v504, %v690
        %v692 = vpop.f32.mrf.mxu0
        %693 = vdwg.mxu0
        %694 = vmatpush.bf16.msra.mxu0 0
        %695 = vmatpush.bf16.msra.mxu0 0
        %696 = vmatpush.bf16.msra.mxu0 0
        %697 = vmatpush.bf16.msra.mxu0 0
        %698 = vmatpush.bf16.msra.mxu0 0
        %699 = vmatpush.bf16.msra.mxu0 0
        %700 = vmatpush.bf16.msra.mxu0 %v603
        %701 = vmatpush.bf16.msra.mxu0 %v590
        %702 = vmatmul.bf16.gmra.mxu0 %v640
        %v703 = vpop.f32.mrf.mxu0
        %v704 = vadd.f32 %v504, %v703
        %v705 = vpop.f32.mrf.mxu0
        %706 = vdwg.mxu0
        %707 = vmatpush.bf16.msra.mxu0 0
        %708 = vmatpush.bf16.msra.mxu0 0
        %709 = vmatpush.bf16.msra.mxu0 0
        %710 = vmatpush.bf16.msra.mxu0 0
        %711 = vmatpush.bf16.msra.mxu0 0
        %712 = vmatpush.bf16.msra.mxu0 0
        %713 = vmatpush.bf16.msra.mxu0 %v604
        %714 = vmatpush.bf16.msra.mxu0 %v591
        %715 = vmatmul.bf16.gmra.mxu0 %v640
        %v716 = vpop.f32.mrf.mxu0
        %v717 = vadd.f32 %v504, %v716
        %v718 = vpop.f32.mrf.mxu0
        %719 = vdwg.mxu0
        %720 = vmatpush.bf16.msra.mxu0 0
        %721 = vmatpush.bf16.msra.mxu0 0
        %722 = vmatpush.bf16.msra.mxu0 0
        %723 = vmatpush.bf16.msra.mxu0 0
        %724 = vmatpush.bf16.msra.mxu0 0
        %725 = vmatpush.bf16.msra.mxu0 0
        %726 = vmatpush.bf16.msra.mxu0 %v605
        %727 = vmatpush.bf16.msra.mxu0 %v592
        %728 = vmatmul.bf16.gmra.mxu0 %v640
        %v729 = vpop.f32.mrf.mxu0
        %v730 = vadd.f32 %v504, %v729
        %v731 = vpop.f32.mrf.mxu0
        %732 = vdwg.mxu0
        %733 = vmatpush.bf16.msra.mxu0 0
        %734 = vmatpush.bf16.msra.mxu0 0
        %735 = vmatpush.bf16.msra.mxu0 0
        %736 = vmatpush.bf16.msra.mxu0 0
        %737 = vmatpush.bf16.msra.mxu0 0
        %738 = vmatpush.bf16.msra.mxu0 0
        %739 = vmatpush.bf16.msra.mxu0 %v606
        %740 = vmatpush.bf16.msra.mxu0 %v593
        %741 = vmatmul.bf16.gmra.mxu0 %v640
        %v742 = vpop.f32.mrf.mxu0
        %v743 = vadd.f32 %v504, %v742
        %v744 = vpop.f32.mrf.mxu0
        %745 = vdwg.mxu0
        %746 = vmatpush.bf16.msra.mxu0 0
        %747 = vmatpush.bf16.msra.mxu0 0
        %748 = vmatpush.bf16.msra.mxu0 0
        %749 = vmatpush.bf16.msra.mxu0 0
        %750 = vmatpush.bf16.msra.mxu0 0
        %751 = vmatpush.bf16.msra.mxu0 0
        %752 = vmatpush.bf16.msra.mxu0 %v607
        %753 = vmatpush.bf16.msra.mxu0 %v594
        %754 = vmatmul.bf16.gmra.mxu0 %v640
        %v755 = vpop.f32.mrf.mxu0
        %v756 = vadd.f32 %v504, %v755
        %v757 = vpop.f32.mrf.mxu0
        %758 = vdwg.mxu0
        %759 = vmatpush.bf16.msra.mxu0 0
        %760 = vmatpush.bf16.msra.mxu0 0
        %761 = vmatpush.bf16.msra.mxu0 0
        %762 = vmatpush.bf16.msra.mxu0 0
        %763 = vmatpush.bf16.msra.mxu0 0
        %764 = vmatpush.bf16.msra.mxu0 0
        %765 = vmatpush.bf16.msra.mxu0 %v608
        %766 = vmatpush.bf16.msra.mxu0 %v595
        %767 = vmatmul.bf16.gmra.mxu0 %v640
        %v768 = vpop.f32.mrf.mxu0
        %v769 = vadd.f32 %v504, %v768
        %v770 = vpop.f32.mrf.mxu0
        %771 = vdwg.mxu0
        %772 = vmatpush.bf16.msra.mxu0 0
        %773 = vmatpush.bf16.msra.mxu0 0
        %774 = vmatpush.bf16.msra.mxu0 0
        %775 = vmatpush.bf16.msra.mxu0 0
        %776 = vmatpush.bf16.msra.mxu0 0
        %777 = vmatpush.bf16.msra.mxu0 0
        %778 = vmatpush.bf16.msra.mxu0 %v609
        %779 = vmatpush.bf16.msra.mxu0 %v596
        %780 = vmatmul.bf16.gmra.mxu0 %v640
        %v781 = vpop.f32.mrf.mxu0
        %v782 = vadd.f32 %v504, %v781
        %v783 = vpop.f32.mrf.mxu0
        %784 = vdwg.mxu0
        %785 = vmatpush.bf16.msra.mxu0 0
        %786 = vmatpush.bf16.msra.mxu0 0
        %787 = vmatpush.bf16.msra.mxu0 0
        %788 = vmatpush.bf16.msra.mxu0 0
        %789 = vmatpush.bf16.msra.mxu0 0
        %790 = vmatpush.bf16.msra.mxu0 0
        %791 = vmatpush.bf16.msra.mxu0 %v610
        %792 = vmatpush.bf16.msra.mxu0 %v597
        %793 = vmatmul.bf16.gmra.mxu0 %v640
        %v794 = vpop.f32.mrf.mxu0
        %v795 = vadd.f32 %v504, %v794
        %v796 = vpop.f32.mrf.mxu0
        %797 = vdwg.mxu0
        %798 = vmatpush.bf16.msra.mxu0 0
        %799 = vmatpush.bf16.msra.mxu0 0
        %800 = vmatpush.bf16.msra.mxu0 0
        %801 = vmatpush.bf16.msra.mxu0 0
        %802 = vmatpush.bf16.msra.mxu0 0
        %803 = vmatpush.bf16.msra.mxu0 0
        %804 = vmatpush.bf16.msra.mxu0 %v611
        %805 = vmatpush.bf16.msra.mxu0 %v598
        %806 = vmatmul.bf16.gmra.mxu0 %v640
        %v807 = vpop.f32.mrf.mxu0
        %v808 = vadd.f32 %v504, %v807
        %v809 = vpop.f32.mrf.mxu0
        %810 = vdwg.mxu0
        %v811 = vtanh.pop %v652
        %v812 = vtanh.pop %v665
        %v813 = vtanh.pop %v678
        %v814 = vtanh.pop %v691
        %v815 = vtanh.pop %v704
        %v816 = vtanh.pop %v717
        %v817 = vtanh.pop %v730
        %v818 = vtanh.pop %v743
        %v819 = vtanh.pop %v756
        %v820 = vtanh.pop %v769
        %v821 = vtanh.pop %v782
        %v822 = vtanh.pop %v795
        %v823 = vtanh.pop %v808
        %v836 = vrot.slane %v812, 4
        %v837 = vrot.slane %v814, 4
        %v838 = vrot.slane %v816, 4
        %v839 = vrot.slane %v818, 4
        %v840 = vrot.slane %v820, 4
        %v841 = vrot.slane %v822, 4
        %vm842 = vcmask 1043456
        %v843 = vsel %vm842, %v811, %v836
        %v844 = vsel %vm842, %v813, %v837
        %v845 = vsel %vm842, %v815, %v838
        %v846 = vsel %vm842, %v817, %v839
        %v847 = vsel %vm842, %v819, %v840
        %v848 = vsel %vm842, %v821, %v841
        %855 = vst [vmem:[%s459] sm:$0x77] %v843
        %856 = vst [vmem:[%s459 + $0x8] sm:$0x77] %v844
        %857 = vst [vmem:[%s459 + $0x10] sm:$0x77] %v845
        %858 = vst [vmem:[%s459 + $0x18] sm:$0x77] %v846
        %859 = vst [vmem:[%s459 + $0x20] sm:$0x77] %v847
        %860 = vst [vmem:[%s459 + $0x28] sm:$0x77] %v848
        %861 = vst [vmem:[%s459 + $0x30] sm:$0x7] %v823
        %s862 = sand.u32 %s90, 1
        %s863 = sand.u32 %s90, 1
        %s864 = smul.addr %s863, 52
        %s865 = scalar_lea.vmem [#allocation3], %s864
        // Predicated region
        $region99: #{autoencoder_forward.9} parent=93 // pred_check
          %p866 = pneg %p100
        $region100: #{autoencoder_forward.9} parent=93 // pred_check_branch
          %868 = sbr.rel (%p866) target = $region102
        $region101: #{autoencoder_forward.9} parent=93 // pred_region
          %s869 = smul.u32 13, %s14
          %s870 = ssub.s32 25, %s869
          %p871 = scmp.lt.s32.totalorder %s870, 13
          %s872 = scalar_select %p871, %s870, 13
          %s873 = smul.u32 4, %s872
          %p874 = scmp.ne.s32.totalorder 0, %s873
          %s875 = smul.addr %s869, 4
          %s876 = scalar_lea.vmem %s3, %s875
          %s877 = smul.u32 %s872, 4
          // Predicated region
          $region103: #{autoencoder_forward.9} parent=101 // pred_check
            %p878 = pneg %p874
          $region104: #{autoencoder_forward.9} parent=101 // pred_check_branch
            %880 = sbr.rel (%p878) target = $region106
          $region105: #{autoencoder_forward.9} parent=101 // pred_region
            %p881 = scmp.lt.u32.totalorder %s877, 8
            %p882 = pneg %p881
            // Predicated region
            $region107: #{autoencoder_forward.9} parent=105 // pred_check
              _
            $region108: #{autoencoder_forward.9} parent=105 // pred_check_branch
              %884 = sbr.rel (%p881) target = $region110
            $region109: #{autoencoder_forward.9} parent=105 // pred_region
              %s900 = sand.u32 %s877, 7
              %p901 = scmp.eq.s32.totalorder %s900, 0
              // Predicated region
              $region122: #{autoencoder_forward.9} parent=109 // pred_check
                %p902 = pneg %p901
              $region123: #{autoencoder_forward.9} parent=109 // pred_check_branch
                %904 = sbr.rel (%p902) target = $region125
              $region124: #{autoencoder_forward.9} parent=109 // pred_region
                %s905 = sshrl.u32 %s877, 3
                %s906 = sshrl.u32 %s905, 5
                // While loop
                $region126: #{autoencoder_forward.9} parent=124 // loop_pre_header
                  _
                $region127: #{autoencoder_forward.9} parent=124 // loop_header
                  %s908 = sphi 0, %s910
                  %p909 = scmp.ge.s32.totalorder %s908, %s906
                  %s913 = sphi 0, %s982
                  %s914 = sphi %s865, %s985
                  %s915 = sphi %s876, %s986
                $region128: #{autoencoder_forward.9} parent=124 // loop_header_branch
                  %912 = sbr.rel (%p909) target = $region132
                $region129: #{autoencoder_forward.9} parent=124 // loop_body
                  %v916 = vld [vmem:[%s914] sm:$0xff]
                  %917 = vst [vmem:[%s915] sm:$0xff] %v916
                  %v918 = vld [vmem:[%s914 + $0x8] sm:$0xff]
                  %919 = vst [vmem:[%s915 + $0x8] sm:$0xff] %v918
                  %v920 = vld [vmem:[%s914 + $0x10] sm:$0xff]
                  %921 = vst [vmem:[%s915 + $0x10] sm:$0xff] %v920
                  %v922 = vld [vmem:[%s914 + $0x18] sm:$0xff]
                  %923 = vst [vmem:[%s915 + $0x18] sm:$0xff] %v922
                  %v924 = vld [vmem:[%s914 + $0x20] sm:$0xff]
                  %925 = vst [vmem:[%s915 + $0x20] sm:$0xff] %v924
                  %v926 = vld [vmem:[%s914 + $0x28] sm:$0xff]
                  %927 = vst [vmem:[%s915 + $0x28] sm:$0xff] %v926
                  %v928 = vld [vmem:[%s914 + $0x30] sm:$0xff]
                  %929 = vst [vmem:[%s915 + $0x30] sm:$0xff] %v928
                  %v930 = vld [vmem:[%s914 + $0x38] sm:$0xff]
                  %931 = vst [vmem:[%s915 + $0x38] sm:$0xff] %v930
                  %v932 = vld [vmem:[%s914 + $0x40] sm:$0xff]
                  %933 = vst [vmem:[%s915 + $0x40] sm:$0xff] %v932
                  %v934 = vld [vmem:[%s914 + $0x48] sm:$0xff]
                  %935 = vst [vmem:[%s915 + $0x48] sm:$0xff] %v934
                  %v936 = vld [vmem:[%s914 + $0x50] sm:$0xff]
                  %937 = vst [vmem:[%s915 + $0x50] sm:$0xff] %v936
                  %v938 = vld [vmem:[%s914 + $0x58] sm:$0xff]
                  %939 = vst [vmem:[%s915 + $0x58] sm:$0xff] %v938
                  %v940 = vld [vmem:[%s914 + $0x60] sm:$0xff]
                  %941 = vst [vmem:[%s915 + $0x60] sm:$0xff] %v940
                  %v942 = vld [vmem:[%s914 + $0x68] sm:$0xff]
                  %943 = vst [vmem:[%s915 + $0x68] sm:$0xff] %v942
                  %v944 = vld [vmem:[%s914 + $0x70] sm:$0xff]
                  %945 = vst [vmem:[%s915 + $0x70] sm:$0xff] %v944
                  %v946 = vld [vmem:[%s914 + $0x78] sm:$0xff]
                  %947 = vst [vmem:[%s915 + $0x78] sm:$0xff] %v946
                  %v948 = vld [vmem:[%s914 + $0x80] sm:$0xff]
                  %949 = vst [vmem:[%s915 + $0x80] sm:$0xff] %v948
                  %v950 = vld [vmem:[%s914 + $0x88] sm:$0xff]
                  %951 = vst [vmem:[%s915 + $0x88] sm:$0xff] %v950
                  %v952 = vld [vmem:[%s914 + $0x90] sm:$0xff]
                  %953 = vst [vmem:[%s915 + $0x90] sm:$0xff] %v952
                  %v954 = vld [vmem:[%s914 + $0x98] sm:$0xff]
                  %955 = vst [vmem:[%s915 + $0x98] sm:$0xff] %v954
                  %v956 = vld [vmem:[%s914 + $0xa0] sm:$0xff]
                  %957 = vst [vmem:[%s915 + $0xa0] sm:$0xff] %v956
                  %v958 = vld [vmem:[%s914 + $0xa8] sm:$0xff]
                  %959 = vst [vmem:[%s915 + $0xa8] sm:$0xff] %v958
                  %v960 = vld [vmem:[%s914 + $0xb0] sm:$0xff]
                  %961 = vst [vmem:[%s915 + $0xb0] sm:$0xff] %v960
                  %v962 = vld [vmem:[%s914 + $0xb8] sm:$0xff]
                  %963 = vst [vmem:[%s915 + $0xb8] sm:$0xff] %v962
                  %v964 = vld [vmem:[%s914 + $0xc0] sm:$0xff]
                  %965 = vst [vmem:[%s915 + $0xc0] sm:$0xff] %v964
                  %v966 = vld [vmem:[%s914 + $0xc8] sm:$0xff]
                  %967 = vst [vmem:[%s915 + $0xc8] sm:$0xff] %v966
                  %v968 = vld [vmem:[%s914 + $0xd0] sm:$0xff]
                  %969 = vst [vmem:[%s915 + $0xd0] sm:$0xff] %v968
                  %v970 = vld [vmem:[%s914 + $0xd8] sm:$0xff]
                  %971 = vst [vmem:[%s915 + $0xd8] sm:$0xff] %v970
                  %v972 = vld [vmem:[%s914 + $0xe0] sm:$0xff]
                  %973 = vst [vmem:[%s915 + $0xe0] sm:$0xff] %v972
                  %v974 = vld [vmem:[%s914 + $0xe8] sm:$0xff]
                  %975 = vst [vmem:[%s915 + $0xe8] sm:$0xff] %v974
                  %v976 = vld [vmem:[%s914 + $0xf0] sm:$0xff]
                  %977 = vst [vmem:[%s915 + $0xf0] sm:$0xff] %v976
                  %v978 = vld [vmem:[%s914 + $0xf8] sm:$0xff]
                  %979 = vst [vmem:[%s915 + $0xf8] sm:$0xff] %v978
                  %s980 = sadd.s32 1, %s913
                  %p981 = scmp.ge.s32.totalorder %s980, %s906
                  %s982 = scalar_select %p981, 0, %s980
                  %s983 = smul.u32 %s982, 256
                  %s984 = smul.u32 %s982, 256
                  %s985 = scalar_lea.vmem %s865, %s983 [#allocation3]
                  %s986 = scalar_lea.vmem %s876, %s984
                $region130: #{autoencoder_forward.9} parent=124 // loop_footer
                  %s910 = sadd.s32 %s908, 1
                $region131: #{autoencoder_forward.9} parent=124 // loop_footer_branch
                  %907 = sbr.rel target = $region127
                $region132: #{autoencoder_forward.9} parent=124 // loop_exit
                  _
                %s987 = sshrl.u32 %s905, 5
                %s988 = sand.u32 %s905, 31
                %s989 = smul.u32 %s987, 32
                %s990 = smul.u32 8, %s989
                %s991 = scalar_lea.vmem %s865, %s990 [#allocation3]
                %s992 = smul.u32 8, %s989
                %s993 = scalar_lea.vmem %s876, %s992
                // While loop
                $region133: #{autoencoder_forward.9} parent=124 // loop_pre_header
                  _
                $region134: #{autoencoder_forward.9} parent=124 // loop_header
                  %s995 = sphi 0, %s997
                  %p996 = scmp.ge.s32.totalorder %s995, %s988
                  %s1000 = sphi 0, %s1007
                  %s1001 = sphi %s991, %s1010
                  %s1002 = sphi %s993, %s1011
                $region135: #{autoencoder_forward.9} parent=124 // loop_header_branch
                  %999 = sbr.rel (%p996) target = $region139
                $region136: #{autoencoder_forward.9} parent=124 // loop_body
                  %v1003 = vld [vmem:[%s1001] sm:$0xff]
                  %1004 = vst [vmem:[%s1002] sm:$0xff] %v1003
                  %s1005 = sadd.s32 1, %s1000
                  %p1006 = scmp.ge.s32.totalorder %s1005, %s988
                  %s1007 = scalar_select %p1006, 0, %s1005
                  %s1008 = smul.u32 %s1007, 8
                  %s1009 = smul.u32 %s1007, 8
                  %s1010 = scalar_lea.vmem %s991, %s1008 [#allocation3]
                  %s1011 = scalar_lea.vmem %s993, %s1009
                $region137: #{autoencoder_forward.9} parent=124 // loop_footer
                  %s997 = sadd.s32 %s995, 1
                $region138: #{autoencoder_forward.9} parent=124 // loop_footer_branch
                  %994 = sbr.rel target = $region134
                $region139: #{autoencoder_forward.9} parent=124 // loop_exit
                  _
              $region125: #{autoencoder_forward.9} parent=109 // pred_fallthru
                _
              %p1012 = pneg %p901
              // Predicated region
              $region140: #{autoencoder_forward.9} parent=109 // pred_check
                _
              $region141: #{autoencoder_forward.9} parent=109 // pred_check_branch
                %1014 = sbr.rel (%p901) target = $region143
              $region142: #{autoencoder_forward.9} parent=109 // pred_region
                %s1015 = sand.u32 %s877, 7
                %s1016 = ssub.s32 %s877, %s1015
                %s1017 = scalar_lea.vmem %s865, %s1016 [#allocation3]
                %s1018 = ssub.s32 %s877, %s1015
                %s1019 = scalar_lea.vmem %s876, %s1018
                %s1020 = sshrl.u32 %s877, 3
                %s1021 = sshrl.u32 %s1020, 5
                // While loop
                $region144: #{autoencoder_forward.9} parent=142 // loop_pre_header
                  _
                $region145: #{autoencoder_forward.9} parent=142 // loop_header
                  %s1023 = sphi 0, %s1025
                  %p1024 = scmp.ge.s32.totalorder %s1023, %s1021
                  %s1028 = sphi 0, %s1097
                  %s1029 = sphi %s865, %s1100
                  %s1030 = sphi %s876, %s1101
                $region146: #{autoencoder_forward.9} parent=142 // loop_header_branch
                  %1027 = sbr.rel (%p1024) target = $region150
                $region147: #{autoencoder_forward.9} parent=142 // loop_body
                  %v1031 = vld [vmem:[%s1029] sm:$0xff]
                  %1032 = vst [vmem:[%s1030] sm:$0xff] %v1031
                  %v1033 = vld [vmem:[%s1029 + $0x8] sm:$0xff]
                  %1034 = vst [vmem:[%s1030 + $0x8] sm:$0xff] %v1033
                  %v1035 = vld [vmem:[%s1029 + $0x10] sm:$0xff]
                  %1036 = vst [vmem:[%s1030 + $0x10] sm:$0xff] %v1035
                  %v1037 = vld [vmem:[%s1029 + $0x18] sm:$0xff]
                  %1038 = vst [vmem:[%s1030 + $0x18] sm:$0xff] %v1037
                  %v1039 = vld [vmem:[%s1029 + $0x20] sm:$0xff]
                  %1040 = vst [vmem:[%s1030 + $0x20] sm:$0xff] %v1039
                  %v1041 = vld [vmem:[%s1029 + $0x28] sm:$0xff]
                  %1042 = vst [vmem:[%s1030 + $0x28] sm:$0xff] %v1041
                  %v1043 = vld [vmem:[%s1029 + $0x30] sm:$0xff]
                  %1044 = vst [vmem:[%s1030 + $0x30] sm:$0xff] %v1043
                  %v1045 = vld [vmem:[%s1029 + $0x38] sm:$0xff]
                  %1046 = vst [vmem:[%s1030 + $0x38] sm:$0xff] %v1045
                  %v1047 = vld [vmem:[%s1029 + $0x40] sm:$0xff]
                  %1048 = vst [vmem:[%s1030 + $0x40] sm:$0xff] %v1047
                  %v1049 = vld [vmem:[%s1029 + $0x48] sm:$0xff]
                  %1050 = vst [vmem:[%s1030 + $0x48] sm:$0xff] %v1049
                  %v1051 = vld [vmem:[%s1029 + $0x50] sm:$0xff]
                  %1052 = vst [vmem:[%s1030 + $0x50] sm:$0xff] %v1051
                  %v1053 = vld [vmem:[%s1029 + $0x58] sm:$0xff]
                  %1054 = vst [vmem:[%s1030 + $0x58] sm:$0xff] %v1053
                  %v1055 = vld [vmem:[%s1029 + $0x60] sm:$0xff]
                  %1056 = vst [vmem:[%s1030 + $0x60] sm:$0xff] %v1055
                  %v1057 = vld [vmem:[%s1029 + $0x68] sm:$0xff]
                  %1058 = vst [vmem:[%s1030 + $0x68] sm:$0xff] %v1057
                  %v1059 = vld [vmem:[%s1029 + $0x70] sm:$0xff]
                  %1060 = vst [vmem:[%s1030 + $0x70] sm:$0xff] %v1059
                  %v1061 = vld [vmem:[%s1029 + $0x78] sm:$0xff]
                  %1062 = vst [vmem:[%s1030 + $0x78] sm:$0xff] %v1061
                  %v1063 = vld [vmem:[%s1029 + $0x80] sm:$0xff]
                  %1064 = vst [vmem:[%s1030 + $0x80] sm:$0xff] %v1063
                  %v1065 = vld [vmem:[%s1029 + $0x88] sm:$0xff]
                  %1066 = vst [vmem:[%s1030 + $0x88] sm:$0xff] %v1065
                  %v1067 = vld [vmem:[%s1029 + $0x90] sm:$0xff]
                  %1068 = vst [vmem:[%s1030 + $0x90] sm:$0xff] %v1067
                  %v1069 = vld [vmem:[%s1029 + $0x98] sm:$0xff]
                  %1070 = vst [vmem:[%s1030 + $0x98] sm:$0xff] %v1069
                  %v1071 = vld [vmem:[%s1029 + $0xa0] sm:$0xff]
                  %1072 = vst [vmem:[%s1030 + $0xa0] sm:$0xff] %v1071
                  %v1073 = vld [vmem:[%s1029 + $0xa8] sm:$0xff]
                  %1074 = vst [vmem:[%s1030 + $0xa8] sm:$0xff] %v1073
                  %v1075 = vld [vmem:[%s1029 + $0xb0] sm:$0xff]
                  %1076 = vst [vmem:[%s1030 + $0xb0] sm:$0xff] %v1075
                  %v1077 = vld [vmem:[%s1029 + $0xb8] sm:$0xff]
                  %1078 = vst [vmem:[%s1030 + $0xb8] sm:$0xff] %v1077
                  %v1079 = vld [vmem:[%s1029 + $0xc0] sm:$0xff]
                  %1080 = vst [vmem:[%s1030 + $0xc0] sm:$0xff] %v1079
                  %v1081 = vld [vmem:[%s1029 + $0xc8] sm:$0xff]
                  %1082 = vst [vmem:[%s1030 + $0xc8] sm:$0xff] %v1081
                  %v1083 = vld [vmem:[%s1029 + $0xd0] sm:$0xff]
                  %1084 = vst [vmem:[%s1030 + $0xd0] sm:$0xff] %v1083
                  %v1085 = vld [vmem:[%s1029 + $0xd8] sm:$0xff]
                  %1086 = vst [vmem:[%s1030 + $0xd8] sm:$0xff] %v1085
                  %v1087 = vld [vmem:[%s1029 + $0xe0] sm:$0xff]
                  %1088 = vst [vmem:[%s1030 + $0xe0] sm:$0xff] %v1087
                  %v1089 = vld [vmem:[%s1029 + $0xe8] sm:$0xff]
                  %1090 = vst [vmem:[%s1030 + $0xe8] sm:$0xff] %v1089
                  %v1091 = vld [vmem:[%s1029 + $0xf0] sm:$0xff]
                  %1092 = vst [vmem:[%s1030 + $0xf0] sm:$0xff] %v1091
                  %v1093 = vld [vmem:[%s1029 + $0xf8] sm:$0xff]
                  %1094 = vst [vmem:[%s1030 + $0xf8] sm:$0xff] %v1093
                  %s1095 = sadd.s32 1, %s1028
                  %p1096 = scmp.ge.s32.totalorder %s1095, %s1021
                  %s1097 = scalar_select %p1096, 0, %s1095
                  %s1098 = smul.u32 %s1097, 256
                  %s1099 = smul.u32 %s1097, 256
                  %s1100 = scalar_lea.vmem %s865, %s1098 [#allocation3]
                  %s1101 = scalar_lea.vmem %s876, %s1099
                $region148: #{autoencoder_forward.9} parent=142 // loop_footer
                  %s1025 = sadd.s32 %s1023, 1
                $region149: #{autoencoder_forward.9} parent=142 // loop_footer_branch
                  %1022 = sbr.rel target = $region145
                $region150: #{autoencoder_forward.9} parent=142 // loop_exit
                  _
                %s1102 = sshrl.u32 %s1020, 5
                %s1103 = sand.u32 %s1020, 31
                %s1104 = smul.u32 %s1102, 32
                %s1105 = smul.u32 8, %s1104
                %s1106 = scalar_lea.vmem %s865, %s1105 [#allocation3]
                %s1107 = smul.u32 8, %s1104
                %s1108 = scalar_lea.vmem %s876, %s1107
                // While loop
                $region151: #{autoencoder_forward.9} parent=142 // loop_pre_header
                  _
                $region152: #{autoencoder_forward.9} parent=142 // loop_header
                  %s1110 = sphi 0, %s1112
                  %p1111 = scmp.ge.s32.totalorder %s1110, %s1103
                  %s1115 = sphi 0, %s1122
                  %s1116 = sphi %s1106, %s1125
                  %s1117 = sphi %s1108, %s1126
                $region153: #{autoencoder_forward.9} parent=142 // loop_header_branch
                  %1114 = sbr.rel (%p1111) target = $region157
                $region154: #{autoencoder_forward.9} parent=142 // loop_body
                  %v1118 = vld [vmem:[%s1116] sm:$0xff]
                  %1119 = vst [vmem:[%s1117] sm:$0xff] %v1118
                  %s1120 = sadd.s32 1, %s1115
                  %p1121 = scmp.ge.s32.totalorder %s1120, %s1103
                  %s1122 = scalar_select %p1121, 0, %s1120
                  %s1123 = smul.u32 %s1122, 8
                  %s1124 = smul.u32 %s1122, 8
                  %s1125 = scalar_lea.vmem %s1106, %s1123 [#allocation3]
                  %s1126 = scalar_lea.vmem %s1108, %s1124
                $region155: #{autoencoder_forward.9} parent=142 // loop_footer
                  %s1112 = sadd.s32 %s1110, 1
                $region156: #{autoencoder_forward.9} parent=142 // loop_footer_branch
                  %1109 = sbr.rel target = $region152
                $region157: #{autoencoder_forward.9} parent=142 // loop_exit
                  _
                %s1127 = sshll.u32 1, %s1015
                %s1128 = ssub.s32 %s1127, 1
                loop: start=0, step=1, limit=1
                $region158: #{autoencoder_forward.9} parent=142 // loop_pre_header
                  _
                $region159: #{autoencoder_forward.9} parent=142 // loop_header
                  %s1130 = sphi 0, %s1134
                  %p1131 = scmp.ge.s32.totalorder %s1130, 1
                  %s1135 = sphi %s1017, %s1017
                  %s1136 = sphi %s1019, %s1019
                $region160: #{autoencoder_forward.9} parent=142 // loop_header_branch
                  %1133 = sbr.rel (%p1131) target = $region164
                $region161: #{autoencoder_forward.9} parent=142 // loop_body
                  %v1137 = vld [vmem:[%s1135] sm:%s1128]
                  %1138 = vst [vmem:[%s1136] sm:%s1128] %v1137
                $region162: #{autoencoder_forward.9} parent=142 // loop_footer
                  %s1134 = sadd.s32 1, %s1130
                $region163: #{autoencoder_forward.9} parent=142 // loop_footer_branch
                  %1129 = sbr.rel target = $region159
                $region164: #{autoencoder_forward.9} parent=142 // loop_exit
                  _
              $region143: #{autoencoder_forward.9} parent=109 // pred_fallthru
                _
            $region110: #{autoencoder_forward.9} parent=105 // pred_fallthru
              _
            // Predicated region
            $region111: #{autoencoder_forward.9} parent=105 // pred_check
              %p885 = pneg %p881
            $region112: #{autoencoder_forward.9} parent=105 // pred_check_branch
              %887 = sbr.rel (%p885) target = $region114
            $region113: #{autoencoder_forward.9} parent=105 // pred_region
              %s888 = sshll.u32 1, %s877
              %s889 = ssub.s32 %s888, 1
              loop: start=0, step=1, limit=1
              $region115: #{autoencoder_forward.9} parent=113 // loop_pre_header
                _
              $region116: #{autoencoder_forward.9} parent=113 // loop_header
                %s891 = sphi 0, %s895
                %p892 = scmp.ge.s32.totalorder %s891, 1
                %s896 = sphi %s865, %s865
                %s897 = sphi %s876, %s876
              $region117: #{autoencoder_forward.9} parent=113 // loop_header_branch
                %894 = sbr.rel (%p892) target = $region121
              $region118: #{autoencoder_forward.9} parent=113 // loop_body
                %v898 = vld [vmem:[%s896] sm:%s889]
                %899 = vst [vmem:[%s897] sm:%s889] %v898
              $region119: #{autoencoder_forward.9} parent=113 // loop_footer
                %s895 = sadd.s32 1, %s891
              $region120: #{autoencoder_forward.9} parent=113 // loop_footer_branch
                %890 = sbr.rel target = $region116
              $region121: #{autoencoder_forward.9} parent=113 // loop_exit
                _
            $region114: #{autoencoder_forward.9} parent=105 // pred_fallthru
              _
          $region106: #{autoencoder_forward.9} parent=101 // pred_fallthru
            _
          %1139 = vnop
        $region102: #{autoencoder_forward.9} parent=93 // pred_fallthru
          _
      $region94: #{autoencoder_forward.9} parent=5 // pred_fallthru
        _
      %p1140 = scmp.le.s32.totalorder 2, %s9
      // Predicated region
      $region165: #{autoencoder_forward.9} parent=5 // pred_check
        %p1141 = pneg %p1140
      $region166: #{autoencoder_forward.9} parent=5 // pred_check_branch
        %1143 = sbr.rel (%p1141) target = $region168
      $region167: #{autoencoder_forward.9} parent=5 // pred_region
        %s1144 = ssub.s32 %s9, 2
        // Predicated region
        $region169: #{autoencoder_forward.9} parent=167 // pred_check
          %p1145 = pneg %p106
        $region170: #{autoencoder_forward.9} parent=167 // pred_check_branch
          %1147 = sbr.rel (%p1145) target = $region172
        $region171: #{autoencoder_forward.9} parent=167 // pred_region
          %s1148 = sand.u32 %s91, 1
          %s1149 = sand.u32 %s91, 1
          %s1150 = smul.addr %s1149, 52
          %s1151 = scalar_lea.vmem [#allocation3], %s1150
        $region172: #{autoencoder_forward.9} parent=167 // pred_fallthru
          _
      $region168: #{autoencoder_forward.9} parent=5 // pred_fallthru
        _
    $region6: #{autoencoder_forward.9} parent=1 // loop_footer
      %s13 = sadd.s32 1, %s9
    $region7: #{autoencoder_forward.9} parent=1 // loop_footer_branch
      %8 = sbr.rel target = $region3
    $region8: #{autoencoder_forward.9} parent=1 // loop_exit
      _

// kernel: autoencoder_forward.8
$region0: #{autoencoder_forward.8}
  #allocation0 [shape = 'u32[]', space=smem, size = 0x4, offset = 0x4, fixed_abs, tag = 'smem constant byte address 0x4 - core index']
  #allocation1 [shape = 'u32[72,128]{1,0:T(1,128)}', space=vmem, size = 0x9000, scoped, tag = 'internal scratch']
  %s0 = inlined_call_operand.vmem [shape: bf16[8,1200], index: 0, kind: input, shape index: {}]
  %s1 = inlined_call_operand.vmem [shape: bf16[1200,882], index: 1, kind: input, shape index: {}]
  %s2 = inlined_call_operand.vmem [shape: f32[8,1], index: 2, kind: input, shape index: {}]
  %s3 = inlined_call_operand.vmem [shape: bf16[8,882], index: 3, kind: output, shape index: {}]
  %s4 = sld [smem:[#allocation0]]
  $region22: #{autoencoder_forward.8} parent=0
    _
  %s6 = ssub.s32 1, %s4
  %s7 = scalar_select 0, %s6, %s4
  // Predicated region
  $region2: #{autoencoder_forward.8} parent=0 // pred_check
    _
  $region3: #{autoencoder_forward.8} parent=0 // pred_check_branch
    %9 = sbr.rel (0) target = $region5
  $region4: #{autoencoder_forward.8} parent=0 // pred_region
    _
  $region5: #{autoencoder_forward.8} parent=0 // pred_fallthru
    _
  // Predicated region
  $region6: #{autoencoder_forward.8} parent=0 // pred_check
    _
  $region7: #{autoencoder_forward.8} parent=0 // pred_check_branch
    %11 = sbr.rel (0) target = $region9
  $region8: #{autoencoder_forward.8} parent=0 // pred_region
    _
  $region9: #{autoencoder_forward.8} parent=0 // pred_fallthru
    _
  // Predicated region
  $region10: #{autoencoder_forward.8} parent=0 // pred_check
    _
  $region11: #{autoencoder_forward.8} parent=0 // pred_check_branch
    %13 = sbr.rel (0) target = $region13
  $region12: #{autoencoder_forward.8} parent=0 // pred_region
    _
  $region13: #{autoencoder_forward.8} parent=0 // pred_fallthru
    _
  %v15 = vld [vmem:[%s0] sm:$0xff]
  %v16 = vld [vmem:[%s0 + $0x8] sm:$0xff]
  %v17 = vld [vmem:[%s0 + $0x10] sm:$0xff]
  %v18 = vld [vmem:[%s0 + $0x18] sm:$0xff]
  %v19 = vld [vmem:[%s0 + $0x20] sm:$0xff]
  %v20 = vld [vmem:[%s1] sm:$0xff]
  %v21 = vld [vmem:[%s1 + $0x8] sm:$0xff]
  %v22 = vld [vmem:[%s1 + $0x10] sm:$0xff]
  %v23 = vld [vmem:[%s1 + $0x18] sm:$0xf]
  %v24 = vld [vmem:[%s1 + $0x1c] sm:$0xff]
  %v25 = vld [vmem:[%s1 + $0x24] sm:$0xff]
  %v26 = vld [vmem:[%s1 + $0x2c] sm:$0xff]
  %v27 = vld [vmem:[%s1 + $0x34] sm:$0xf]
  %v28 = vld [vmem:[%s1 + $0x38] sm:$0xff]
  %v29 = vld [vmem:[%s1 + $0x40] sm:$0xff]
  %v30 = vld [vmem:[%s1 + $0x48] sm:$0xff]
  %v31 = vld [vmem:[%s1 + $0x50] sm:$0xf]
  %v32 = vld [vmem:[%s1 + $0x54] sm:$0xff]
  %v33 = vld [vmem:[%s1 + $0x5c] sm:$0xff]
  %v34 = vld [vmem:[%s1 + $0x64] sm:$0xff]
  %v35 = vld [vmem:[%s1 + $0x6c] sm:$0xf]
  %v36 = vld [vmem:[%s1 + $0x70] sm:$0xff]
  %v37 = vld [vmem:[%s1 + $0x78] sm:$0xff]
  %v38 = vld [vmem:[%s1 + $0x80] sm:$0xff]
  %v39 = vld [vmem:[%s1 + $0x88] sm:$0xf]
  %v40 = vld [vmem:[%s1 + $0x8c] sm:$0xff]
  %v41 = vld [vmem:[%s1 + $0x94] sm:$0xff]
  %v42 = vld [vmem:[%s1 + $0x9c] sm:$0xff]
  %v43 = vld [vmem:[%s1 + $0xa4] sm:$0xf]
  %v44 = vld [vmem:[%s1 + $0xa8] sm:$0xff]
  %v45 = vld [vmem:[%s1 + $0xb0] sm:$0xff]
  %v46 = vld [vmem:[%s1 + $0xb8] sm:$0xff]
  %v47 = vld [vmem:[%s1 + $0xc0] sm:$0xf]
  %v48 = vld [vmem:[%s1 + $0xc4] sm:$0xff]
  %v49 = vld [vmem:[%s1 + $0xcc] sm:$0xff]
  %v50 = vld [vmem:[%s1 + $0xd4] sm:$0xff]
  %v51 = vld [vmem:[%s1 + $0xdc] sm:$0xf]
  %v52 = vld [vmem:[%s1 + $0xe0] sm:$0xff]
  %v53 = vld [vmem:[%s1 + $0xe8] sm:$0xff]
  %v54 = vld [vmem:[%s1 + $0xf0] sm:$0xff]
  %v55 = vld [vmem:[%s1 + $0xf8] sm:$0xf]
  %v56 = vld [vmem:[%s1 + $0xfc] sm:$0xff]
  %v57 = vld [vmem:[%s1 + $0x104] sm:$0xff]
  %v58 = vld [vmem:[%s1 + $0x10c] sm:$0xff]
  %v59 = vld [vmem:[%s1 + $0x114] sm:$0xf]
  %v60 = vld [vmem:[%s1 + $0x118] sm:$0xff]
  %v61 = vld [vmem:[%s1 + $0x120] sm:$0xff]
  %v62 = vld [vmem:[%s1 + $0x128] sm:$0xff]
  %v63 = vld [vmem:[%s1 + $0x130] sm:$0xf]
  %v64 = vld [vmem:[%s1 + $0x134] sm:$0xff]
  %v65 = vld [vmem:[%s1 + $0x13c] sm:$0xff]
  %v66 = vld [vmem:[%s1 + $0x144] sm:$0xff]
  %v67 = vld [vmem:[%s1 + $0x14c] sm:$0xf]
  %v68 = vld [vmem:[%s1 + $0x150] sm:$0xff]
  %v69 = vld [vmem:[%s1 + $0x158] sm:$0xff]
  %v70 = vld [vmem:[%s1 + $0x160] sm:$0xff]
  %v71 = vld [vmem:[%s1 + $0x168] sm:$0xf]
  %v72 = vld [vmem:[%s1 + $0x16c] sm:$0xff]
  %v73 = vld [vmem:[%s1 + $0x174] sm:$0xff]
  %v74 = vld [vmem:[%s1 + $0x17c] sm:$0xff]
  %v75 = vld [vmem:[%s1 + $0x184] sm:$0xf]
  %v76 = vld [vmem:[%s1 + $0x188] sm:$0xff]
  %v77 = vld [vmem:[%s1 + $0x190] sm:$0xff]
  %v78 = vld [vmem:[%s1 + $0x198] sm:$0xff]
  %v79 = vld [vmem:[%s1 + $0x1a0] sm:$0xf]
  %v80 = vld [vmem:[%s1 + $0x1a4] sm:$0xff]
  %v81 = vld [vmem:[%s1 + $0x1ac] sm:$0xff]
  %v82 = vld [vmem:[%s1 + $0x1b4] sm:$0xff]
  %v83 = vld [vmem:[%s1 + $0x1bc] sm:$0xf]
  %v84 = vld [vmem:[%s1 + $0x1c0] sm:$0xff]
  %v85 = vld [vmem:[%s1 + $0x1c8] sm:$0xff]
  %v86 = vld [vmem:[%s1 + $0x1d0] sm:$0xff]
  %v87 = vld [vmem:[%s1 + $0x1d8] sm:$0xf]
  %v88 = vld [vmem:[%s1 + $0x1dc] sm:$0xff]
  %v89 = vld [vmem:[%s1 + $0x1e4] sm:$0xff]
  %v90 = vld [vmem:[%s1 + $0x1ec] sm:$0xff]
  %v91 = vld [vmem:[%s1 + $0x1f4] sm:$0xf]
  %v92 = vld [vmem:[%s1 + $0x1f8] sm:$0xff]
  %v93 = vld [vmem:[%s1 + $0x200] sm:$0xff]
  %v94 = vld [vmem:[%s1 + $0x208] sm:$0xff]
  %v95 = vld [vmem:[%s1 + $0x210] sm:$0xf]
  %v96 = vld [vmem:[%s1 + $0x214] sm:$0xff]
  %v97 = vld [vmem:[%s1 + $0x21c] sm:$0xff]
  %v98 = vld [vmem:[%s1 + $0x224] sm:$0xff]
  %v99 = vld [vmem:[%s1 + $0x22c] sm:$0xf]
  %v100 = vld [vmem:[%s1 + $0x230] sm:$0xff]
  %v101 = vld [vmem:[%s1 + $0x238] sm:$0xff]
  %v102 = vld [vmem:[%s1 + $0x240] sm:$0xff]
  %v103 = vld [vmem:[%s1 + $0x248] sm:$0xf]
  %v104 = vld [vmem:[%s1 + $0x24c] sm:$0xff]
  %v105 = vld [vmem:[%s1 + $0x254] sm:$0xff]
  %v106 = vld [vmem:[%s1 + $0x25c] sm:$0xff]
  %v107 = vld [vmem:[%s1 + $0x264] sm:$0xf]
  %v108 = vld [vmem:[%s1 + $0x268] sm:$0xff]
  %v109 = vld [vmem:[%s1 + $0x270] sm:$0xff]
  %v110 = vld [vmem:[%s1 + $0x278] sm:$0xff]
  %v111 = vld [vmem:[%s1 + $0x280] sm:$0xf]
  %v112 = vld [vmem:[%s1 + $0x284] sm:$0xff]
  %v113 = vld [vmem:[%s1 + $0x28c] sm:$0xff]
  %v114 = vld [vmem:[%s1 + $0x294] sm:$0xff]
  %v115 = vld [vmem:[%s1 + $0x29c] sm:$0xf]
  %v116 = vld [vmem:[%s1 + $0x2a0] sm:$0xff]
  %v117 = vld [vmem:[%s1 + $0x2a8] sm:$0xff]
  %v118 = vld [vmem:[%s1 + $0x2b0] sm:$0xff]
  %v119 = vld [vmem:[%s1 + $0x2b8] sm:$0xf]
  %v120 = vld [vmem:[%s1 + $0x2bc] sm:$0xff]
  %v121 = vld [vmem:[%s1 + $0x2c4] sm:$0xff]
  %v122 = vld [vmem:[%s1 + $0x2cc] sm:$0xff]
  %v123 = vld [vmem:[%s1 + $0x2d4] sm:$0xf]
  %v124 = vld [vmem:[%s1 + $0x2d8] sm:$0xff]
  %v125 = vld [vmem:[%s1 + $0x2e0] sm:$0xff]
  %v126 = vld [vmem:[%s1 + $0x2e8] sm:$0xff]
  %v127 = vld [vmem:[%s1 + $0x2f0] sm:$0xf]
  %v128 = vld [vmem:[%s1 + $0x2f4] sm:$0xff]
  %v129 = vld [vmem:[%s1 + $0x2fc] sm:$0xff]
  %v130 = vld [vmem:[%s1 + $0x304] sm:$0xff]
  %v131 = vld [vmem:[%s1 + $0x30c] sm:$0xf]
  %v132 = vld [vmem:[%s1 + $0x310] sm:$0xff]
  %v133 = vld [vmem:[%s1 + $0x318] sm:$0xff]
  %v134 = vld [vmem:[%s1 + $0x320] sm:$0xff]
  %v135 = vld [vmem:[%s1 + $0x328] sm:$0xf]
  %v136 = vld [vmem:[%s1 + $0x32c] sm:$0xff]
  %v137 = vld [vmem:[%s1 + $0x334] sm:$0xff]
  %v138 = vld [vmem:[%s1 + $0x33c] sm:$0xff]
  %v139 = vld [vmem:[%s1 + $0x344] sm:$0xf]
  %v140 = vld [vmem:[%s1 + $0x348] sm:$0xff]
  %v141 = vld [vmem:[%s1 + $0x350] sm:$0xff]
  %v142 = vld [vmem:[%s1 + $0x358] sm:$0xff]
  %v143 = vld [vmem:[%s1 + $0x360] sm:$0xf]
  %v144 = vld [vmem:[%s1 + $0x364] sm:$0xff]
  %v145 = vld [vmem:[%s1 + $0x36c] sm:$0xff]
  %v146 = vld [vmem:[%s1 + $0x374] sm:$0xff]
  %v147 = vld [vmem:[%s1 + $0x37c] sm:$0xf]
  %v148 = vld [vmem:[%s1 + $0x380] sm:$0xff]
  %v149 = vld [vmem:[%s1 + $0x388] sm:$0xff]
  %v150 = vld [vmem:[%s1 + $0x390] sm:$0xff]
  %v151 = vld [vmem:[%s1 + $0x398] sm:$0xf]
  %v152 = vld [vmem:[%s1 + $0x39c] sm:$0xff]
  %v153 = vld [vmem:[%s1 + $0x3a4] sm:$0xff]
  %v154 = vld [vmem:[%s1 + $0x3ac] sm:$0xff]
  %v155 = vld [vmem:[%s1 + $0x3b4] sm:$0xf]
  %v156 = vld [vmem:[%s1 + $0x3b8] sm:$0xff]
  %v157 = vld [vmem:[%s1 + $0x3c0] sm:$0xff]
  %v158 = vld [vmem:[%s1 + $0x3c8] sm:$0xff]
  %v159 = vld [vmem:[%s1 + $0x3d0] sm:$0xf]
  %v160 = vld [vmem:[%s1 + $0x3d4] sm:$0xff]
  %v161 = vld [vmem:[%s1 + $0x3dc] sm:$0xff]
  %v162 = vld [vmem:[%s1 + $0x3e4] sm:$0xff]
  %v163 = vld [vmem:[%s1 + $0x3ec] sm:$0xf]
  %v164 = vld [vmem:[%s1 + $0x3f0] sm:$0xff]
  %v165 = vld [vmem:[%s1 + $0x3f8] sm:$0xff]
  %v166 = vld [vmem:[%s1 + $0x400] sm:$0xff]
  %v167 = vld [vmem:[%s1 + $0x408] sm:$0xf]
  %v168 = vld [vmem:[%s1 + $0x40c] sm:$0xff]
  %v169 = vld [vmem:[%s1 + $0x414] sm:$0xff]
  %v170 = vld [vmem:[%s1 + $0x41c] sm:$0xff]
  %v171 = vld [vmem:[%s1 + $0x424] sm:$0xf]
  %v172 = vld [vmem:[%s1 + $0x428] sm:$0xff]
  %v173 = vld [vmem:[%s1 + $0x430] sm:$0xff]
  %v174 = vld [vmem:[%s1 + $0x438] sm:$0xff]
  %v175 = vld [vmem:[%s1 + $0x440] sm:$0xf]
  %v176 = vld [vmem:[%s1 + $0x444] sm:$0xff]
  %v177 = vld [vmem:[%s1 + $0x44c] sm:$0xff]
  %v178 = vld [vmem:[%s1 + $0x454] sm:$0xff]
  %v179 = vld [vmem:[%s1 + $0x45c] sm:$0xf]
  %v180 = vld [vmem:[%s1 + $0x460] sm:$0xff]
  %v181 = vld [vmem:[%s1 + $0x468] sm:$0xff]
  %v182 = vld [vmem:[%s1 + $0x470] sm:$0xff]
  %v183 = vld [vmem:[%s1 + $0x478] sm:$0xf]
  %v184 = vld [vmem:[%s1 + $0x47c] sm:$0xff]
  %v185 = vld [vmem:[%s1 + $0x484] sm:$0xff]
  %v186 = vld [vmem:[%s1 + $0x48c] sm:$0xff]
  %v187 = vld [vmem:[%s1 + $0x494] sm:$0xf]
  %v188 = vld [vmem:[%s1 + $0x498] sm:$0xff]
  %v189 = vld [vmem:[%s1 + $0x4a0] sm:$0xff]
  %v190 = vld [vmem:[%s1 + $0x4a8] sm:$0xff]
  %v191 = vld [vmem:[%s1 + $0x4b0] sm:$0xf]
  %v192 = vld [vmem:[%s1 + $0x4b4] sm:$0xff]
  %v193 = vld [vmem:[%s1 + $0x4bc] sm:$0xff]
  %v194 = vld [vmem:[%s1 + $0x4c4] sm:$0xff]
  %v195 = vld [vmem:[%s1 + $0x4cc] sm:$0xf]
  %v196 = vld [vmem:[%s1 + $0x4d0] sm:$0xff]
  %v197 = vld [vmem:[%s1 + $0x4d8] sm:$0xff]
  %v198 = vld [vmem:[%s1 + $0x4e0] sm:$0xff]
  %v199 = vld [vmem:[%s1 + $0x4e8] sm:$0xf]
  %v200 = vld [vmem:[%s1 + $0x4ec] sm:$0xff]
  %v201 = vld [vmem:[%s1 + $0x4f4] sm:$0xff]
  %v202 = vld [vmem:[%s1 + $0x4fc] sm:$0xff]
  %v203 = vld [vmem:[%s1 + $0x504] sm:$0xf]
  %v204 = vld [vmem:[%s1 + $0x508] sm:$0xff]
  %v205 = vld [vmem:[%s1 + $0x510] sm:$0xff]
  %v206 = vld [vmem:[%s1 + $0x518] sm:$0xff]
  %v207 = vld [vmem:[%s1 + $0x520] sm:$0xf]
  %v208 = vld [vmem:[%s1 + $0x524] sm:$0xff]
  %v209 = vld [vmem:[%s1 + $0x52c] sm:$0xff]
  %v210 = vld [vmem:[%s1 + $0x534] sm:$0xff]
  %v211 = vld [vmem:[%s1 + $0x53c] sm:$0xf]
  %v212 = vld [vmem:[%s1 + $0x540] sm:$0xff]
  %v213 = vld [vmem:[%s1 + $0x548] sm:$0xff]
  %v214 = vld [vmem:[%s1 + $0x550] sm:$0xff]
  %v215 = vld [vmem:[%s1 + $0x558] sm:$0xf]
  %v216 = vld [vmem:[%s1 + $0x55c] sm:$0xff]
  %v217 = vld [vmem:[%s1 + $0x564] sm:$0xff]
  %v218 = vld [vmem:[%s1 + $0x56c] sm:$0xff]
  %v219 = vld [vmem:[%s1 + $0x574] sm:$0xf]
  %v220 = vld [vmem:[%s1 + $0x578] sm:$0xff]
  %v221 = vld [vmem:[%s1 + $0x580] sm:$0xff]
  %v222 = vld [vmem:[%s1 + $0x588] sm:$0xff]
  %v223 = vld [vmem:[%s1 + $0x590] sm:$0xf]
  %v224 = vld [vmem:[%s1 + $0x594] sm:$0xff]
  %v225 = vld [vmem:[%s1 + $0x59c] sm:$0xff]
  %v226 = vld [vmem:[%s1 + $0x5a4] sm:$0xff]
  %v227 = vld [vmem:[%s1 + $0x5ac] sm:$0xf]
  %v228 = vld [vmem:[%s1 + $0x5b0] sm:$0xff]
  %v229 = vld [vmem:[%s1 + $0x5b8] sm:$0xff]
  %v230 = vld [vmem:[%s1 + $0x5c0] sm:$0xff]
  %v231 = vld [vmem:[%s1 + $0x5c8] sm:$0xf]
  %v232 = vld [vmem:[%s1 + $0x5cc] sm:$0xff]
  %v233 = vld [vmem:[%s1 + $0x5d4] sm:$0xff]
  %v234 = vld [vmem:[%s1 + $0x5dc] sm:$0xff]
  %v235 = vld [vmem:[%s1 + $0x5e4] sm:$0xf]
  %v236 = vld [vmem:[%s1 + $0x5e8] sm:$0xff]
  %v237 = vld [vmem:[%s1 + $0x5f0] sm:$0xff]
  %v238 = vld [vmem:[%s1 + $0x5f8] sm:$0xff]
  %v239 = vld [vmem:[%s1 + $0x600] sm:$0xf]
  %v240 = vld [vmem:[%s1 + $0x604] sm:$0xff]
  %v241 = vld [vmem:[%s1 + $0x60c] sm:$0xff]
  %v242 = vld [vmem:[%s1 + $0x614] sm:$0xff]
  %v243 = vld [vmem:[%s1 + $0x61c] sm:$0xf]
  %v244 = vld [vmem:[%s1 + $0x620] sm:$0xff]
  %v245 = vld [vmem:[%s1 + $0x628] sm:$0xff]
  %v246 = vld [vmem:[%s1 + $0x630] sm:$0xff]
  %v247 = vld [vmem:[%s1 + $0x638] sm:$0xf]
  %v248 = vld [vmem:[%s1 + $0x63c] sm:$0xff]
  %v249 = vld [vmem:[%s1 + $0x644] sm:$0xff]
  %v250 = vld [vmem:[%s1 + $0x64c] sm:$0xff]
  %v251 = vld [vmem:[%s1 + $0x654] sm:$0xf]
  %v252 = vld [vmem:[%s1 + $0x658] sm:$0xff]
  %v253 = vld [vmem:[%s1 + $0x660] sm:$0xff]
  %v254 = vld [vmem:[%s1 + $0x668] sm:$0xff]
  %v255 = vld [vmem:[%s1 + $0x670] sm:$0xf]
  %v256 = vld [vmem:[%s1 + $0x674] sm:$0xff]
  %v257 = vld [vmem:[%s1 + $0x67c] sm:$0xff]
  %v258 = vld [vmem:[%s1 + $0x684] sm:$0xff]
  %v259 = vld [vmem:[%s1 + $0x68c] sm:$0xf]
  %v260 = vld [vmem:[%s1 + $0x690] sm:$0xff]
  %v261 = vld [vmem:[%s1 + $0x698] sm:$0xff]
  %v262 = vld [vmem:[%s1 + $0x6a0] sm:$0xff]
  %v263 = vld [vmem:[%s1 + $0x6a8] sm:$0xf]
  %v264 = vld [vmem:[%s1 + $0x6ac] sm:$0xff]
  %v265 = vld [vmem:[%s1 + $0x6b4] sm:$0xff]
  %v266 = vld [vmem:[%s1 + $0x6bc] sm:$0xff]
  %v267 = vld [vmem:[%s1 + $0x6c4] sm:$0xf]
  %v268 = vld [vmem:[%s1 + $0x6c8] sm:$0xff]
  %v269 = vld [vmem:[%s1 + $0x6d0] sm:$0xff]
  %v270 = vld [vmem:[%s1 + $0x6d8] sm:$0xff]
  %v271 = vld [vmem:[%s1 + $0x6e0] sm:$0xf]
  %v272 = vld [vmem:[%s1 + $0x6e4] sm:$0xff]
  %v273 = vld [vmem:[%s1 + $0x6ec] sm:$0xff]
  %v274 = vld [vmem:[%s1 + $0x6f4] sm:$0xff]
  %v275 = vld [vmem:[%s1 + $0x6fc] sm:$0xf]
  %v276 = vld [vmem:[%s1 + $0x700] sm:$0xff]
  %v277 = vld [vmem:[%s1 + $0x708] sm:$0xff]
  %v278 = vld [vmem:[%s1 + $0x710] sm:$0xff]
  %v279 = vld [vmem:[%s1 + $0x718] sm:$0xf]
  %v280 = vld [vmem:[%s1 + $0x71c] sm:$0xff]
  %v281 = vld [vmem:[%s1 + $0x724] sm:$0xff]
  %v282 = vld [vmem:[%s1 + $0x72c] sm:$0xff]
  %v283 = vld [vmem:[%s1 + $0x734] sm:$0xf]
  %v284 = vld [vmem:[%s1 + $0x738] sm:$0xff]
  %v285 = vld [vmem:[%s1 + $0x740] sm:$0xff]
  %v286 = vld [vmem:[%s1 + $0x748] sm:$0xff]
  %v287 = vld [vmem:[%s1 + $0x750] sm:$0xf]
  %v288 = vld [vmem:[%s1 + $0x754] sm:$0xff]
  %v289 = vld [vmem:[%s1 + $0x75c] sm:$0xff]
  %v290 = vld [vmem:[%s1 + $0x764] sm:$0xff]
  %v291 = vld [vmem:[%s1 + $0x76c] sm:$0xf]
  %v292 = vld [vmem:[%s1 + $0x770] sm:$0xff]
  %v293 = vld [vmem:[%s1 + $0x778] sm:$0xff]
  %v294 = vld [vmem:[%s1 + $0x780] sm:$0xff]
  %v295 = vld [vmem:[%s1 + $0x788] sm:$0xf]
  %v296 = vld [vmem:[%s1 + $0x78c] sm:$0xff]
  %v297 = vld [vmem:[%s1 + $0x794] sm:$0xff]
  %v298 = vld [vmem:[%s1 + $0x79c] sm:$0xff]
  %v299 = vld [vmem:[%s1 + $0x7a4] sm:$0xf]
  %v300 = vld [vmem:[%s1 + $0x7a8] sm:$0xff]
  %v301 = vld [vmem:[%s1 + $0x7b0] sm:$0xff]
  %v302 = vld [vmem:[%s1 + $0x7b8] sm:$0xff]
  %v303 = vld [vmem:[%s1 + $0x7c0] sm:$0xf]
  %v304 = vld [vmem:[%s1 + $0x7c4] sm:$0xff]
  %v305 = vld [vmem:[%s1 + $0x7cc] sm:$0xff]
  %v306 = vld [vmem:[%s1 + $0x7d4] sm:$0xff]
  %v307 = vld [vmem:[%s1 + $0x7dc] sm:$0xf]
  %v308 = vld [vmem:[%s1 + $0x7e0] sm:$0xff]
  %v309 = vld [vmem:[%s1 + $0x7e8] sm:$0xff]
  %v310 = vld [vmem:[%s1 + $0x7f0] sm:$0xff]
  %v311 = vld [vmem:[%s1 + $0x7f8] sm:$0xf]
  %v312 = vld [vmem:[%s1 + $0x7fc] sm:$0xff]
  %v313 = vld [vmem:[%s1 + $0x804] sm:$0xff]
  %v314 = vld [vmem:[%s1 + $0x80c] sm:$0xff]
  %v315 = vld [vmem:[%s1 + $0x814] sm:$0xf]
  %v316 = vld [vmem:[%s1 + $0x818] sm:$0xff]
  %v317 = vld [vmem:[%s1 + $0x820] sm:$0xff]
  %v318 = vld [vmem:[%s1 + $0x828] sm:$0xff]
  %v319 = vld [vmem:[%s1 + $0x830] sm:$0xf]
  %v320 = vld [vmem:[%s1 + $0x834] sm:$0xff]
  %v321 = vld [vmem:[%s1 + $0x83c] sm:$0xff]
  %v322 = vld [vmem:[%s1 + $0x844] sm:$0xff]
  %v323 = vld [vmem:[%s1 + $0x84c] sm:$0xf]
  %v324 = vld [vmem:[%s1 + $0x850] sm:$0xff]
  %v325 = vld [vmem:[%s1 + $0x858] sm:$0xff]
  %v326 = vld [vmem:[%s1 + $0x860] sm:$0xff]
  %v327 = vld [vmem:[%s1 + $0x868] sm:$0xf]
  %v328 = vld [vmem:[%s1 + $0x86c] sm:$0xff]
  %v329 = vld [vmem:[%s1 + $0x874] sm:$0xff]
  %v330 = vld [vmem:[%s1 + $0x87c] sm:$0xff]
  %v331 = vld [vmem:[%s1 + $0x884] sm:$0xf]
  %v332 = vld [vmem:[%s1 + $0x888] sm:$0xff]
  %v333 = vld [vmem:[%s1 + $0x890] sm:$0xff]
  %v334 = vld [vmem:[%s1 + $0x898] sm:$0xff]
  %v335 = vld [vmem:[%s1 + $0x8a0] sm:$0xf]
  %v336 = vld [vmem:[%s1 + $0x8a4] sm:$0xff]
  %v337 = vld [vmem:[%s1 + $0x8ac] sm:$0xff]
  %v338 = vld [vmem:[%s1 + $0x8b4] sm:$0xff]
  %v339 = vld [vmem:[%s1 + $0x8bc] sm:$0xf]
  %v340 = vld [vmem:[%s1 + $0x8c0] sm:$0xff]
  %v341 = vld [vmem:[%s1 + $0x8c8] sm:$0xff]
  %v342 = vld [vmem:[%s1 + $0x8d0] sm:$0xff]
  %v343 = vld [vmem:[%s1 + $0x8d8] sm:$0xf]
  %v344 = vld [vmem:[%s1 + $0x8dc] sm:$0xff]
  %v345 = vld [vmem:[%s1 + $0x8e4] sm:$0xff]
  %v346 = vld [vmem:[%s1 + $0x8ec] sm:$0xff]
  %v347 = vld [vmem:[%s1 + $0x8f4] sm:$0xf]
  %v348 = vld [vmem:[%s1 + $0x8f8] sm:$0xff]
  %v349 = vld [vmem:[%s1 + $0x900] sm:$0xff]
  %v350 = vld [vmem:[%s1 + $0x908] sm:$0xff]
  %v351 = vld [vmem:[%s1 + $0x910] sm:$0xf]
  %v352 = vld [vmem:[%s1 + $0x914] sm:$0xff]
  %v353 = vld [vmem:[%s1 + $0x91c] sm:$0xff]
  %v354 = vld [vmem:[%s1 + $0x924] sm:$0xff]
  %v355 = vld [vmem:[%s1 + $0x92c] sm:$0xf]
  %v356 = vld [vmem:[%s1 + $0x930] sm:$0xff]
  %v357 = vld [vmem:[%s1 + $0x938] sm:$0xff]
  %v358 = vld [vmem:[%s1 + $0x940] sm:$0xff]
  %v359 = vld [vmem:[%s1 + $0x948] sm:$0xf]
  %v360 = vld [vmem:[%s1 + $0x94c] sm:$0xff]
  %v361 = vld [vmem:[%s1 + $0x954] sm:$0xff]
  %v362 = vld [vmem:[%s1 + $0x95c] sm:$0xff]
  %v363 = vld [vmem:[%s1 + $0x964] sm:$0xf]
  %v364 = vld [vmem:[%s1 + $0x968] sm:$0xff]
  %v365 = vld [vmem:[%s1 + $0x970] sm:$0xff]
  %v366 = vld [vmem:[%s1 + $0x978] sm:$0xff]
  %v367 = vld [vmem:[%s1 + $0x980] sm:$0xf]
  %v368 = vld [vmem:[%s1 + $0x984] sm:$0xff]
  %v369 = vld [vmem:[%s1 + $0x98c] sm:$0xff]
  %v370 = vld [vmem:[%s1 + $0x994] sm:$0xff]
  %v371 = vld [vmem:[%s1 + $0x99c] sm:$0xf]
  %v372 = vld [vmem:[%s1 + $0x9a0] sm:$0xff]
  %v373 = vld [vmem:[%s1 + $0x9a8] sm:$0xff]
  %v374 = vld [vmem:[%s1 + $0x9b0] sm:$0xff]
  %v375 = vld [vmem:[%s1 + $0x9b8] sm:$0xf]
  %v376 = vld [vmem:[%s1 + $0x9bc] sm:$0xff]
  %v377 = vld [vmem:[%s1 + $0x9c4] sm:$0xff]
  %v378 = vld [vmem:[%s1 + $0x9cc] sm:$0xff]
  %v379 = vld [vmem:[%s1 + $0x9d4] sm:$0xf]
  %v380 = vld [vmem:[%s1 + $0x9d8] sm:$0xff]
  %v381 = vld [vmem:[%s1 + $0x9e0] sm:$0xff]
  %v382 = vld [vmem:[%s1 + $0x9e8] sm:$0xff]
  %v383 = vld [vmem:[%s1 + $0x9f0] sm:$0xf]
  %v384 = vld [vmem:[%s1 + $0x9f4] sm:$0xff]
  %v385 = vld [vmem:[%s1 + $0x9fc] sm:$0xff]
  %v386 = vld [vmem:[%s1 + $0xa04] sm:$0xff]
  %v387 = vld [vmem:[%s1 + $0xa0c] sm:$0xf]
  %v388 = vld [vmem:[%s1 + $0xa10] sm:$0xff]
  %v389 = vld [vmem:[%s1 + $0xa18] sm:$0xff]
  %v390 = vld [vmem:[%s1 + $0xa20] sm:$0xff]
  %v391 = vld [vmem:[%s1 + $0xa28] sm:$0xf]
  %v392 = vld [vmem:[%s1 + $0xa2c] sm:$0xff]
  %v393 = vld [vmem:[%s1 + $0xa34] sm:$0xff]
  %v394 = vld [vmem:[%s1 + $0xa3c] sm:$0xff]
  %v395 = vld [vmem:[%s1 + $0xa44] sm:$0xf]
  %v396 = vld [vmem:[%s1 + $0xa48] sm:$0xff]
  %v397 = vld [vmem:[%s1 + $0xa50] sm:$0xff]
  %v398 = vld [vmem:[%s1 + $0xa58] sm:$0xff]
  %v399 = vld [vmem:[%s1 + $0xa60] sm:$0xf]
  %v400 = vld [vmem:[%s1 + $0xa64] sm:$0xff]
  %v401 = vld [vmem:[%s1 + $0xa6c] sm:$0xff]
  %v402 = vld [vmem:[%s1 + $0xa74] sm:$0xff]
  %v403 = vld [vmem:[%s1 + $0xa7c] sm:$0xf]
  %v404 = vld [vmem:[%s1 + $0xa80] sm:$0xff]
  %v405 = vld [vmem:[%s1 + $0xa88] sm:$0xff]
  %v406 = vld [vmem:[%s1 + $0xa90] sm:$0xff]
  %v407 = vld [vmem:[%s1 + $0xa98] sm:$0xf]
  %v408 = vld [vmem:[%s1 + $0xa9c] sm:$0xff]
  %v409 = vld [vmem:[%s1 + $0xaa4] sm:$0xff]
  %v410 = vld [vmem:[%s1 + $0xaac] sm:$0xff]
  %v411 = vld [vmem:[%s1 + $0xab4] sm:$0xf]
  %v412 = vld [vmem:[%s1 + $0xab8] sm:$0xff]
  %v413 = vld [vmem:[%s1 + $0xac0] sm:$0xff]
  %v414 = vld [vmem:[%s1 + $0xac8] sm:$0xff]
  %v415 = vld [vmem:[%s1 + $0xad0] sm:$0xf]
  %v416 = vld [vmem:[%s1 + $0xad4] sm:$0xff]
  %v417 = vld [vmem:[%s1 + $0xadc] sm:$0xff]
  %v418 = vld [vmem:[%s1 + $0xae4] sm:$0xff]
  %v419 = vld [vmem:[%s1 + $0xaec] sm:$0xf]
  %v420 = vld [vmem:[%s1 + $0xaf0] sm:$0xff]
  %v421 = vld [vmem:[%s1 + $0xaf8] sm:$0xff]
  %v422 = vld [vmem:[%s1 + $0xb00] sm:$0xff]
  %v423 = vld [vmem:[%s1 + $0xb08] sm:$0xf]
  %v424 = vld [vmem:[%s1 + $0xb0c] sm:$0xff]
  %v425 = vld [vmem:[%s1 + $0xb14] sm:$0xff]
  %v426 = vld [vmem:[%s1 + $0xb1c] sm:$0xff]
  %v427 = vld [vmem:[%s1 + $0xb24] sm:$0xf]
  %v428 = vld [vmem:[%s1 + $0xb28] sm:$0xff]
  %v429 = vld [vmem:[%s1 + $0xb30] sm:$0xff]
  %v430 = vld [vmem:[%s1 + $0xb38] sm:$0xff]
  %v431 = vld [vmem:[%s1 + $0xb40] sm:$0xf]
  %v432 = vld [vmem:[%s1 + $0xb44] sm:$0xff]
  %v433 = vld [vmem:[%s1 + $0xb4c] sm:$0xff]
  %v434 = vld [vmem:[%s1 + $0xb54] sm:$0xff]
  %v435 = vld [vmem:[%s1 + $0xb5c] sm:$0xf]
  %v436 = vld [vmem:[%s1 + $0xb60] sm:$0xff]
  %v437 = vld [vmem:[%s1 + $0xb68] sm:$0xff]
  %v438 = vld [vmem:[%s1 + $0xb70] sm:$0xff]
  %v439 = vld [vmem:[%s1 + $0xb78] sm:$0xf]
  %v440 = vld [vmem:[%s1 + $0xb7c] sm:$0xff]
  %v441 = vld [vmem:[%s1 + $0xb84] sm:$0xff]
  %v442 = vld [vmem:[%s1 + $0xb8c] sm:$0xff]
  %v443 = vld [vmem:[%s1 + $0xb94] sm:$0xf]
  %v444 = vld [vmem:[%s1 + $0xb98] sm:$0xff]
  %v445 = vld [vmem:[%s1 + $0xba0] sm:$0xff]
  %v446 = vld [vmem:[%s1 + $0xba8] sm:$0xff]
  %v447 = vld [vmem:[%s1 + $0xbb0] sm:$0xf]
  %v448 = vld [vmem:[%s1 + $0xbb4] sm:$0xff]
  %v449 = vld [vmem:[%s1 + $0xbbc] sm:$0xff]
  %v450 = vld [vmem:[%s1 + $0xbc4] sm:$0xff]
  %v451 = vld [vmem:[%s1 + $0xbcc] sm:$0xf]
  %v452 = vld [vmem:[%s1 + $0xbd0] sm:$0xff]
  %v453 = vld [vmem:[%s1 + $0xbd8] sm:$0xff]
  %v454 = vld [vmem:[%s1 + $0xbe0] sm:$0xff]
  %v455 = vld [vmem:[%s1 + $0xbe8] sm:$0xf]
  %v456 = vld [vmem:[%s1 + $0xbec] sm:$0xff]
  %v457 = vld [vmem:[%s1 + $0xbf4] sm:$0xff]
  %v458 = vld [vmem:[%s1 + $0xbfc] sm:$0xff]
  %v459 = vld [vmem:[%s1 + $0xc04] sm:$0xf]
  %v460 = vld [vmem:[%s1 + $0xc08] sm:$0xff]
  %v461 = vld [vmem:[%s1 + $0xc10] sm:$0xff]
  %v462 = vld [vmem:[%s1 + $0xc18] sm:$0xff]
  %v463 = vld [vmem:[%s1 + $0xc20] sm:$0xf]
  %v464 = vld [vmem:[%s1 + $0xc24] sm:$0xff]
  %v465 = vld [vmem:[%s1 + $0xc2c] sm:$0xff]
  %v466 = vld [vmem:[%s1 + $0xc34] sm:$0xff]
  %v467 = vld [vmem:[%s1 + $0xc3c] sm:$0xf]
  %v468 = vld [vmem:[%s1 + $0xc40] sm:$0xff]
  %v469 = vld [vmem:[%s1 + $0xc48] sm:$0xff]
  %v470 = vld [vmem:[%s1 + $0xc50] sm:$0xff]
  %v471 = vld [vmem:[%s1 + $0xc58] sm:$0xf]
  %v472 = vld [vmem:[%s1 + $0xc5c] sm:$0xff]
  %v473 = vld [vmem:[%s1 + $0xc64] sm:$0xff]
  %v474 = vld [vmem:[%s1 + $0xc6c] sm:$0xff]
  %v475 = vld [vmem:[%s1 + $0xc74] sm:$0xf]
  %v476 = vld [vmem:[%s1 + $0xc78] sm:$0xff]
  %v477 = vld [vmem:[%s1 + $0xc80] sm:$0xff]
  %v478 = vld [vmem:[%s1 + $0xc88] sm:$0xff]
  %v479 = vld [vmem:[%s1 + $0xc90] sm:$0xf]
  %v480 = vld [vmem:[%s1 + $0xc94] sm:$0xff]
  %v481 = vld [vmem:[%s1 + $0xc9c] sm:$0xff]
  %v482 = vld [vmem:[%s1 + $0xca4] sm:$0xff]
  %v483 = vld [vmem:[%s1 + $0xcac] sm:$0xf]
  %v484 = vld [vmem:[%s1 + $0xcb0] sm:$0xff]
  %v485 = vld [vmem:[%s1 + $0xcb8] sm:$0xff]
  %v486 = vld [vmem:[%s1 + $0xcc0] sm:$0xff]
  %v487 = vld [vmem:[%s1 + $0xcc8] sm:$0xf]
  %v488 = vld [vmem:[%s1 + $0xccc] sm:$0xff]
  %v489 = vld [vmem:[%s1 + $0xcd4] sm:$0xff]
  %v490 = vld [vmem:[%s1 + $0xcdc] sm:$0xff]
  %v491 = vld [vmem:[%s1 + $0xce4] sm:$0xf]
  %v492 = vld [vmem:[%s1 + $0xce8] sm:$0xff]
  %v493 = vld [vmem:[%s1 + $0xcf0] sm:$0xff]
  %v494 = vld [vmem:[%s1 + $0xcf8] sm:$0xff]
  %v495 = vld [vmem:[%s1 + $0xd00] sm:$0xf]
  %v496 = vld [vmem:[%s1 + $0xd04] sm:$0xff]
  %v497 = vld [vmem:[%s1 + $0xd0c] sm:$0xff]
  %v498 = vld [vmem:[%s1 + $0xd14] sm:$0xff]
  %v499 = vld [vmem:[%s1 + $0xd1c] sm:$0xf]
  %v500 = vld [vmem:[%s1 + $0xd20] sm:$0xff]
  %v501 = vld [vmem:[%s1 + $0xd28] sm:$0xff]
  %v502 = vld [vmem:[%s1 + $0xd30] sm:$0xff]
  %v503 = vld [vmem:[%s1 + $0xd38] sm:$0xf]
  %v504 = vld [vmem:[%s1 + $0xd3c] sm:$0xff]
  %v505 = vld [vmem:[%s1 + $0xd44] sm:$0xff]
  %v506 = vld [vmem:[%s1 + $0xd4c] sm:$0xff]
  %v507 = vld [vmem:[%s1 + $0xd54] sm:$0xf]
  %v508 = vld [vmem:[%s1 + $0xd58] sm:$0xff]
  %v509 = vld [vmem:[%s1 + $0xd60] sm:$0xff]
  %v510 = vld [vmem:[%s1 + $0xd68] sm:$0xff]
  %v511 = vld [vmem:[%s1 + $0xd70] sm:$0xf]
  %v512 = vld [vmem:[%s1 + $0xd74] sm:$0xff]
  %v513 = vld [vmem:[%s1 + $0xd7c] sm:$0xff]
  %v514 = vld [vmem:[%s1 + $0xd84] sm:$0xff]
  %v515 = vld [vmem:[%s1 + $0xd8c] sm:$0xf]
  %v516 = vld [vmem:[%s1 + $0xd90] sm:$0xff]
  %v517 = vld [vmem:[%s1 + $0xd98] sm:$0xff]
  %v518 = vld [vmem:[%s1 + $0xda0] sm:$0xff]
  %v519 = vld [vmem:[%s1 + $0xda8] sm:$0xf]
  %v520 = vld [vmem:[%s1 + $0xdac] sm:$0xff]
  %v521 = vld [vmem:[%s1 + $0xdb4] sm:$0xff]
  %v522 = vld [vmem:[%s1 + $0xdbc] sm:$0xff]
  %v523 = vld [vmem:[%s1 + $0xdc4] sm:$0xf]
  %v524 = vld [vmem:[%s1 + $0xdc8] sm:$0xff]
  %v525 = vld [vmem:[%s1 + $0xdd0] sm:$0xff]
  %v526 = vld [vmem:[%s1 + $0xdd8] sm:$0xff]
  %v527 = vld [vmem:[%s1 + $0xde0] sm:$0xf]
  %v528 = vld [vmem:[%s1 + $0xde4] sm:$0xff]
  %v529 = vld [vmem:[%s1 + $0xdec] sm:$0xff]
  %v530 = vld [vmem:[%s1 + $0xdf4] sm:$0xff]
  %v531 = vld [vmem:[%s1 + $0xdfc] sm:$0xf]
  %v532 = vld [vmem:[%s1 + $0xe00] sm:$0xff]
  %v533 = vld [vmem:[%s1 + $0xe08] sm:$0xff]
  %v534 = vld [vmem:[%s1 + $0xe10] sm:$0xff]
  %v535 = vld [vmem:[%s1 + $0xe18] sm:$0xf]
  %v536 = vld [vmem:[%s1 + $0xe1c] sm:$0xff]
  %v537 = vld [vmem:[%s1 + $0xe24] sm:$0xff]
  %v538 = vld [vmem:[%s1 + $0xe2c] sm:$0xff]
  %v539 = vld [vmem:[%s1 + $0xe34] sm:$0xf]
  %v540 = vld [vmem:[%s1 + $0xe38] sm:$0xff]
  %v541 = vld [vmem:[%s1 + $0xe40] sm:$0xff]
  %v542 = vld [vmem:[%s1 + $0xe48] sm:$0xff]
  %v543 = vld [vmem:[%s1 + $0xe50] sm:$0xf]
  %v544 = vld [vmem:[%s1 + $0xe54] sm:$0xff]
  %v545 = vld [vmem:[%s1 + $0xe5c] sm:$0xff]
  %v546 = vld [vmem:[%s1 + $0xe64] sm:$0xff]
  %v547 = vld [vmem:[%s1 + $0xe6c] sm:$0xf]
  %v548 = vld [vmem:[%s1 + $0xe70] sm:$0xff]
  %v549 = vld [vmem:[%s1 + $0xe78] sm:$0xff]
  %v550 = vld [vmem:[%s1 + $0xe80] sm:$0xff]
  %v551 = vld [vmem:[%s1 + $0xe88] sm:$0xf]
  %v552 = vld [vmem:[%s1 + $0xe8c] sm:$0xff]
  %v553 = vld [vmem:[%s1 + $0xe94] sm:$0xff]
  %v554 = vld [vmem:[%s1 + $0xe9c] sm:$0xff]
  %v555 = vld [vmem:[%s1 + $0xea4] sm:$0xf]
  %v556 = vld [vmem:[%s1 + $0xea8] sm:$0xff]
  %v557 = vld [vmem:[%s1 + $0xeb0] sm:$0xff]
  %v558 = vld [vmem:[%s1 + $0xeb8] sm:$0xff]
  %v559 = vld [vmem:[%s1 + $0xec0] sm:$0xf]
  %v560 = vld [vmem:[%s1 + $0xec4] sm:$0xff]
  %v561 = vld [vmem:[%s1 + $0xecc] sm:$0xff]
  %v562 = vld [vmem:[%s1 + $0xed4] sm:$0xff]
  %v563 = vld [vmem:[%s1 + $0xedc] sm:$0xf]
  %v564 = vld [vmem:[%s1 + $0xee0] sm:$0xff]
  %v565 = vld [vmem:[%s1 + $0xee8] sm:$0xff]
  %v566 = vld [vmem:[%s1 + $0xef0] sm:$0xff]
  %v567 = vld [vmem:[%s1 + $0xef8] sm:$0xf]
  %v568 = vld [vmem:[%s1 + $0xefc] sm:$0xff]
  %v569 = vld [vmem:[%s1 + $0xf04] sm:$0xff]
  %v570 = vld [vmem:[%s1 + $0xf0c] sm:$0xff]
  %v571 = vld [vmem:[%s1 + $0xf14] sm:$0xf]
  %v572 = vld [vmem:[%s1 + $0xf18] sm:$0xff]
  %v573 = vld [vmem:[%s1 + $0xf20] sm:$0xff]
  %v574 = vld [vmem:[%s1 + $0xf28] sm:$0xff]
  %v575 = vld [vmem:[%s1 + $0xf30] sm:$0xf]
  %v576 = vld [vmem:[%s1 + $0xf34] sm:$0xff]
  %v577 = vld [vmem:[%s1 + $0xf3c] sm:$0xff]
  %v578 = vld [vmem:[%s1 + $0xf44] sm:$0xff]
  %v579 = vld [vmem:[%s1 + $0xf4c] sm:$0xf]
  %v580 = vld [vmem:[%s1 + $0xf50] sm:$0xff]
  %v581 = vld [vmem:[%s1 + $0xf58] sm:$0xff]
  %v582 = vld [vmem:[%s1 + $0xf60] sm:$0xff]
  %v583 = vld [vmem:[%s1 + $0xf68] sm:$0xf]
  %v584 = vld [vmem:[%s1 + $0xf6c] sm:$0xff]
  %v585 = vld [vmem:[%s1 + $0xf74] sm:$0xff]
  %v586 = vld [vmem:[%s1 + $0xf7c] sm:$0xff]
  %v587 = vld [vmem:[%s1 + $0xf84] sm:$0xf]
  %v588 = vld [vmem:[%s1 + $0xf88] sm:$0xff]
  %v589 = vld [vmem:[%s1 + $0xf90] sm:$0xff]
  %v590 = vld [vmem:[%s1 + $0xf98] sm:$0xff]
  %v591 = vld [vmem:[%s1 + $0xfa0] sm:$0xf]
  %v592 = vld [vmem:[%s1 + $0xfa4] sm:$0xff]
  %v593 = vld [vmem:[%s1 + $0xfac] sm:$0xff]
  %v594 = vld [vmem:[%s1 + $0xfb4] sm:$0xff]
  %v595 = vld [vmem:[%s1 + $0xfbc] sm:$0xf]
  %v596 = vld [vmem:[%s1 + $0xfc0] sm:$0xff]
  %v597 = vld [vmem:[%s1 + $0xfc8] sm:$0xff]
  %v598 = vld [vmem:[%s1 + $0xfd0] sm:$0xff]
  %v599 = vld [vmem:[%s1 + $0xfd8] sm:$0xf]
  %v600 = vld [vmem:[%s1 + $0xfdc] sm:$0xff]
  %v601 = vld [vmem:[%s1 + $0xfe4] sm:$0xff]
  %v602 = vld [vmem:[%s1 + $0xfec] sm:$0xff]
  %v603 = vld [vmem:[%s1 + $0xff4] sm:$0xf]
  %v604 = vld [vmem:[%s1 + $0xff8] sm:$0xff]
  %v605 = vld [vmem:[%s1 + $0x1000] sm:$0xff]
  %v606 = vld [vmem:[%s1 + $0x1008] sm:$0xff]
  %v607 = vld [vmem:[%s1 + $0x1010] sm:$0xf]
  %v608 = vld [vmem:[%s1 + $0x1014] sm:$0xff]
  %v609 = vld [vmem:[%s1 + $0x101c] sm:$0xff]
  %v610 = vld [vmem:[%s1 + $0x1024] sm:$0xff]
  %v611 = vld [vmem:[%s1 + $0x102c] sm:$0xf]
  %v612 = vld [vmem:[%s1 + $0x1030] sm:$0xff]
  %v613 = vld [vmem:[%s1 + $0x1038] sm:$0xff]
  %v614 = vld [vmem:[%s1 + $0x1040] sm:$0xff]
  %v615 = vld [vmem:[%s1 + $0x1048] sm:$0xf]
  %v616 = vld [vmem:[%s1 + $0x104c] sm:$0xff]
  %v617 = vld [vmem:[%s1 + $0x1054] sm:$0xff]
  %v618 = vld [vmem:[%s1 + $0x105c] sm:$0xff]
  %v619 = vld [vmem:[%s1 + $0x1064] sm:$0xf]
  %v620 = vld [vmem:[%s2] sm:$0xff]
  %622 = vset.pattern.permute.xlu0 0
  %623 = vperm.xlu0 %622, %v620
  %v624 = vpop.permute.xlu0 %623
  %v631 = vunpack.c.l.b16 %v15
  %v632 = vunpack.c.h.b16 %v15
  %v633 = vunpack.c.l.b16 %v16
  %v634 = vunpack.c.h.b16 %v16
  %v635 = vunpack.c.l.b16 %v17
  %v636 = vunpack.c.h.b16 %v17
  %v637 = vunpack.c.l.b16 %v18
  %v638 = vunpack.c.h.b16 %v18
  %v639 = vunpack.c.l.b16 %v19
  %v640 = vunpack.c.h.b16 %v19
  %v641 = vpack.c.b16 %v631, %v631
  %v642 = vpack.c.b16 %v632, %v632
  %v643 = vpack.c.b16 %v633, %v633
  %v644 = vpack.c.b16 %v634, %v634
  %v645 = vpack.c.b16 %v635, %v635
  %v646 = vpack.c.b16 %v636, %v636
  %v647 = vpack.c.b16 %v637, %v637
  %v648 = vpack.c.b16 %v638, %v638
  %v649 = vpack.c.b16 %v639, %v639
  %v650 = vpack.c.b16 %v640, %v640
  %v1260 = vunpack.c.l.b16 %v20
  %v1261 = vunpack.c.h.b16 %v20
  %v1262 = vunpack.c.l.b16 %v21
  %v1263 = vunpack.c.h.b16 %v21
  %v1264 = vunpack.c.l.b16 %v22
  %v1265 = vunpack.c.h.b16 %v22
  %v1266 = vunpack.c.l.b16 %v23
  %v1267 = vunpack.c.l.b16 %v24
  %v1268 = vunpack.c.h.b16 %v24
  %v1269 = vunpack.c.l.b16 %v25
  %v1270 = vunpack.c.h.b16 %v25
  %v1271 = vunpack.c.l.b16 %v26
  %v1272 = vunpack.c.h.b16 %v26
  %v1273 = vunpack.c.l.b16 %v27
  %v1274 = vunpack.c.l.b16 %v28
  %v1275 = vunpack.c.h.b16 %v28
  %v1276 = vunpack.c.l.b16 %v29
  %v1277 = vunpack.c.h.b16 %v29
  %v1278 = vunpack.c.l.b16 %v30
  %v1279 = vunpack.c.h.b16 %v30
  %v1280 = vunpack.c.l.b16 %v31
  %v1281 = vunpack.c.l.b16 %v32
  %v1282 = vunpack.c.h.b16 %v32
  %v1283 = vunpack.c.l.b16 %v33
  %v1284 = vunpack.c.h.b16 %v33
  %v1285 = vunpack.c.l.b16 %v34
  %v1286 = vunpack.c.h.b16 %v34
  %v1287 = vunpack.c.l.b16 %v35
  %v1288 = vunpack.c.l.b16 %v36
  %v1289 = vunpack.c.h.b16 %v36
  %v1290 = vunpack.c.l.b16 %v37
  %v1291 = vunpack.c.h.b16 %v37
  %v1292 = vunpack.c.l.b16 %v38
  %v1293 = vunpack.c.h.b16 %v38
  %v1294 = vunpack.c.l.b16 %v39
  %v1295 = vunpack.c.l.b16 %v40
  %v1296 = vunpack.c.h.b16 %v40
  %v1297 = vunpack.c.l.b16 %v41
  %v1298 = vunpack.c.h.b16 %v41
  %v1299 = vunpack.c.l.b16 %v42
  %v1300 = vunpack.c.h.b16 %v42
  %v1301 = vunpack.c.l.b16 %v43
  %v1302 = vunpack.c.l.b16 %v44
  %v1303 = vunpack.c.h.b16 %v44
  %v1304 = vunpack.c.l.b16 %v45
  %v1305 = vunpack.c.h.b16 %v45
  %v1306 = vunpack.c.l.b16 %v46
  %v1307 = vunpack.c.h.b16 %v46
  %v1308 = vunpack.c.l.b16 %v47
  %v1309 = vunpack.c.l.b16 %v48
  %v1310 = vunpack.c.h.b16 %v48
  %v1311 = vunpack.c.l.b16 %v49
  %v1312 = vunpack.c.h.b16 %v49
  %v1313 = vunpack.c.l.b16 %v50
  %v1314 = vunpack.c.h.b16 %v50
  %v1315 = vunpack.c.l.b16 %v51
  %v1316 = vunpack.c.l.b16 %v52
  %v1317 = vunpack.c.h.b16 %v52
  %v1318 = vunpack.c.l.b16 %v53
  %v1319 = vunpack.c.h.b16 %v53
  %v1320 = vunpack.c.l.b16 %v54
  %v1321 = vunpack.c.h.b16 %v54
  %v1322 = vunpack.c.l.b16 %v55
  %v1323 = vunpack.c.l.b16 %v56
  %v1324 = vunpack.c.h.b16 %v56
  %v1325 = vunpack.c.l.b16 %v57
  %v1326 = vunpack.c.h.b16 %v57
  %v1327 = vunpack.c.l.b16 %v58
  %v1328 = vunpack.c.h.b16 %v58
  %v1329 = vunpack.c.l.b16 %v59
  %v1330 = vunpack.c.l.b16 %v60
  %v1331 = vunpack.c.h.b16 %v60
  %v1332 = vunpack.c.l.b16 %v61
  %v1333 = vunpack.c.h.b16 %v61
  %v1334 = vunpack.c.l.b16 %v62
  %v1335 = vunpack.c.h.b16 %v62
  %v1336 = vunpack.c.l.b16 %v63
  %v1337 = vunpack.c.l.b16 %v64
  %v1338 = vunpack.c.h.b16 %v64
  %v1339 = vunpack.c.l.b16 %v65
  %v1340 = vunpack.c.h.b16 %v65
  %v1341 = vunpack.c.l.b16 %v66
  %v1342 = vunpack.c.h.b16 %v66
  %v1343 = vunpack.c.l.b16 %v67
  %v1344 = vunpack.c.l.b16 %v68
  %v1345 = vunpack.c.h.b16 %v68
  %v1346 = vunpack.c.l.b16 %v69
  %v1347 = vunpack.c.h.b16 %v69
  %v1348 = vunpack.c.l.b16 %v70
  %v1349 = vunpack.c.h.b16 %v70
  %v1350 = vunpack.c.l.b16 %v71
  %v1351 = vunpack.c.l.b16 %v72
  %v1352 = vunpack.c.h.b16 %v72
  %v1353 = vunpack.c.l.b16 %v73
  %v1354 = vunpack.c.h.b16 %v73
  %v1355 = vunpack.c.l.b16 %v74
  %v1356 = vunpack.c.h.b16 %v74
  %v1357 = vunpack.c.l.b16 %v75
  %v1358 = vunpack.c.l.b16 %v76
  %v1359 = vunpack.c.h.b16 %v76
  %v1360 = vunpack.c.l.b16 %v77
  %v1361 = vunpack.c.h.b16 %v77
  %v1362 = vunpack.c.l.b16 %v78
  %v1363 = vunpack.c.h.b16 %v78
  %v1364 = vunpack.c.l.b16 %v79
  %v1365 = vunpack.c.l.b16 %v80
  %v1366 = vunpack.c.h.b16 %v80
  %v1367 = vunpack.c.l.b16 %v81
  %v1368 = vunpack.c.h.b16 %v81
  %v1369 = vunpack.c.l.b16 %v82
  %v1370 = vunpack.c.h.b16 %v82
  %v1371 = vunpack.c.l.b16 %v83
  %v1372 = vunpack.c.l.b16 %v84
  %v1373 = vunpack.c.h.b16 %v84
  %v1374 = vunpack.c.l.b16 %v85
  %v1375 = vunpack.c.h.b16 %v85
  %v1376 = vunpack.c.l.b16 %v86
  %v1377 = vunpack.c.h.b16 %v86
  %v1378 = vunpack.c.l.b16 %v87
  %v1379 = vunpack.c.l.b16 %v88
  %v1380 = vunpack.c.h.b16 %v88
  %v1381 = vunpack.c.l.b16 %v89
  %v1382 = vunpack.c.h.b16 %v89
  %v1383 = vunpack.c.l.b16 %v90
  %v1384 = vunpack.c.h.b16 %v90
  %v1385 = vunpack.c.l.b16 %v91
  %v1386 = vunpack.c.l.b16 %v92
  %v1387 = vunpack.c.h.b16 %v92
  %v1388 = vunpack.c.l.b16 %v93
  %v1389 = vunpack.c.h.b16 %v93
  %v1390 = vunpack.c.l.b16 %v94
  %v1391 = vunpack.c.h.b16 %v94
  %v1392 = vunpack.c.l.b16 %v95
  %v1393 = vunpack.c.l.b16 %v96
  %v1394 = vunpack.c.h.b16 %v96
  %v1395 = vunpack.c.l.b16 %v97
  %v1396 = vunpack.c.h.b16 %v97
  %v1397 = vunpack.c.l.b16 %v98
  %v1398 = vunpack.c.h.b16 %v98
  %v1399 = vunpack.c.l.b16 %v99
  %v1400 = vunpack.c.l.b16 %v100
  %v1401 = vunpack.c.h.b16 %v100
  %v1402 = vunpack.c.l.b16 %v101
  %v1403 = vunpack.c.h.b16 %v101
  %v1404 = vunpack.c.l.b16 %v102
  %v1405 = vunpack.c.h.b16 %v102
  %v1406 = vunpack.c.l.b16 %v103
  %v1407 = vunpack.c.l.b16 %v104
  %v1408 = vunpack.c.h.b16 %v104
  %v1409 = vunpack.c.l.b16 %v105
  %v1410 = vunpack.c.h.b16 %v105
  %v1411 = vunpack.c.l.b16 %v106
  %v1412 = vunpack.c.h.b16 %v106
  %v1413 = vunpack.c.l.b16 %v107
  %v1414 = vunpack.c.l.b16 %v108
  %v1415 = vunpack.c.h.b16 %v108
  %v1416 = vunpack.c.l.b16 %v109
  %v1417 = vunpack.c.h.b16 %v109
  %v1418 = vunpack.c.l.b16 %v110
  %v1419 = vunpack.c.h.b16 %v110
  %v1420 = vunpack.c.l.b16 %v111
  %v1421 = vunpack.c.l.b16 %v112
  %v1422 = vunpack.c.h.b16 %v112
  %v1423 = vunpack.c.l.b16 %v113
  %v1424 = vunpack.c.h.b16 %v113
  %v1425 = vunpack.c.l.b16 %v114
  %v1426 = vunpack.c.h.b16 %v114
  %v1427 = vunpack.c.l.b16 %v115
  %v1428 = vunpack.c.l.b16 %v116
  %v1429 = vunpack.c.h.b16 %v116
  %v1430 = vunpack.c.l.b16 %v117
  %v1431 = vunpack.c.h.b16 %v117
  %v1432 = vunpack.c.l.b16 %v118
  %v1433 = vunpack.c.h.b16 %v118
  %v1434 = vunpack.c.l.b16 %v119
  %v1435 = vunpack.c.l.b16 %v120
  %v1436 = vunpack.c.h.b16 %v120
  %v1437 = vunpack.c.l.b16 %v121
  %v1438 = vunpack.c.h.b16 %v121
  %v1439 = vunpack.c.l.b16 %v122
  %v1440 = vunpack.c.h.b16 %v122
  %v1441 = vunpack.c.l.b16 %v123
  %v1442 = vunpack.c.l.b16 %v124
  %v1443 = vunpack.c.h.b16 %v124
  %v1444 = vunpack.c.l.b16 %v125
  %v1445 = vunpack.c.h.b16 %v125
  %v1446 = vunpack.c.l.b16 %v126
  %v1447 = vunpack.c.h.b16 %v126
  %v1448 = vunpack.c.l.b16 %v127
  %v1449 = vunpack.c.l.b16 %v128
  %v1450 = vunpack.c.h.b16 %v128
  %v1451 = vunpack.c.l.b16 %v129
  %v1452 = vunpack.c.h.b16 %v129
  %v1453 = vunpack.c.l.b16 %v130
  %v1454 = vunpack.c.h.b16 %v130
  %v1455 = vunpack.c.l.b16 %v131
  %v1456 = vunpack.c.l.b16 %v132
  %v1457 = vunpack.c.h.b16 %v132
  %v1458 = vunpack.c.l.b16 %v133
  %v1459 = vunpack.c.h.b16 %v133
  %v1460 = vunpack.c.l.b16 %v134
  %v1461 = vunpack.c.h.b16 %v134
  %v1462 = vunpack.c.l.b16 %v135
  %v1463 = vunpack.c.l.b16 %v136
  %v1464 = vunpack.c.h.b16 %v136
  %v1465 = vunpack.c.l.b16 %v137
  %v1466 = vunpack.c.h.b16 %v137
  %v1467 = vunpack.c.l.b16 %v138
  %v1468 = vunpack.c.h.b16 %v138
  %v1469 = vunpack.c.l.b16 %v139
  %v1470 = vunpack.c.l.b16 %v140
  %v1471 = vunpack.c.h.b16 %v140
  %v1472 = vunpack.c.l.b16 %v141
  %v1473 = vunpack.c.h.b16 %v141
  %v1474 = vunpack.c.l.b16 %v142
  %v1475 = vunpack.c.h.b16 %v142
  %v1476 = vunpack.c.l.b16 %v143
  %v1477 = vunpack.c.l.b16 %v144
  %v1478 = vunpack.c.h.b16 %v144
  %v1479 = vunpack.c.l.b16 %v145
  %v1480 = vunpack.c.h.b16 %v145
  %v1481 = vunpack.c.l.b16 %v146
  %v1482 = vunpack.c.h.b16 %v146
  %v1483 = vunpack.c.l.b16 %v147
  %v1484 = vunpack.c.l.b16 %v148
  %v1485 = vunpack.c.h.b16 %v148
  %v1486 = vunpack.c.l.b16 %v149
  %v1487 = vunpack.c.h.b16 %v149
  %v1488 = vunpack.c.l.b16 %v150
  %v1489 = vunpack.c.h.b16 %v150
  %v1490 = vunpack.c.l.b16 %v151
  %v1491 = vunpack.c.l.b16 %v152
  %v1492 = vunpack.c.h.b16 %v152
  %v1493 = vunpack.c.l.b16 %v153
  %v1494 = vunpack.c.h.b16 %v153
  %v1495 = vunpack.c.l.b16 %v154
  %v1496 = vunpack.c.h.b16 %v154
  %v1497 = vunpack.c.l.b16 %v155
  %v1498 = vunpack.c.l.b16 %v156
  %v1499 = vunpack.c.h.b16 %v156
  %v1500 = vunpack.c.l.b16 %v157
  %v1501 = vunpack.c.h.b16 %v157
  %v1502 = vunpack.c.l.b16 %v158
  %v1503 = vunpack.c.h.b16 %v158
  %v1504 = vunpack.c.l.b16 %v159
  %v1505 = vunpack.c.l.b16 %v160
  %v1506 = vunpack.c.h.b16 %v160
  %v1507 = vunpack.c.l.b16 %v161
  %v1508 = vunpack.c.h.b16 %v161
  %v1509 = vunpack.c.l.b16 %v162
  %v1510 = vunpack.c.h.b16 %v162
  %v1511 = vunpack.c.l.b16 %v163
  %v1512 = vunpack.c.l.b16 %v164
  %v1513 = vunpack.c.h.b16 %v164
  %v1514 = vunpack.c.l.b16 %v165
  %v1515 = vunpack.c.h.b16 %v165
  %v1516 = vunpack.c.l.b16 %v166
  %v1517 = vunpack.c.h.b16 %v166
  %v1518 = vunpack.c.l.b16 %v167
  %v1519 = vunpack.c.l.b16 %v168
  %v1520 = vunpack.c.h.b16 %v168
  %v1521 = vunpack.c.l.b16 %v169
  %v1522 = vunpack.c.h.b16 %v169
  %v1523 = vunpack.c.l.b16 %v170
  %v1524 = vunpack.c.h.b16 %v170
  %v1525 = vunpack.c.l.b16 %v171
  %v1526 = vunpack.c.l.b16 %v172
  %v1527 = vunpack.c.h.b16 %v172
  %v1528 = vunpack.c.l.b16 %v173
  %v1529 = vunpack.c.h.b16 %v173
  %v1530 = vunpack.c.l.b16 %v174
  %v1531 = vunpack.c.h.b16 %v174
  %v1532 = vunpack.c.l.b16 %v175
  %v1533 = vunpack.c.l.b16 %v176
  %v1534 = vunpack.c.h.b16 %v176
  %v1535 = vunpack.c.l.b16 %v177
  %v1536 = vunpack.c.h.b16 %v177
  %v1537 = vunpack.c.l.b16 %v178
  %v1538 = vunpack.c.h.b16 %v178
  %v1539 = vunpack.c.l.b16 %v179
  %v1540 = vunpack.c.l.b16 %v180
  %v1541 = vunpack.c.h.b16 %v180
  %v1542 = vunpack.c.l.b16 %v181
  %v1543 = vunpack.c.h.b16 %v181
  %v1544 = vunpack.c.l.b16 %v182
  %v1545 = vunpack.c.h.b16 %v182
  %v1546 = vunpack.c.l.b16 %v183
  %v1547 = vunpack.c.l.b16 %v184
  %v1548 = vunpack.c.h.b16 %v184
  %v1549 = vunpack.c.l.b16 %v185
  %v1550 = vunpack.c.h.b16 %v185
  %v1551 = vunpack.c.l.b16 %v186
  %v1552 = vunpack.c.h.b16 %v186
  %v1553 = vunpack.c.l.b16 %v187
  %v1554 = vunpack.c.l.b16 %v188
  %v1555 = vunpack.c.h.b16 %v188
  %v1556 = vunpack.c.l.b16 %v189
  %v1557 = vunpack.c.h.b16 %v189
  %v1558 = vunpack.c.l.b16 %v190
  %v1559 = vunpack.c.h.b16 %v190
  %v1560 = vunpack.c.l.b16 %v191
  %v1561 = vunpack.c.l.b16 %v192
  %v1562 = vunpack.c.h.b16 %v192
  %v1563 = vunpack.c.l.b16 %v193
  %v1564 = vunpack.c.h.b16 %v193
  %v1565 = vunpack.c.l.b16 %v194
  %v1566 = vunpack.c.h.b16 %v194
  %v1567 = vunpack.c.l.b16 %v195
  %v1568 = vunpack.c.l.b16 %v196
  %v1569 = vunpack.c.h.b16 %v196
  %v1570 = vunpack.c.l.b16 %v197
  %v1571 = vunpack.c.h.b16 %v197
  %v1572 = vunpack.c.l.b16 %v198
  %v1573 = vunpack.c.h.b16 %v198
  %v1574 = vunpack.c.l.b16 %v199
  %v1575 = vunpack.c.l.b16 %v200
  %v1576 = vunpack.c.h.b16 %v200
  %v1577 = vunpack.c.l.b16 %v201
  %v1578 = vunpack.c.h.b16 %v201
  %v1579 = vunpack.c.l.b16 %v202
  %v1580 = vunpack.c.h.b16 %v202
  %v1581 = vunpack.c.l.b16 %v203
  %v1582 = vunpack.c.l.b16 %v204
  %v1583 = vunpack.c.h.b16 %v204
  %v1584 = vunpack.c.l.b16 %v205
  %v1585 = vunpack.c.h.b16 %v205
  %v1586 = vunpack.c.l.b16 %v206
  %v1587 = vunpack.c.h.b16 %v206
  %v1588 = vunpack.c.l.b16 %v207
  %v1589 = vunpack.c.l.b16 %v208
  %v1590 = vunpack.c.h.b16 %v208
  %v1591 = vunpack.c.l.b16 %v209
  %v1592 = vunpack.c.h.b16 %v209
  %v1593 = vunpack.c.l.b16 %v210
  %v1594 = vunpack.c.h.b16 %v210
  %v1595 = vunpack.c.l.b16 %v211
  %v1596 = vunpack.c.l.b16 %v212
  %v1597 = vunpack.c.h.b16 %v212
  %v1598 = vunpack.c.l.b16 %v213
  %v1599 = vunpack.c.h.b16 %v213
  %v1600 = vunpack.c.l.b16 %v214
  %v1601 = vunpack.c.h.b16 %v214
  %v1602 = vunpack.c.l.b16 %v215
  %v1603 = vunpack.c.l.b16 %v216
  %v1604 = vunpack.c.h.b16 %v216
  %v1605 = vunpack.c.l.b16 %v217
  %v1606 = vunpack.c.h.b16 %v217
  %v1607 = vunpack.c.l.b16 %v218
  %v1608 = vunpack.c.h.b16 %v218
  %v1609 = vunpack.c.l.b16 %v219
  %v1610 = vunpack.c.l.b16 %v220
  %v1611 = vunpack.c.h.b16 %v220
  %v1612 = vunpack.c.l.b16 %v221
  %v1613 = vunpack.c.h.b16 %v221
  %v1614 = vunpack.c.l.b16 %v222
  %v1615 = vunpack.c.h.b16 %v222
  %v1616 = vunpack.c.l.b16 %v223
  %v1617 = vunpack.c.l.b16 %v224
  %v1618 = vunpack.c.h.b16 %v224
  %v1619 = vunpack.c.l.b16 %v225
  %v1620 = vunpack.c.h.b16 %v225
  %v1621 = vunpack.c.l.b16 %v226
  %v1622 = vunpack.c.h.b16 %v226
  %v1623 = vunpack.c.l.b16 %v227
  %v1624 = vunpack.c.l.b16 %v228
  %v1625 = vunpack.c.h.b16 %v228
  %v1626 = vunpack.c.l.b16 %v229
  %v1627 = vunpack.c.h.b16 %v229
  %v1628 = vunpack.c.l.b16 %v230
  %v1629 = vunpack.c.h.b16 %v230
  %v1630 = vunpack.c.l.b16 %v231
  %v1631 = vunpack.c.l.b16 %v232
  %v1632 = vunpack.c.h.b16 %v232
  %v1633 = vunpack.c.l.b16 %v233
  %v1634 = vunpack.c.h.b16 %v233
  %v1635 = vunpack.c.l.b16 %v234
  %v1636 = vunpack.c.h.b16 %v234
  %v1637 = vunpack.c.l.b16 %v235
  %v1638 = vunpack.c.l.b16 %v236
  %v1639 = vunpack.c.h.b16 %v236
  %v1640 = vunpack.c.l.b16 %v237
  %v1641 = vunpack.c.h.b16 %v237
  %v1642 = vunpack.c.l.b16 %v238
  %v1643 = vunpack.c.h.b16 %v238
  %v1644 = vunpack.c.l.b16 %v239
  %v1645 = vunpack.c.l.b16 %v240
  %v1646 = vunpack.c.h.b16 %v240
  %v1647 = vunpack.c.l.b16 %v241
  %v1648 = vunpack.c.h.b16 %v241
  %v1649 = vunpack.c.l.b16 %v242
  %v1650 = vunpack.c.h.b16 %v242
  %v1651 = vunpack.c.l.b16 %v243
  %v1652 = vunpack.c.l.b16 %v244
  %v1653 = vunpack.c.h.b16 %v244
  %v1654 = vunpack.c.l.b16 %v245
  %v1655 = vunpack.c.h.b16 %v245
  %v1656 = vunpack.c.l.b16 %v246
  %v1657 = vunpack.c.h.b16 %v246
  %v1658 = vunpack.c.l.b16 %v247
  %v1659 = vunpack.c.l.b16 %v248
  %v1660 = vunpack.c.h.b16 %v248
  %v1661 = vunpack.c.l.b16 %v249
  %v1662 = vunpack.c.h.b16 %v249
  %v1663 = vunpack.c.l.b16 %v250
  %v1664 = vunpack.c.h.b16 %v250
  %v1665 = vunpack.c.l.b16 %v251
  %v1666 = vunpack.c.l.b16 %v252
  %v1667 = vunpack.c.h.b16 %v252
  %v1668 = vunpack.c.l.b16 %v253
  %v1669 = vunpack.c.h.b16 %v253
  %v1670 = vunpack.c.l.b16 %v254
  %v1671 = vunpack.c.h.b16 %v254
  %v1672 = vunpack.c.l.b16 %v255
  %v1673 = vunpack.c.l.b16 %v256
  %v1674 = vunpack.c.h.b16 %v256
  %v1675 = vunpack.c.l.b16 %v257
  %v1676 = vunpack.c.h.b16 %v257
  %v1677 = vunpack.c.l.b16 %v258
  %v1678 = vunpack.c.h.b16 %v258
  %v1679 = vunpack.c.l.b16 %v259
  %v1680 = vunpack.c.l.b16 %v260
  %v1681 = vunpack.c.h.b16 %v260
  %v1682 = vunpack.c.l.b16 %v261
  %v1683 = vunpack.c.h.b16 %v261
  %v1684 = vunpack.c.l.b16 %v262
  %v1685 = vunpack.c.h.b16 %v262
  %v1686 = vunpack.c.l.b16 %v263
  %v1687 = vunpack.c.l.b16 %v264
  %v1688 = vunpack.c.h.b16 %v264
  %v1689 = vunpack.c.l.b16 %v265
  %v1690 = vunpack.c.h.b16 %v265
  %v1691 = vunpack.c.l.b16 %v266
  %v1692 = vunpack.c.h.b16 %v266
  %v1693 = vunpack.c.l.b16 %v267
  %v1694 = vunpack.c.l.b16 %v268
  %v1695 = vunpack.c.h.b16 %v268
  %v1696 = vunpack.c.l.b16 %v269
  %v1697 = vunpack.c.h.b16 %v269
  %v1698 = vunpack.c.l.b16 %v270
  %v1699 = vunpack.c.h.b16 %v270
  %v1700 = vunpack.c.l.b16 %v271
  %v1701 = vunpack.c.l.b16 %v272
  %v1702 = vunpack.c.h.b16 %v272
  %v1703 = vunpack.c.l.b16 %v273
  %v1704 = vunpack.c.h.b16 %v273
  %v1705 = vunpack.c.l.b16 %v274
  %v1706 = vunpack.c.h.b16 %v274
  %v1707 = vunpack.c.l.b16 %v275
  %v1708 = vunpack.c.l.b16 %v276
  %v1709 = vunpack.c.h.b16 %v276
  %v1710 = vunpack.c.l.b16 %v277
  %v1711 = vunpack.c.h.b16 %v277
  %v1712 = vunpack.c.l.b16 %v278
  %v1713 = vunpack.c.h.b16 %v278
  %v1714 = vunpack.c.l.b16 %v279
  %v1715 = vunpack.c.l.b16 %v280
  %v1716 = vunpack.c.h.b16 %v280
  %v1717 = vunpack.c.l.b16 %v281
  %v1718 = vunpack.c.h.b16 %v281
  %v1719 = vunpack.c.l.b16 %v282
  %v1720 = vunpack.c.h.b16 %v282
  %v1721 = vunpack.c.l.b16 %v283
  %v1722 = vunpack.c.l.b16 %v284
  %v1723 = vunpack.c.h.b16 %v284
  %v1724 = vunpack.c.l.b16 %v285
  %v1725 = vunpack.c.h.b16 %v285
  %v1726 = vunpack.c.l.b16 %v286
  %v1727 = vunpack.c.h.b16 %v286
  %v1728 = vunpack.c.l.b16 %v287
  %v1729 = vunpack.c.l.b16 %v288
  %v1730 = vunpack.c.h.b16 %v288
  %v1731 = vunpack.c.l.b16 %v289
  %v1732 = vunpack.c.h.b16 %v289
  %v1733 = vunpack.c.l.b16 %v290
  %v1734 = vunpack.c.h.b16 %v290
  %v1735 = vunpack.c.l.b16 %v291
  %v1736 = vunpack.c.l.b16 %v292
  %v1737 = vunpack.c.h.b16 %v292
  %v1738 = vunpack.c.l.b16 %v293
  %v1739 = vunpack.c.h.b16 %v293
  %v1740 = vunpack.c.l.b16 %v294
  %v1741 = vunpack.c.h.b16 %v294
  %v1742 = vunpack.c.l.b16 %v295
  %v1743 = vunpack.c.l.b16 %v296
  %v1744 = vunpack.c.h.b16 %v296
  %v1745 = vunpack.c.l.b16 %v297
  %v1746 = vunpack.c.h.b16 %v297
  %v1747 = vunpack.c.l.b16 %v298
  %v1748 = vunpack.c.h.b16 %v298
  %v1749 = vunpack.c.l.b16 %v299
  %v1750 = vunpack.c.l.b16 %v300
  %v1751 = vunpack.c.h.b16 %v300
  %v1752 = vunpack.c.l.b16 %v301
  %v1753 = vunpack.c.h.b16 %v301
  %v1754 = vunpack.c.l.b16 %v302
  %v1755 = vunpack.c.h.b16 %v302
  %v1756 = vunpack.c.l.b16 %v303
  %v1757 = vunpack.c.l.b16 %v304
  %v1758 = vunpack.c.h.b16 %v304
  %v1759 = vunpack.c.l.b16 %v305
  %v1760 = vunpack.c.h.b16 %v305
  %v1761 = vunpack.c.l.b16 %v306
  %v1762 = vunpack.c.h.b16 %v306
  %v1763 = vunpack.c.l.b16 %v307
  %v1764 = vunpack.c.l.b16 %v308
  %v1765 = vunpack.c.h.b16 %v308
  %v1766 = vunpack.c.l.b16 %v309
  %v1767 = vunpack.c.h.b16 %v309
  %v1768 = vunpack.c.l.b16 %v310
  %v1769 = vunpack.c.h.b16 %v310
  %v1770 = vunpack.c.l.b16 %v311
  %v1771 = vunpack.c.l.b16 %v312
  %v1772 = vunpack.c.h.b16 %v312
  %v1773 = vunpack.c.l.b16 %v313
  %v1774 = vunpack.c.h.b16 %v313
  %v1775 = vunpack.c.l.b16 %v314
  %v1776 = vunpack.c.h.b16 %v314
  %v1777 = vunpack.c.l.b16 %v315
  %v1778 = vunpack.c.l.b16 %v316
  %v1779 = vunpack.c.h.b16 %v316
  %v1780 = vunpack.c.l.b16 %v317
  %v1781 = vunpack.c.h.b16 %v317
  %v1782 = vunpack.c.l.b16 %v318
  %v1783 = vunpack.c.h.b16 %v318
  %v1784 = vunpack.c.l.b16 %v319
  %v1785 = vunpack.c.l.b16 %v320
  %v1786 = vunpack.c.h.b16 %v320
  %v1787 = vunpack.c.l.b16 %v321
  %v1788 = vunpack.c.h.b16 %v321
  %v1789 = vunpack.c.l.b16 %v322
  %v1790 = vunpack.c.h.b16 %v322
  %v1791 = vunpack.c.l.b16 %v323
  %v1792 = vunpack.c.l.b16 %v324
  %v1793 = vunpack.c.h.b16 %v324
  %v1794 = vunpack.c.l.b16 %v325
  %v1795 = vunpack.c.h.b16 %v325
  %v1796 = vunpack.c.l.b16 %v326
  %v1797 = vunpack.c.h.b16 %v326
  %v1798 = vunpack.c.l.b16 %v327
  %v1799 = vunpack.c.l.b16 %v328
  %v1800 = vunpack.c.h.b16 %v328
  %v1801 = vunpack.c.l.b16 %v329
  %v1802 = vunpack.c.h.b16 %v329
  %v1803 = vunpack.c.l.b16 %v330
  %v1804 = vunpack.c.h.b16 %v330
  %v1805 = vunpack.c.l.b16 %v331
  %v1806 = vunpack.c.l.b16 %v332
  %v1807 = vunpack.c.h.b16 %v332
  %v1808 = vunpack.c.l.b16 %v333
  %v1809 = vunpack.c.h.b16 %v333
  %v1810 = vunpack.c.l.b16 %v334
  %v1811 = vunpack.c.h.b16 %v334
  %v1812 = vunpack.c.l.b16 %v335
  %v1813 = vunpack.c.l.b16 %v336
  %v1814 = vunpack.c.h.b16 %v336
  %v1815 = vunpack.c.l.b16 %v337
  %v1816 = vunpack.c.h.b16 %v337
  %v1817 = vunpack.c.l.b16 %v338
  %v1818 = vunpack.c.h.b16 %v338
  %v1819 = vunpack.c.l.b16 %v339
  %v1820 = vunpack.c.l.b16 %v340
  %v1821 = vunpack.c.h.b16 %v340
  %v1822 = vunpack.c.l.b16 %v341
  %v1823 = vunpack.c.h.b16 %v341
  %v1824 = vunpack.c.l.b16 %v342
  %v1825 = vunpack.c.h.b16 %v342
  %v1826 = vunpack.c.l.b16 %v343
  %v1827 = vunpack.c.l.b16 %v344
  %v1828 = vunpack.c.h.b16 %v344
  %v1829 = vunpack.c.l.b16 %v345
  %v1830 = vunpack.c.h.b16 %v345
  %v1831 = vunpack.c.l.b16 %v346
  %v1832 = vunpack.c.h.b16 %v346
  %v1833 = vunpack.c.l.b16 %v347
  %v1834 = vunpack.c.l.b16 %v348
  %v1835 = vunpack.c.h.b16 %v348
  %v1836 = vunpack.c.l.b16 %v349
  %v1837 = vunpack.c.h.b16 %v349
  %v1838 = vunpack.c.l.b16 %v350
  %v1839 = vunpack.c.h.b16 %v350
  %v1840 = vunpack.c.l.b16 %v351
  %v1841 = vunpack.c.l.b16 %v352
  %v1842 = vunpack.c.h.b16 %v352
  %v1843 = vunpack.c.l.b16 %v353
  %v1844 = vunpack.c.h.b16 %v353
  %v1845 = vunpack.c.l.b16 %v354
  %v1846 = vunpack.c.h.b16 %v354
  %v1847 = vunpack.c.l.b16 %v355
  %v1848 = vunpack.c.l.b16 %v356
  %v1849 = vunpack.c.h.b16 %v356
  %v1850 = vunpack.c.l.b16 %v357
  %v1851 = vunpack.c.h.b16 %v357
  %v1852 = vunpack.c.l.b16 %v358
  %v1853 = vunpack.c.h.b16 %v358
  %v1854 = vunpack.c.l.b16 %v359
  %v1855 = vunpack.c.l.b16 %v360
  %v1856 = vunpack.c.h.b16 %v360
  %v1857 = vunpack.c.l.b16 %v361
  %v1858 = vunpack.c.h.b16 %v361
  %v1859 = vunpack.c.l.b16 %v362
  %v1860 = vunpack.c.h.b16 %v362
  %v1861 = vunpack.c.l.b16 %v363
  %v1862 = vunpack.c.l.b16 %v364
  %v1863 = vunpack.c.h.b16 %v364
  %v1864 = vunpack.c.l.b16 %v365
  %v1865 = vunpack.c.h.b16 %v365
  %v1866 = vunpack.c.l.b16 %v366
  %v1867 = vunpack.c.h.b16 %v366
  %v1868 = vunpack.c.l.b16 %v367
  %v1869 = vunpack.c.l.b16 %v368
  %v1870 = vunpack.c.h.b16 %v368
  %v1871 = vunpack.c.l.b16 %v369
  %v1872 = vunpack.c.h.b16 %v369
  %v1873 = vunpack.c.l.b16 %v370
  %v1874 = vunpack.c.h.b16 %v370
  %v1875 = vunpack.c.l.b16 %v371
  %v1876 = vunpack.c.l.b16 %v372
  %v1877 = vunpack.c.h.b16 %v372
  %v1878 = vunpack.c.l.b16 %v373
  %v1879 = vunpack.c.h.b16 %v373
  %v1880 = vunpack.c.l.b16 %v374
  %v1881 = vunpack.c.h.b16 %v374
  %v1882 = vunpack.c.l.b16 %v375
  %v1883 = vunpack.c.l.b16 %v376
  %v1884 = vunpack.c.h.b16 %v376
  %v1885 = vunpack.c.l.b16 %v377
  %v1886 = vunpack.c.h.b16 %v377
  %v1887 = vunpack.c.l.b16 %v378
  %v1888 = vunpack.c.h.b16 %v378
  %v1889 = vunpack.c.l.b16 %v379
  %v1890 = vunpack.c.l.b16 %v380
  %v1891 = vunpack.c.h.b16 %v380
  %v1892 = vunpack.c.l.b16 %v381
  %v1893 = vunpack.c.h.b16 %v381
  %v1894 = vunpack.c.l.b16 %v382
  %v1895 = vunpack.c.h.b16 %v382
  %v1896 = vunpack.c.l.b16 %v383
  %v1897 = vunpack.c.l.b16 %v384
  %v1898 = vunpack.c.h.b16 %v384
  %v1899 = vunpack.c.l.b16 %v385
  %v1900 = vunpack.c.h.b16 %v385
  %v1901 = vunpack.c.l.b16 %v386
  %v1902 = vunpack.c.h.b16 %v386
  %v1903 = vunpack.c.l.b16 %v387
  %v1904 = vunpack.c.l.b16 %v388
  %v1905 = vunpack.c.h.b16 %v388
  %v1906 = vunpack.c.l.b16 %v389
  %v1907 = vunpack.c.h.b16 %v389
  %v1908 = vunpack.c.l.b16 %v390
  %v1909 = vunpack.c.h.b16 %v390
  %v1910 = vunpack.c.l.b16 %v391
  %v1911 = vunpack.c.l.b16 %v392
  %v1912 = vunpack.c.h.b16 %v392
  %v1913 = vunpack.c.l.b16 %v393
  %v1914 = vunpack.c.h.b16 %v393
  %v1915 = vunpack.c.l.b16 %v394
  %v1916 = vunpack.c.h.b16 %v394
  %v1917 = vunpack.c.l.b16 %v395
  %v1918 = vunpack.c.l.b16 %v396
  %v1919 = vunpack.c.h.b16 %v396
  %v1920 = vunpack.c.l.b16 %v397
  %v1921 = vunpack.c.h.b16 %v397
  %v1922 = vunpack.c.l.b16 %v398
  %v1923 = vunpack.c.h.b16 %v398
  %v1924 = vunpack.c.l.b16 %v399
  %v1925 = vunpack.c.l.b16 %v400
  %v1926 = vunpack.c.h.b16 %v400
  %v1927 = vunpack.c.l.b16 %v401
  %v1928 = vunpack.c.h.b16 %v401
  %v1929 = vunpack.c.l.b16 %v402
  %v1930 = vunpack.c.h.b16 %v402
  %v1931 = vunpack.c.l.b16 %v403
  %v1932 = vunpack.c.l.b16 %v404
  %v1933 = vunpack.c.h.b16 %v404
  %v1934 = vunpack.c.l.b16 %v405
  %v1935 = vunpack.c.h.b16 %v405
  %v1936 = vunpack.c.l.b16 %v406
  %v1937 = vunpack.c.h.b16 %v406
  %v1938 = vunpack.c.l.b16 %v407
  %v1939 = vunpack.c.l.b16 %v408
  %v1940 = vunpack.c.h.b16 %v408
  %v1941 = vunpack.c.l.b16 %v409
  %v1942 = vunpack.c.h.b16 %v409
  %v1943 = vunpack.c.l.b16 %v410
  %v1944 = vunpack.c.h.b16 %v410
  %v1945 = vunpack.c.l.b16 %v411
  %v1946 = vunpack.c.l.b16 %v412
  %v1947 = vunpack.c.h.b16 %v412
  %v1948 = vunpack.c.l.b16 %v413
  %v1949 = vunpack.c.h.b16 %v413
  %v1950 = vunpack.c.l.b16 %v414
  %v1951 = vunpack.c.h.b16 %v414
  %v1952 = vunpack.c.l.b16 %v415
  %v1953 = vunpack.c.l.b16 %v416
  %v1954 = vunpack.c.h.b16 %v416
  %v1955 = vunpack.c.l.b16 %v417
  %v1956 = vunpack.c.h.b16 %v417
  %v1957 = vunpack.c.l.b16 %v418
  %v1958 = vunpack.c.h.b16 %v418
  %v1959 = vunpack.c.l.b16 %v419
  %v1960 = vunpack.c.l.b16 %v420
  %v1961 = vunpack.c.h.b16 %v420
  %v1962 = vunpack.c.l.b16 %v421
  %v1963 = vunpack.c.h.b16 %v421
  %v1964 = vunpack.c.l.b16 %v422
  %v1965 = vunpack.c.h.b16 %v422
  %v1966 = vunpack.c.l.b16 %v423
  %v1967 = vunpack.c.l.b16 %v424
  %v1968 = vunpack.c.h.b16 %v424
  %v1969 = vunpack.c.l.b16 %v425
  %v1970 = vunpack.c.h.b16 %v425
  %v1971 = vunpack.c.l.b16 %v426
  %v1972 = vunpack.c.h.b16 %v426
  %v1973 = vunpack.c.l.b16 %v427
  %v1974 = vunpack.c.l.b16 %v428
  %v1975 = vunpack.c.h.b16 %v428
  %v1976 = vunpack.c.l.b16 %v429
  %v1977 = vunpack.c.h.b16 %v429
  %v1978 = vunpack.c.l.b16 %v430
  %v1979 = vunpack.c.h.b16 %v430
  %v1980 = vunpack.c.l.b16 %v431
  %v1981 = vunpack.c.l.b16 %v432
  %v1982 = vunpack.c.h.b16 %v432
  %v1983 = vunpack.c.l.b16 %v433
  %v1984 = vunpack.c.h.b16 %v433
  %v1985 = vunpack.c.l.b16 %v434
  %v1986 = vunpack.c.h.b16 %v434
  %v1987 = vunpack.c.l.b16 %v435
  %v1988 = vunpack.c.l.b16 %v436
  %v1989 = vunpack.c.h.b16 %v436
  %v1990 = vunpack.c.l.b16 %v437
  %v1991 = vunpack.c.h.b16 %v437
  %v1992 = vunpack.c.l.b16 %v438
  %v1993 = vunpack.c.h.b16 %v438
  %v1994 = vunpack.c.l.b16 %v439
  %v1995 = vunpack.c.l.b16 %v440
  %v1996 = vunpack.c.h.b16 %v440
  %v1997 = vunpack.c.l.b16 %v441
  %v1998 = vunpack.c.h.b16 %v441
  %v1999 = vunpack.c.l.b16 %v442
  %v2000 = vunpack.c.h.b16 %v442
  %v2001 = vunpack.c.l.b16 %v443
  %v2002 = vunpack.c.l.b16 %v444
  %v2003 = vunpack.c.h.b16 %v444
  %v2004 = vunpack.c.l.b16 %v445
  %v2005 = vunpack.c.h.b16 %v445
  %v2006 = vunpack.c.l.b16 %v446
  %v2007 = vunpack.c.h.b16 %v446
  %v2008 = vunpack.c.l.b16 %v447
  %v2009 = vunpack.c.l.b16 %v448
  %v2010 = vunpack.c.h.b16 %v448
  %v2011 = vunpack.c.l.b16 %v449
  %v2012 = vunpack.c.h.b16 %v449
  %v2013 = vunpack.c.l.b16 %v450
  %v2014 = vunpack.c.h.b16 %v450
  %v2015 = vunpack.c.l.b16 %v451
  %v2016 = vunpack.c.l.b16 %v452
  %v2017 = vunpack.c.h.b16 %v452
  %v2018 = vunpack.c.l.b16 %v453
  %v2019 = vunpack.c.h.b16 %v453
  %v2020 = vunpack.c.l.b16 %v454
  %v2021 = vunpack.c.h.b16 %v454
  %v2022 = vunpack.c.l.b16 %v455
  %v2023 = vunpack.c.l.b16 %v456
  %v2024 = vunpack.c.h.b16 %v456
  %v2025 = vunpack.c.l.b16 %v457
  %v2026 = vunpack.c.h.b16 %v457
  %v2027 = vunpack.c.l.b16 %v458
  %v2028 = vunpack.c.h.b16 %v458
  %v2029 = vunpack.c.l.b16 %v459
  %v2030 = vunpack.c.l.b16 %v460
  %v2031 = vunpack.c.h.b16 %v460
  %v2032 = vunpack.c.l.b16 %v461
  %v2033 = vunpack.c.h.b16 %v461
  %v2034 = vunpack.c.l.b16 %v462
  %v2035 = vunpack.c.h.b16 %v462
  %v2036 = vunpack.c.l.b16 %v463
  %v2037 = vunpack.c.l.b16 %v464
  %v2038 = vunpack.c.h.b16 %v464
  %v2039 = vunpack.c.l.b16 %v465
  %v2040 = vunpack.c.h.b16 %v465
  %v2041 = vunpack.c.l.b16 %v466
  %v2042 = vunpack.c.h.b16 %v466
  %v2043 = vunpack.c.l.b16 %v467
  %v2044 = vunpack.c.l.b16 %v468
  %v2045 = vunpack.c.h.b16 %v468
  %v2046 = vunpack.c.l.b16 %v469
  %v2047 = vunpack.c.h.b16 %v469
  %v2048 = vunpack.c.l.b16 %v470
  %v2049 = vunpack.c.h.b16 %v470
  %v2050 = vunpack.c.l.b16 %v471
  %v2051 = vunpack.c.l.b16 %v472
  %v2052 = vunpack.c.h.b16 %v472
  %v2053 = vunpack.c.l.b16 %v473
  %v2054 = vunpack.c.h.b16 %v473
  %v2055 = vunpack.c.l.b16 %v474
  %v2056 = vunpack.c.h.b16 %v474
  %v2057 = vunpack.c.l.b16 %v475
  %v2058 = vunpack.c.l.b16 %v476
  %v2059 = vunpack.c.h.b16 %v476
  %v2060 = vunpack.c.l.b16 %v477
  %v2061 = vunpack.c.h.b16 %v477
  %v2062 = vunpack.c.l.b16 %v478
  %v2063 = vunpack.c.h.b16 %v478
  %v2064 = vunpack.c.l.b16 %v479
  %v2065 = vunpack.c.l.b16 %v480
  %v2066 = vunpack.c.h.b16 %v480
  %v2067 = vunpack.c.l.b16 %v481
  %v2068 = vunpack.c.h.b16 %v481
  %v2069 = vunpack.c.l.b16 %v482
  %v2070 = vunpack.c.h.b16 %v482
  %v2071 = vunpack.c.l.b16 %v483
  %v2072 = vunpack.c.l.b16 %v484
  %v2073 = vunpack.c.h.b16 %v484
  %v2074 = vunpack.c.l.b16 %v485
  %v2075 = vunpack.c.h.b16 %v485
  %v2076 = vunpack.c.l.b16 %v486
  %v2077 = vunpack.c.h.b16 %v486
  %v2078 = vunpack.c.l.b16 %v487
  %v2079 = vunpack.c.l.b16 %v488
  %v2080 = vunpack.c.h.b16 %v488
  %v2081 = vunpack.c.l.b16 %v489
  %v2082 = vunpack.c.h.b16 %v489
  %v2083 = vunpack.c.l.b16 %v490
  %v2084 = vunpack.c.h.b16 %v490
  %v2085 = vunpack.c.l.b16 %v491
  %v2086 = vunpack.c.l.b16 %v492
  %v2087 = vunpack.c.h.b16 %v492
  %v2088 = vunpack.c.l.b16 %v493
  %v2089 = vunpack.c.h.b16 %v493
  %v2090 = vunpack.c.l.b16 %v494
  %v2091 = vunpack.c.h.b16 %v494
  %v2092 = vunpack.c.l.b16 %v495
  %v2093 = vunpack.c.l.b16 %v496
  %v2094 = vunpack.c.h.b16 %v496
  %v2095 = vunpack.c.l.b16 %v497
  %v2096 = vunpack.c.h.b16 %v497
  %v2097 = vunpack.c.l.b16 %v498
  %v2098 = vunpack.c.h.b16 %v498
  %v2099 = vunpack.c.l.b16 %v499
  %v2100 = vunpack.c.l.b16 %v500
  %v2101 = vunpack.c.h.b16 %v500
  %v2102 = vunpack.c.l.b16 %v501
  %v2103 = vunpack.c.h.b16 %v501
  %v2104 = vunpack.c.l.b16 %v502
  %v2105 = vunpack.c.h.b16 %v502
  %v2106 = vunpack.c.l.b16 %v503
  %v2107 = vunpack.c.l.b16 %v504
  %v2108 = vunpack.c.h.b16 %v504
  %v2109 = vunpack.c.l.b16 %v505
  %v2110 = vunpack.c.h.b16 %v505
  %v2111 = vunpack.c.l.b16 %v506
  %v2112 = vunpack.c.h.b16 %v506
  %v2113 = vunpack.c.l.b16 %v507
  %v2114 = vunpack.c.l.b16 %v508
  %v2115 = vunpack.c.h.b16 %v508
  %v2116 = vunpack.c.l.b16 %v509
  %v2117 = vunpack.c.h.b16 %v509
  %v2118 = vunpack.c.l.b16 %v510
  %v2119 = vunpack.c.h.b16 %v510
  %v2120 = vunpack.c.l.b16 %v511
  %v2121 = vunpack.c.l.b16 %v512
  %v2122 = vunpack.c.h.b16 %v512
  %v2123 = vunpack.c.l.b16 %v513
  %v2124 = vunpack.c.h.b16 %v513
  %v2125 = vunpack.c.l.b16 %v514
  %v2126 = vunpack.c.h.b16 %v514
  %v2127 = vunpack.c.l.b16 %v515
  %v2128 = vunpack.c.l.b16 %v516
  %v2129 = vunpack.c.h.b16 %v516
  %v2130 = vunpack.c.l.b16 %v517
  %v2131 = vunpack.c.h.b16 %v517
  %v2132 = vunpack.c.l.b16 %v518
  %v2133 = vunpack.c.h.b16 %v518
  %v2134 = vunpack.c.l.b16 %v519
  %v2135 = vunpack.c.l.b16 %v520
  %v2136 = vunpack.c.h.b16 %v520
  %v2137 = vunpack.c.l.b16 %v521
  %v2138 = vunpack.c.h.b16 %v521
  %v2139 = vunpack.c.l.b16 %v522
  %v2140 = vunpack.c.h.b16 %v522
  %v2141 = vunpack.c.l.b16 %v523
  %v2142 = vunpack.c.l.b16 %v524
  %v2143 = vunpack.c.h.b16 %v524
  %v2144 = vunpack.c.l.b16 %v525
  %v2145 = vunpack.c.h.b16 %v525
  %v2146 = vunpack.c.l.b16 %v526
  %v2147 = vunpack.c.h.b16 %v526
  %v2148 = vunpack.c.l.b16 %v527
  %v2149 = vunpack.c.l.b16 %v528
  %v2150 = vunpack.c.h.b16 %v528
  %v2151 = vunpack.c.l.b16 %v529
  %v2152 = vunpack.c.h.b16 %v529
  %v2153 = vunpack.c.l.b16 %v530
  %v2154 = vunpack.c.h.b16 %v530
  %v2155 = vunpack.c.l.b16 %v531
  %v2156 = vunpack.c.l.b16 %v532
  %v2157 = vunpack.c.h.b16 %v532
  %v2158 = vunpack.c.l.b16 %v533
  %v2159 = vunpack.c.h.b16 %v533
  %v2160 = vunpack.c.l.b16 %v534
  %v2161 = vunpack.c.h.b16 %v534
  %v2162 = vunpack.c.l.b16 %v535
  %v2163 = vunpack.c.l.b16 %v536
  %v2164 = vunpack.c.h.b16 %v536
  %v2165 = vunpack.c.l.b16 %v537
  %v2166 = vunpack.c.h.b16 %v537
  %v2167 = vunpack.c.l.b16 %v538
  %v2168 = vunpack.c.h.b16 %v538
  %v2169 = vunpack.c.l.b16 %v539
  %v2170 = vunpack.c.l.b16 %v540
  %v2171 = vunpack.c.h.b16 %v540
  %v2172 = vunpack.c.l.b16 %v541
  %v2173 = vunpack.c.h.b16 %v541
  %v2174 = vunpack.c.l.b16 %v542
  %v2175 = vunpack.c.h.b16 %v542
  %v2176 = vunpack.c.l.b16 %v543
  %v2177 = vunpack.c.l.b16 %v544
  %v2178 = vunpack.c.h.b16 %v544
  %v2179 = vunpack.c.l.b16 %v545
  %v2180 = vunpack.c.h.b16 %v545
  %v2181 = vunpack.c.l.b16 %v546
  %v2182 = vunpack.c.h.b16 %v546
  %v2183 = vunpack.c.l.b16 %v547
  %v2184 = vunpack.c.l.b16 %v548
  %v2185 = vunpack.c.h.b16 %v548
  %v2186 = vunpack.c.l.b16 %v549
  %v2187 = vunpack.c.h.b16 %v549
  %v2188 = vunpack.c.l.b16 %v550
  %v2189 = vunpack.c.h.b16 %v550
  %v2190 = vunpack.c.l.b16 %v551
  %v2191 = vunpack.c.l.b16 %v552
  %v2192 = vunpack.c.h.b16 %v552
  %v2193 = vunpack.c.l.b16 %v553
  %v2194 = vunpack.c.h.b16 %v553
  %v2195 = vunpack.c.l.b16 %v554
  %v2196 = vunpack.c.h.b16 %v554
  %v2197 = vunpack.c.l.b16 %v555
  %v2198 = vunpack.c.l.b16 %v556
  %v2199 = vunpack.c.h.b16 %v556
  %v2200 = vunpack.c.l.b16 %v557
  %v2201 = vunpack.c.h.b16 %v557
  %v2202 = vunpack.c.l.b16 %v558
  %v2203 = vunpack.c.h.b16 %v558
  %v2204 = vunpack.c.l.b16 %v559
  %v2205 = vunpack.c.l.b16 %v560
  %v2206 = vunpack.c.h.b16 %v560
  %v2207 = vunpack.c.l.b16 %v561
  %v2208 = vunpack.c.h.b16 %v561
  %v2209 = vunpack.c.l.b16 %v562
  %v2210 = vunpack.c.h.b16 %v562
  %v2211 = vunpack.c.l.b16 %v563
  %v2212 = vunpack.c.l.b16 %v564
  %v2213 = vunpack.c.h.b16 %v564
  %v2214 = vunpack.c.l.b16 %v565
  %v2215 = vunpack.c.h.b16 %v565
  %v2216 = vunpack.c.l.b16 %v566
  %v2217 = vunpack.c.h.b16 %v566
  %v2218 = vunpack.c.l.b16 %v567
  %v2219 = vunpack.c.l.b16 %v568
  %v2220 = vunpack.c.h.b16 %v568
  %v2221 = vunpack.c.l.b16 %v569
  %v2222 = vunpack.c.h.b16 %v569
  %v2223 = vunpack.c.l.b16 %v570
  %v2224 = vunpack.c.h.b16 %v570
  %v2225 = vunpack.c.l.b16 %v571
  %v2226 = vunpack.c.l.b16 %v572
  %v2227 = vunpack.c.h.b16 %v572
  %v2228 = vunpack.c.l.b16 %v573
  %v2229 = vunpack.c.h.b16 %v573
  %v2230 = vunpack.c.l.b16 %v574
  %v2231 = vunpack.c.h.b16 %v574
  %v2232 = vunpack.c.l.b16 %v575
  %v2233 = vunpack.c.l.b16 %v576
  %v2234 = vunpack.c.h.b16 %v576
  %v2235 = vunpack.c.l.b16 %v577
  %v2236 = vunpack.c.h.b16 %v577
  %v2237 = vunpack.c.l.b16 %v578
  %v2238 = vunpack.c.h.b16 %v578
  %v2239 = vunpack.c.l.b16 %v579
  %v2240 = vunpack.c.l.b16 %v580
  %v2241 = vunpack.c.h.b16 %v580
  %v2242 = vunpack.c.l.b16 %v581
  %v2243 = vunpack.c.h.b16 %v581
  %v2244 = vunpack.c.l.b16 %v582
  %v2245 = vunpack.c.h.b16 %v582
  %v2246 = vunpack.c.l.b16 %v583
  %v2247 = vunpack.c.l.b16 %v584
  %v2248 = vunpack.c.h.b16 %v584
  %v2249 = vunpack.c.l.b16 %v585
  %v2250 = vunpack.c.h.b16 %v585
  %v2251 = vunpack.c.l.b16 %v586
  %v2252 = vunpack.c.h.b16 %v586
  %v2253 = vunpack.c.l.b16 %v587
  %v2254 = vunpack.c.l.b16 %v588
  %v2255 = vunpack.c.h.b16 %v588
  %v2256 = vunpack.c.l.b16 %v589
  %v2257 = vunpack.c.h.b16 %v589
  %v2258 = vunpack.c.l.b16 %v590
  %v2259 = vunpack.c.h.b16 %v590
  %v2260 = vunpack.c.l.b16 %v591
  %v2261 = vunpack.c.l.b16 %v592
  %v2262 = vunpack.c.h.b16 %v592
  %v2263 = vunpack.c.l.b16 %v593
  %v2264 = vunpack.c.h.b16 %v593
  %v2265 = vunpack.c.l.b16 %v594
  %v2266 = vunpack.c.h.b16 %v594
  %v2267 = vunpack.c.l.b16 %v595
  %v2268 = vunpack.c.l.b16 %v596
  %v2269 = vunpack.c.h.b16 %v596
  %v2270 = vunpack.c.l.b16 %v597
  %v2271 = vunpack.c.h.b16 %v597
  %v2272 = vunpack.c.l.b16 %v598
  %v2273 = vunpack.c.h.b16 %v598
  %v2274 = vunpack.c.l.b16 %v599
  %v2275 = vunpack.c.l.b16 %v600
  %v2276 = vunpack.c.h.b16 %v600
  %v2277 = vunpack.c.l.b16 %v601
  %v2278 = vunpack.c.h.b16 %v601
  %v2279 = vunpack.c.l.b16 %v602
  %v2280 = vunpack.c.h.b16 %v602
  %v2281 = vunpack.c.l.b16 %v603
  %v2282 = vunpack.c.l.b16 %v604
  %v2283 = vunpack.c.h.b16 %v604
  %v2284 = vunpack.c.l.b16 %v605
  %v2285 = vunpack.c.h.b16 %v605
  %v2286 = vunpack.c.l.b16 %v606
  %v2287 = vunpack.c.h.b16 %v606
  %v2288 = vunpack.c.l.b16 %v607
  %v2289 = vunpack.c.l.b16 %v608
  %v2290 = vunpack.c.h.b16 %v608
  %v2291 = vunpack.c.l.b16 %v609
  %v2292 = vunpack.c.h.b16 %v609
  %v2293 = vunpack.c.l.b16 %v610
  %v2294 = vunpack.c.h.b16 %v610
  %v2295 = vunpack.c.l.b16 %v611
  %v2296 = vunpack.c.l.b16 %v612
  %v2297 = vunpack.c.h.b16 %v612
  %v2298 = vunpack.c.l.b16 %v613
  %v2299 = vunpack.c.h.b16 %v613
  %v2300 = vunpack.c.l.b16 %v614
  %v2301 = vunpack.c.h.b16 %v614
  %v2302 = vunpack.c.l.b16 %v615
  %v2303 = vunpack.c.l.b16 %v616
  %v2304 = vunpack.c.h.b16 %v616
  %v2305 = vunpack.c.l.b16 %v617
  %v2306 = vunpack.c.h.b16 %v617
  %v2307 = vunpack.c.l.b16 %v618
  %v2308 = vunpack.c.h.b16 %v618
  %v2309 = vunpack.c.l.b16 %v619
  %v2310 = vpack.c.b16 %v1267, %v1260
  %v2311 = vpack.c.b16 %v1268, %v1261
  %v2312 = vpack.c.b16 %v1269, %v1262
  %v2313 = vpack.c.b16 %v1270, %v1263
  %v2314 = vpack.c.b16 %v1271, %v1264
  %v2315 = vpack.c.b16 %v1272, %v1265
  %v2316 = vpack.c.b16 %v1273, %v1266
  %v2317 = vpack.c.b16 %v1281, %v1274
  %v2318 = vpack.c.b16 %v1282, %v1275
  %v2319 = vpack.c.b16 %v1283, %v1276
  %v2320 = vpack.c.b16 %v1284, %v1277
  %v2321 = vpack.c.b16 %v1285, %v1278
  %v2322 = vpack.c.b16 %v1286, %v1279
  %v2323 = vpack.c.b16 %v1287, %v1280
  %v2324 = vpack.c.b16 %v1295, %v1288
  %v2325 = vpack.c.b16 %v1296, %v1289
  %v2326 = vpack.c.b16 %v1297, %v1290
  %v2327 = vpack.c.b16 %v1298, %v1291
  %v2328 = vpack.c.b16 %v1299, %v1292
  %v2329 = vpack.c.b16 %v1300, %v1293
  %v2330 = vpack.c.b16 %v1301, %v1294
  %v2331 = vpack.c.b16 %v1309, %v1302
  %v2332 = vpack.c.b16 %v1310, %v1303
  %v2333 = vpack.c.b16 %v1311, %v1304
  %v2334 = vpack.c.b16 %v1312, %v1305
  %v2335 = vpack.c.b16 %v1313, %v1306
  %v2336 = vpack.c.b16 %v1314, %v1307
  %v2337 = vpack.c.b16 %v1315, %v1308
  %v2338 = vpack.c.b16 %v1323, %v1316
  %v2339 = vpack.c.b16 %v1324, %v1317
  %v2340 = vpack.c.b16 %v1325, %v1318
  %v2341 = vpack.c.b16 %v1326, %v1319
  %v2342 = vpack.c.b16 %v1327, %v1320
  %v2343 = vpack.c.b16 %v1328, %v1321
  %v2344 = vpack.c.b16 %v1329, %v1322
  %v2345 = vpack.c.b16 %v1337, %v1330
  %v2346 = vpack.c.b16 %v1338, %v1331
  %v2347 = vpack.c.b16 %v1339, %v1332
  %v2348 = vpack.c.b16 %v1340, %v1333
  %v2349 = vpack.c.b16 %v1341, %v1334
  %v2350 = vpack.c.b16 %v1342, %v1335
  %v2351 = vpack.c.b16 %v1343, %v1336
  %v2352 = vpack.c.b16 %v1351, %v1344
  %v2353 = vpack.c.b16 %v1352, %v1345
  %v2354 = vpack.c.b16 %v1353, %v1346
  %v2355 = vpack.c.b16 %v1354, %v1347
  %v2356 = vpack.c.b16 %v1355, %v1348
  %v2357 = vpack.c.b16 %v1356, %v1349
  %v2358 = vpack.c.b16 %v1357, %v1350
  %v2359 = vpack.c.b16 %v1365, %v1358
  %v2360 = vpack.c.b16 %v1366, %v1359
  %v2361 = vpack.c.b16 %v1367, %v1360
  %v2362 = vpack.c.b16 %v1368, %v1361
  %v2363 = vpack.c.b16 %v1369, %v1362
  %v2364 = vpack.c.b16 %v1370, %v1363
  %v2365 = vpack.c.b16 %v1371, %v1364
  %v2366 = vpack.c.b16 %v1379, %v1372
  %v2367 = vpack.c.b16 %v1380, %v1373
  %v2368 = vpack.c.b16 %v1381, %v1374
  %v2369 = vpack.c.b16 %v1382, %v1375
  %v2370 = vpack.c.b16 %v1383, %v1376
  %v2371 = vpack.c.b16 %v1384, %v1377
  %v2372 = vpack.c.b16 %v1385, %v1378
  %v2373 = vpack.c.b16 %v1393, %v1386
  %v2374 = vpack.c.b16 %v1394, %v1387
  %v2375 = vpack.c.b16 %v1395, %v1388
  %v2376 = vpack.c.b16 %v1396, %v1389
  %v2377 = vpack.c.b16 %v1397, %v1390
  %v2378 = vpack.c.b16 %v1398, %v1391
  %v2379 = vpack.c.b16 %v1399, %v1392
  %v2380 = vpack.c.b16 %v1407, %v1400
  %v2381 = vpack.c.b16 %v1408, %v1401
  %v2382 = vpack.c.b16 %v1409, %v1402
  %v2383 = vpack.c.b16 %v1410, %v1403
  %v2384 = vpack.c.b16 %v1411, %v1404
  %v2385 = vpack.c.b16 %v1412, %v1405
  %v2386 = vpack.c.b16 %v1413, %v1406
  %v2387 = vpack.c.b16 %v1421, %v1414
  %v2388 = vpack.c.b16 %v1422, %v1415
  %v2389 = vpack.c.b16 %v1423, %v1416
  %v2390 = vpack.c.b16 %v1424, %v1417
  %v2391 = vpack.c.b16 %v1425, %v1418
  %v2392 = vpack.c.b16 %v1426, %v1419
  %v2393 = vpack.c.b16 %v1427, %v1420
  %v2394 = vpack.c.b16 %v1435, %v1428
  %v2395 = vpack.c.b16 %v1436, %v1429
  %v2396 = vpack.c.b16 %v1437, %v1430
  %v2397 = vpack.c.b16 %v1438, %v1431
  %v2398 = vpack.c.b16 %v1439, %v1432
  %v2399 = vpack.c.b16 %v1440, %v1433
  %v2400 = vpack.c.b16 %v1441, %v1434
  %v2401 = vpack.c.b16 %v1449, %v1442
  %v2402 = vpack.c.b16 %v1450, %v1443
  %v2403 = vpack.c.b16 %v1451, %v1444
  %v2404 = vpack.c.b16 %v1452, %v1445
  %v2405 = vpack.c.b16 %v1453, %v1446
  %v2406 = vpack.c.b16 %v1454, %v1447
  %v2407 = vpack.c.b16 %v1455, %v1448
  %v2408 = vpack.c.b16 %v1463, %v1456
  %v2409 = vpack.c.b16 %v1464, %v1457
  %v2410 = vpack.c.b16 %v1465, %v1458
  %v2411 = vpack.c.b16 %v1466, %v1459
  %v2412 = vpack.c.b16 %v1467, %v1460
  %v2413 = vpack.c.b16 %v1468, %v1461
  %v2414 = vpack.c.b16 %v1469, %v1462
  %v2415 = vpack.c.b16 %v1477, %v1470
  %v2416 = vpack.c.b16 %v1478, %v1471
  %v2417 = vpack.c.b16 %v1479, %v1472
  %v2418 = vpack.c.b16 %v1480, %v1473
  %v2419 = vpack.c.b16 %v1481, %v1474
  %v2420 = vpack.c.b16 %v1482, %v1475
  %v2421 = vpack.c.b16 %v1483, %v1476
  %v2422 = vpack.c.b16 %v1491, %v1484
  %v2423 = vpack.c.b16 %v1492, %v1485
  %v2424 = vpack.c.b16 %v1493, %v1486
  %v2425 = vpack.c.b16 %v1494, %v1487
  %v2426 = vpack.c.b16 %v1495, %v1488
  %v2427 = vpack.c.b16 %v1496, %v1489
  %v2428 = vpack.c.b16 %v1497, %v1490
  %v2429 = vpack.c.b16 %v1505, %v1498
  %v2430 = vpack.c.b16 %v1506, %v1499
  %v2431 = vpack.c.b16 %v1507, %v1500
  %v2432 = vpack.c.b16 %v1508, %v1501
  %v2433 = vpack.c.b16 %v1509, %v1502
  %v2434 = vpack.c.b16 %v1510, %v1503
  %v2435 = vpack.c.b16 %v1511, %v1504
  %v2436 = vpack.c.b16 %v1519, %v1512
  %v2437 = vpack.c.b16 %v1520, %v1513
  %v2438 = vpack.c.b16 %v1521, %v1514
  %v2439 = vpack.c.b16 %v1522, %v1515
  %v2440 = vpack.c.b16 %v1523, %v1516
  %v2441 = vpack.c.b16 %v1524, %v1517
  %v2442 = vpack.c.b16 %v1525, %v1518
  %v2443 = vpack.c.b16 %v1533, %v1526
  %v2444 = vpack.c.b16 %v1534, %v1527
  %v2445 = vpack.c.b16 %v1535, %v1528
  %v2446 = vpack.c.b16 %v1536, %v1529
  %v2447 = vpack.c.b16 %v1537, %v1530
  %v2448 = vpack.c.b16 %v1538, %v1531
  %v2449 = vpack.c.b16 %v1539, %v1532
  %v2450 = vpack.c.b16 %v1547, %v1540
  %v2451 = vpack.c.b16 %v1548, %v1541
  %v2452 = vpack.c.b16 %v1549, %v1542
  %v2453 = vpack.c.b16 %v1550, %v1543
  %v2454 = vpack.c.b16 %v1551, %v1544
  %v2455 = vpack.c.b16 %v1552, %v1545
  %v2456 = vpack.c.b16 %v1553, %v1546
  %v2457 = vpack.c.b16 %v1561, %v1554
  %v2458 = vpack.c.b16 %v1562, %v1555
  %v2459 = vpack.c.b16 %v1563, %v1556
  %v2460 = vpack.c.b16 %v1564, %v1557
  %v2461 = vpack.c.b16 %v1565, %v1558
  %v2462 = vpack.c.b16 %v1566, %v1559
  %v2463 = vpack.c.b16 %v1567, %v1560
  %v2464 = vpack.c.b16 %v1575, %v1568
  %v2465 = vpack.c.b16 %v1576, %v1569
  %v2466 = vpack.c.b16 %v1577, %v1570
  %v2467 = vpack.c.b16 %v1578, %v1571
  %v2468 = vpack.c.b16 %v1579, %v1572
  %v2469 = vpack.c.b16 %v1580, %v1573
  %v2470 = vpack.c.b16 %v1581, %v1574
  %v2471 = vpack.c.b16 %v1589, %v1582
  %v2472 = vpack.c.b16 %v1590, %v1583
  %v2473 = vpack.c.b16 %v1591, %v1584
  %v2474 = vpack.c.b16 %v1592, %v1585
  %v2475 = vpack.c.b16 %v1593, %v1586
  %v2476 = vpack.c.b16 %v1594, %v1587
  %v2477 = vpack.c.b16 %v1595, %v1588
  %v2478 = vpack.c.b16 %v1603, %v1596
  %v2479 = vpack.c.b16 %v1604, %v1597
  %v2480 = vpack.c.b16 %v1605, %v1598
  %v2481 = vpack.c.b16 %v1606, %v1599
  %v2482 = vpack.c.b16 %v1607, %v1600
  %v2483 = vpack.c.b16 %v1608, %v1601
  %v2484 = vpack.c.b16 %v1609, %v1602
  %v2485 = vpack.c.b16 %v1617, %v1610
  %v2486 = vpack.c.b16 %v1618, %v1611
  %v2487 = vpack.c.b16 %v1619, %v1612
  %v2488 = vpack.c.b16 %v1620, %v1613
  %v2489 = vpack.c.b16 %v1621, %v1614
  %v2490 = vpack.c.b16 %v1622, %v1615
  %v2491 = vpack.c.b16 %v1623, %v1616
  %v2492 = vpack.c.b16 %v1631, %v1624
  %v2493 = vpack.c.b16 %v1632, %v1625
  %v2494 = vpack.c.b16 %v1633, %v1626
  %v2495 = vpack.c.b16 %v1634, %v1627
  %v2496 = vpack.c.b16 %v1635, %v1628
  %v2497 = vpack.c.b16 %v1636, %v1629
  %v2498 = vpack.c.b16 %v1637, %v1630
  %v2499 = vpack.c.b16 %v1645, %v1638
  %v2500 = vpack.c.b16 %v1646, %v1639
  %v2501 = vpack.c.b16 %v1647, %v1640
  %v2502 = vpack.c.b16 %v1648, %v1641
  %v2503 = vpack.c.b16 %v1649, %v1642
  %v2504 = vpack.c.b16 %v1650, %v1643
  %v2505 = vpack.c.b16 %v1651, %v1644
  %v2506 = vpack.c.b16 %v1659, %v1652
  %v2507 = vpack.c.b16 %v1660, %v1653
  %v2508 = vpack.c.b16 %v1661, %v1654
  %v2509 = vpack.c.b16 %v1662, %v1655
  %v2510 = vpack.c.b16 %v1663, %v1656
  %v2511 = vpack.c.b16 %v1664, %v1657
  %v2512 = vpack.c.b16 %v1665, %v1658
  %v2513 = vpack.c.b16 %v1673, %v1666
  %v2514 = vpack.c.b16 %v1674, %v1667
  %v2515 = vpack.c.b16 %v1675, %v1668
  %v2516 = vpack.c.b16 %v1676, %v1669
  %v2517 = vpack.c.b16 %v1677, %v1670
  %v2518 = vpack.c.b16 %v1678, %v1671
  %v2519 = vpack.c.b16 %v1679, %v1672
  %v2520 = vpack.c.b16 %v1687, %v1680
  %v2521 = vpack.c.b16 %v1688, %v1681
  %v2522 = vpack.c.b16 %v1689, %v1682
  %v2523 = vpack.c.b16 %v1690, %v1683
  %v2524 = vpack.c.b16 %v1691, %v1684
  %v2525 = vpack.c.b16 %v1692, %v1685
  %v2526 = vpack.c.b16 %v1693, %v1686
  %v2527 = vpack.c.b16 %v1701, %v1694
  %v2528 = vpack.c.b16 %v1702, %v1695
  %v2529 = vpack.c.b16 %v1703, %v1696
  %v2530 = vpack.c.b16 %v1704, %v1697
  %v2531 = vpack.c.b16 %v1705, %v1698
  %v2532 = vpack.c.b16 %v1706, %v1699
  %v2533 = vpack.c.b16 %v1707, %v1700
  %v2534 = vpack.c.b16 %v1715, %v1708
  %v2535 = vpack.c.b16 %v1716, %v1709
  %v2536 = vpack.c.b16 %v1717, %v1710
  %v2537 = vpack.c.b16 %v1718, %v1711
  %v2538 = vpack.c.b16 %v1719, %v1712
  %v2539 = vpack.c.b16 %v1720, %v1713
  %v2540 = vpack.c.b16 %v1721, %v1714
  %v2541 = vpack.c.b16 %v1729, %v1722
  %v2542 = vpack.c.b16 %v1730, %v1723
  %v2543 = vpack.c.b16 %v1731, %v1724
  %v2544 = vpack.c.b16 %v1732, %v1725
  %v2545 = vpack.c.b16 %v1733, %v1726
  %v2546 = vpack.c.b16 %v1734, %v1727
  %v2547 = vpack.c.b16 %v1735, %v1728
  %v2548 = vpack.c.b16 %v1743, %v1736
  %v2549 = vpack.c.b16 %v1744, %v1737
  %v2550 = vpack.c.b16 %v1745, %v1738
  %v2551 = vpack.c.b16 %v1746, %v1739
  %v2552 = vpack.c.b16 %v1747, %v1740
  %v2553 = vpack.c.b16 %v1748, %v1741
  %v2554 = vpack.c.b16 %v1749, %v1742
  %v2555 = vpack.c.b16 %v1757, %v1750
  %v2556 = vpack.c.b16 %v1758, %v1751
  %v2557 = vpack.c.b16 %v1759, %v1752
  %v2558 = vpack.c.b16 %v1760, %v1753
  %v2559 = vpack.c.b16 %v1761, %v1754
  %v2560 = vpack.c.b16 %v1762, %v1755
  %v2561 = vpack.c.b16 %v1763, %v1756
  %v2562 = vpack.c.b16 %v1771, %v1764
  %v2563 = vpack.c.b16 %v1772, %v1765
  %v2564 = vpack.c.b16 %v1773, %v1766
  %v2565 = vpack.c.b16 %v1774, %v1767
  %v2566 = vpack.c.b16 %v1775, %v1768
  %v2567 = vpack.c.b16 %v1776, %v1769
  %v2568 = vpack.c.b16 %v1777, %v1770
  %v2569 = vpack.c.b16 %v1785, %v1778
  %v2570 = vpack.c.b16 %v1786, %v1779
  %v2571 = vpack.c.b16 %v1787, %v1780
  %v2572 = vpack.c.b16 %v1788, %v1781
  %v2573 = vpack.c.b16 %v1789, %v1782
  %v2574 = vpack.c.b16 %v1790, %v1783
  %v2575 = vpack.c.b16 %v1791, %v1784
  %v2576 = vpack.c.b16 %v1799, %v1792
  %v2577 = vpack.c.b16 %v1800, %v1793
  %v2578 = vpack.c.b16 %v1801, %v1794
  %v2579 = vpack.c.b16 %v1802, %v1795
  %v2580 = vpack.c.b16 %v1803, %v1796
  %v2581 = vpack.c.b16 %v1804, %v1797
  %v2582 = vpack.c.b16 %v1805, %v1798
  %v2583 = vpack.c.b16 %v1813, %v1806
  %v2584 = vpack.c.b16 %v1814, %v1807
  %v2585 = vpack.c.b16 %v1815, %v1808
  %v2586 = vpack.c.b16 %v1816, %v1809
  %v2587 = vpack.c.b16 %v1817, %v1810
  %v2588 = vpack.c.b16 %v1818, %v1811
  %v2589 = vpack.c.b16 %v1819, %v1812
  %v2590 = vpack.c.b16 %v1827, %v1820
  %v2591 = vpack.c.b16 %v1828, %v1821
  %v2592 = vpack.c.b16 %v1829, %v1822
  %v2593 = vpack.c.b16 %v1830, %v1823
  %v2594 = vpack.c.b16 %v1831, %v1824
  %v2595 = vpack.c.b16 %v1832, %v1825
  %v2596 = vpack.c.b16 %v1833, %v1826
  %v2597 = vpack.c.b16 %v1841, %v1834
  %v2598 = vpack.c.b16 %v1842, %v1835
  %v2599 = vpack.c.b16 %v1843, %v1836
  %v2600 = vpack.c.b16 %v1844, %v1837
  %v2601 = vpack.c.b16 %v1845, %v1838
  %v2602 = vpack.c.b16 %v1846, %v1839
  %v2603 = vpack.c.b16 %v1847, %v1840
  %v2604 = vpack.c.b16 %v1855, %v1848
  %v2605 = vpack.c.b16 %v1856, %v1849
  %v2606 = vpack.c.b16 %v1857, %v1850
  %v2607 = vpack.c.b16 %v1858, %v1851
  %v2608 = vpack.c.b16 %v1859, %v1852
  %v2609 = vpack.c.b16 %v1860, %v1853
  %v2610 = vpack.c.b16 %v1861, %v1854
  %v2611 = vpack.c.b16 %v1869, %v1862
  %v2612 = vpack.c.b16 %v1870, %v1863
  %v2613 = vpack.c.b16 %v1871, %v1864
  %v2614 = vpack.c.b16 %v1872, %v1865
  %v2615 = vpack.c.b16 %v1873, %v1866
  %v2616 = vpack.c.b16 %v1874, %v1867
  %v2617 = vpack.c.b16 %v1875, %v1868
  %v2618 = vpack.c.b16 %v1883, %v1876
  %v2619 = vpack.c.b16 %v1884, %v1877
  %v2620 = vpack.c.b16 %v1885, %v1878
  %v2621 = vpack.c.b16 %v1886, %v1879
  %v2622 = vpack.c.b16 %v1887, %v1880
  %v2623 = vpack.c.b16 %v1888, %v1881
  %v2624 = vpack.c.b16 %v1889, %v1882
  %v2625 = vpack.c.b16 %v1897, %v1890
  %v2626 = vpack.c.b16 %v1898, %v1891
  %v2627 = vpack.c.b16 %v1899, %v1892
  %v2628 = vpack.c.b16 %v1900, %v1893
  %v2629 = vpack.c.b16 %v1901, %v1894
  %v2630 = vpack.c.b16 %v1902, %v1895
  %v2631 = vpack.c.b16 %v1903, %v1896
  %v2632 = vpack.c.b16 %v1911, %v1904
  %v2633 = vpack.c.b16 %v1912, %v1905
  %v2634 = vpack.c.b16 %v1913, %v1906
  %v2635 = vpack.c.b16 %v1914, %v1907
  %v2636 = vpack.c.b16 %v1915, %v1908
  %v2637 = vpack.c.b16 %v1916, %v1909
  %v2638 = vpack.c.b16 %v1917, %v1910
  %v2639 = vpack.c.b16 %v1925, %v1918
  %v2640 = vpack.c.b16 %v1926, %v1919
  %v2641 = vpack.c.b16 %v1927, %v1920
  %v2642 = vpack.c.b16 %v1928, %v1921
  %v2643 = vpack.c.b16 %v1929, %v1922
  %v2644 = vpack.c.b16 %v1930, %v1923
  %v2645 = vpack.c.b16 %v1931, %v1924
  %v2646 = vpack.c.b16 %v1939, %v1932
  %v2647 = vpack.c.b16 %v1940, %v1933
  %v2648 = vpack.c.b16 %v1941, %v1934
  %v2649 = vpack.c.b16 %v1942, %v1935
  %v2650 = vpack.c.b16 %v1943, %v1936
  %v2651 = vpack.c.b16 %v1944, %v1937
  %v2652 = vpack.c.b16 %v1945, %v1938
  %v2653 = vpack.c.b16 %v1953, %v1946
  %v2654 = vpack.c.b16 %v1954, %v1947
  %v2655 = vpack.c.b16 %v1955, %v1948
  %v2656 = vpack.c.b16 %v1956, %v1949
  %v2657 = vpack.c.b16 %v1957, %v1950
  %v2658 = vpack.c.b16 %v1958, %v1951
  %v2659 = vpack.c.b16 %v1959, %v1952
  %v2660 = vpack.c.b16 %v1967, %v1960
  %v2661 = vpack.c.b16 %v1968, %v1961
  %v2662 = vpack.c.b16 %v1969, %v1962
  %v2663 = vpack.c.b16 %v1970, %v1963
  %v2664 = vpack.c.b16 %v1971, %v1964
  %v2665 = vpack.c.b16 %v1972, %v1965
  %v2666 = vpack.c.b16 %v1973, %v1966
  %v2667 = vpack.c.b16 %v1981, %v1974
  %v2668 = vpack.c.b16 %v1982, %v1975
  %v2669 = vpack.c.b16 %v1983, %v1976
  %v2670 = vpack.c.b16 %v1984, %v1977
  %v2671 = vpack.c.b16 %v1985, %v1978
  %v2672 = vpack.c.b16 %v1986, %v1979
  %v2673 = vpack.c.b16 %v1987, %v1980
  %v2674 = vpack.c.b16 %v1995, %v1988
  %v2675 = vpack.c.b16 %v1996, %v1989
  %v2676 = vpack.c.b16 %v1997, %v1990
  %v2677 = vpack.c.b16 %v1998, %v1991
  %v2678 = vpack.c.b16 %v1999, %v1992
  %v2679 = vpack.c.b16 %v2000, %v1993
  %v2680 = vpack.c.b16 %v2001, %v1994
  %v2681 = vpack.c.b16 %v2009, %v2002
  %v2682 = vpack.c.b16 %v2010, %v2003
  %v2683 = vpack.c.b16 %v2011, %v2004
  %v2684 = vpack.c.b16 %v2012, %v2005
  %v2685 = vpack.c.b16 %v2013, %v2006
  %v2686 = vpack.c.b16 %v2014, %v2007
  %v2687 = vpack.c.b16 %v2015, %v2008
  %v2688 = vpack.c.b16 %v2023, %v2016
  %v2689 = vpack.c.b16 %v2024, %v2017
  %v2690 = vpack.c.b16 %v2025, %v2018
  %v2691 = vpack.c.b16 %v2026, %v2019
  %v2692 = vpack.c.b16 %v2027, %v2020
  %v2693 = vpack.c.b16 %v2028, %v2021
  %v2694 = vpack.c.b16 %v2029, %v2022
  %v2695 = vpack.c.b16 %v2037, %v2030
  %v2696 = vpack.c.b16 %v2038, %v2031
  %v2697 = vpack.c.b16 %v2039, %v2032
  %v2698 = vpack.c.b16 %v2040, %v2033
  %v2699 = vpack.c.b16 %v2041, %v2034
  %v2700 = vpack.c.b16 %v2042, %v2035
  %v2701 = vpack.c.b16 %v2043, %v2036
  %v2702 = vpack.c.b16 %v2051, %v2044
  %v2703 = vpack.c.b16 %v2052, %v2045
  %v2704 = vpack.c.b16 %v2053, %v2046
  %v2705 = vpack.c.b16 %v2054, %v2047
  %v2706 = vpack.c.b16 %v2055, %v2048
  %v2707 = vpack.c.b16 %v2056, %v2049
  %v2708 = vpack.c.b16 %v2057, %v2050
  %v2709 = vpack.c.b16 %v2065, %v2058
  %v2710 = vpack.c.b16 %v2066, %v2059
  %v2711 = vpack.c.b16 %v2067, %v2060
  %v2712 = vpack.c.b16 %v2068, %v2061
  %v2713 = vpack.c.b16 %v2069, %v2062
  %v2714 = vpack.c.b16 %v2070, %v2063
  %v2715 = vpack.c.b16 %v2071, %v2064
  %v2716 = vpack.c.b16 %v2079, %v2072
  %v2717 = vpack.c.b16 %v2080, %v2073
  %v2718 = vpack.c.b16 %v2081, %v2074
  %v2719 = vpack.c.b16 %v2082, %v2075
  %v2720 = vpack.c.b16 %v2083, %v2076
  %v2721 = vpack.c.b16 %v2084, %v2077
  %v2722 = vpack.c.b16 %v2085, %v2078
  %v2723 = vpack.c.b16 %v2093, %v2086
  %v2724 = vpack.c.b16 %v2094, %v2087
  %v2725 = vpack.c.b16 %v2095, %v2088
  %v2726 = vpack.c.b16 %v2096, %v2089
  %v2727 = vpack.c.b16 %v2097, %v2090
  %v2728 = vpack.c.b16 %v2098, %v2091
  %v2729 = vpack.c.b16 %v2099, %v2092
  %v2730 = vpack.c.b16 %v2107, %v2100
  %v2731 = vpack.c.b16 %v2108, %v2101
  %v2732 = vpack.c.b16 %v2109, %v2102
  %v2733 = vpack.c.b16 %v2110, %v2103
  %v2734 = vpack.c.b16 %v2111, %v2104
  %v2735 = vpack.c.b16 %v2112, %v2105
  %v2736 = vpack.c.b16 %v2113, %v2106
  %v2737 = vpack.c.b16 %v2121, %v2114
  %v2738 = vpack.c.b16 %v2122, %v2115
  %v2739 = vpack.c.b16 %v2123, %v2116
  %v2740 = vpack.c.b16 %v2124, %v2117
  %v2741 = vpack.c.b16 %v2125, %v2118
  %v2742 = vpack.c.b16 %v2126, %v2119
  %v2743 = vpack.c.b16 %v2127, %v2120
  %v2744 = vpack.c.b16 %v2135, %v2128
  %v2745 = vpack.c.b16 %v2136, %v2129
  %v2746 = vpack.c.b16 %v2137, %v2130
  %v2747 = vpack.c.b16 %v2138, %v2131
  %v2748 = vpack.c.b16 %v2139, %v2132
  %v2749 = vpack.c.b16 %v2140, %v2133
  %v2750 = vpack.c.b16 %v2141, %v2134
  %v2751 = vpack.c.b16 %v2149, %v2142
  %v2752 = vpack.c.b16 %v2150, %v2143
  %v2753 = vpack.c.b16 %v2151, %v2144
  %v2754 = vpack.c.b16 %v2152, %v2145
  %v2755 = vpack.c.b16 %v2153, %v2146
  %v2756 = vpack.c.b16 %v2154, %v2147
  %v2757 = vpack.c.b16 %v2155, %v2148
  %v2758 = vpack.c.b16 %v2163, %v2156
  %v2759 = vpack.c.b16 %v2164, %v2157
  %v2760 = vpack.c.b16 %v2165, %v2158
  %v2761 = vpack.c.b16 %v2166, %v2159
  %v2762 = vpack.c.b16 %v2167, %v2160
  %v2763 = vpack.c.b16 %v2168, %v2161
  %v2764 = vpack.c.b16 %v2169, %v2162
  %v2765 = vpack.c.b16 %v2177, %v2170
  %v2766 = vpack.c.b16 %v2178, %v2171
  %v2767 = vpack.c.b16 %v2179, %v2172
  %v2768 = vpack.c.b16 %v2180, %v2173
  %v2769 = vpack.c.b16 %v2181, %v2174
  %v2770 = vpack.c.b16 %v2182, %v2175
  %v2771 = vpack.c.b16 %v2183, %v2176
  %v2772 = vpack.c.b16 %v2191, %v2184
  %v2773 = vpack.c.b16 %v2192, %v2185
  %v2774 = vpack.c.b16 %v2193, %v2186
  %v2775 = vpack.c.b16 %v2194, %v2187
  %v2776 = vpack.c.b16 %v2195, %v2188
  %v2777 = vpack.c.b16 %v2196, %v2189
  %v2778 = vpack.c.b16 %v2197, %v2190
  %v2779 = vpack.c.b16 %v2205, %v2198
  %v2780 = vpack.c.b16 %v2206, %v2199
  %v2781 = vpack.c.b16 %v2207, %v2200
  %v2782 = vpack.c.b16 %v2208, %v2201
  %v2783 = vpack.c.b16 %v2209, %v2202
  %v2784 = vpack.c.b16 %v2210, %v2203
  %v2785 = vpack.c.b16 %v2211, %v2204
  %v2786 = vpack.c.b16 %v2219, %v2212
  %v2787 = vpack.c.b16 %v2220, %v2213
  %v2788 = vpack.c.b16 %v2221, %v2214
  %v2789 = vpack.c.b16 %v2222, %v2215
  %v2790 = vpack.c.b16 %v2223, %v2216
  %v2791 = vpack.c.b16 %v2224, %v2217
  %v2792 = vpack.c.b16 %v2225, %v2218
  %v2793 = vpack.c.b16 %v2233, %v2226
  %v2794 = vpack.c.b16 %v2234, %v2227
  %v2795 = vpack.c.b16 %v2235, %v2228
  %v2796 = vpack.c.b16 %v2236, %v2229
  %v2797 = vpack.c.b16 %v2237, %v2230
  %v2798 = vpack.c.b16 %v2238, %v2231
  %v2799 = vpack.c.b16 %v2239, %v2232
  %v2800 = vpack.c.b16 %v2247, %v2240
  %v2801 = vpack.c.b16 %v2248, %v2241
  %v2802 = vpack.c.b16 %v2249, %v2242
  %v2803 = vpack.c.b16 %v2250, %v2243
  %v2804 = vpack.c.b16 %v2251, %v2244
  %v2805 = vpack.c.b16 %v2252, %v2245
  %v2806 = vpack.c.b16 %v2253, %v2246
  %v2807 = vpack.c.b16 %v2261, %v2254
  %v2808 = vpack.c.b16 %v2262, %v2255
  %v2809 = vpack.c.b16 %v2263, %v2256
  %v2810 = vpack.c.b16 %v2264, %v2257
  %v2811 = vpack.c.b16 %v2265, %v2258
  %v2812 = vpack.c.b16 %v2266, %v2259
  %v2813 = vpack.c.b16 %v2267, %v2260
  %v2814 = vpack.c.b16 %v2275, %v2268
  %v2815 = vpack.c.b16 %v2276, %v2269
  %v2816 = vpack.c.b16 %v2277, %v2270
  %v2817 = vpack.c.b16 %v2278, %v2271
  %v2818 = vpack.c.b16 %v2279, %v2272
  %v2819 = vpack.c.b16 %v2280, %v2273
  %v2820 = vpack.c.b16 %v2281, %v2274
  %v2821 = vpack.c.b16 %v2289, %v2282
  %v2822 = vpack.c.b16 %v2290, %v2283
  %v2823 = vpack.c.b16 %v2291, %v2284
  %v2824 = vpack.c.b16 %v2292, %v2285
  %v2825 = vpack.c.b16 %v2293, %v2286
  %v2826 = vpack.c.b16 %v2294, %v2287
  %v2827 = vpack.c.b16 %v2295, %v2288
  %v2828 = vpack.c.b16 %v2303, %v2296
  %v2829 = vpack.c.b16 %v2304, %v2297
  %v2830 = vpack.c.b16 %v2305, %v2298
  %v2831 = vpack.c.b16 %v2306, %v2299
  %v2832 = vpack.c.b16 %v2307, %v2300
  %v2833 = vpack.c.b16 %v2308, %v2301
  %v2834 = vpack.c.b16 %v2309, %v2302
  %vm3360 = vcmask 392192
  %v3362 = vsel %vm3360, %v650, 0
  %3364 = vmatpush.bf16.msra.mxu0 %v2359
  %3365 = vmatpush.bf16.msra.mxu0 %v2352
  %3366 = vmatpush.bf16.msra.mxu0 %v2345
  %3367 = vmatpush.bf16.msra.mxu0 %v2338
  %3368 = vmatpush.bf16.msra.mxu0 %v2331
  %3369 = vmatpush.bf16.msra.mxu0 %v2324
  %3370 = vmatpush.bf16.msra.mxu0 %v2317
  %3371 = vmatpush.bf16.msra.mxu0 %v2310
  %3372 = vmatmul.bf16.gmra.mxu0 %v641
  %v3373 = vpop.f32.mrf.mxu0
  %v3374 = vadd.f32 %v624, %v3373
  %v3375 = vpop.f32.mrf.mxu0
  %3376 = vdwg.mxu0
  %3377 = vmatpush.bf16.msra.mxu0 %v2415
  %3378 = vmatpush.bf16.msra.mxu0 %v2408
  %3379 = vmatpush.bf16.msra.mxu0 %v2401
  %3380 = vmatpush.bf16.msra.mxu0 %v2394
  %3381 = vmatpush.bf16.msra.mxu0 %v2387
  %3382 = vmatpush.bf16.msra.mxu0 %v2380
  %3383 = vmatpush.bf16.msra.mxu0 %v2373
  %3384 = vmatpush.bf16.msra.mxu0 %v2366
  %3385 = vmatmul.bf16.gmra.mxu0 %v642
  %v3386 = vpop.f32.mrf.mxu0
  %v3387 = vadd.f32 %v3374, %v3386
  %v3388 = vpop.f32.mrf.mxu0
  %3389 = vdwg.mxu0
  %3390 = vmatpush.bf16.msra.mxu0 %v2471
  %3391 = vmatpush.bf16.msra.mxu0 %v2464
  %3392 = vmatpush.bf16.msra.mxu0 %v2457
  %3393 = vmatpush.bf16.msra.mxu0 %v2450
  %3394 = vmatpush.bf16.msra.mxu0 %v2443
  %3395 = vmatpush.bf16.msra.mxu0 %v2436
  %3396 = vmatpush.bf16.msra.mxu0 %v2429
  %3397 = vmatpush.bf16.msra.mxu0 %v2422
  %3398 = vmatmul.bf16.gmra.mxu0 %v643
  %v3399 = vpop.f32.mrf.mxu0
  %v3400 = vadd.f32 %v3387, %v3399
  %v3401 = vpop.f32.mrf.mxu0
  %3402 = vdwg.mxu0
  %3403 = vmatpush.bf16.msra.mxu0 %v2527
  %3404 = vmatpush.bf16.msra.mxu0 %v2520
  %3405 = vmatpush.bf16.msra.mxu0 %v2513
  %3406 = vmatpush.bf16.msra.mxu0 %v2506
  %3407 = vmatpush.bf16.msra.mxu0 %v2499
  %3408 = vmatpush.bf16.msra.mxu0 %v2492
  %3409 = vmatpush.bf16.msra.mxu0 %v2485
  %3410 = vmatpush.bf16.msra.mxu0 %v2478
  %3411 = vmatmul.bf16.gmra.mxu0 %v644
  %v3412 = vpop.f32.mrf.mxu0
  %v3413 = vadd.f32 %v3400, %v3412
  %v3414 = vpop.f32.mrf.mxu0
  %3415 = vdwg.mxu0
  %3416 = vmatpush.bf16.msra.mxu0 %v2583
  %3417 = vmatpush.bf16.msra.mxu0 %v2576
  %3418 = vmatpush.bf16.msra.mxu0 %v2569
  %3419 = vmatpush.bf16.msra.mxu0 %v2562
  %3420 = vmatpush.bf16.msra.mxu0 %v2555
  %3421 = vmatpush.bf16.msra.mxu0 %v2548
  %3422 = vmatpush.bf16.msra.mxu0 %v2541
  %3423 = vmatpush.bf16.msra.mxu0 %v2534
  %3424 = vmatmul.bf16.gmra.mxu0 %v645
  %v3425 = vpop.f32.mrf.mxu0
  %v3426 = vadd.f32 %v3413, %v3425
  %v3427 = vpop.f32.mrf.mxu0
  %3428 = vdwg.mxu0
  %3429 = vmatpush.bf16.msra.mxu0 %v2639
  %3430 = vmatpush.bf16.msra.mxu0 %v2632
  %3431 = vmatpush.bf16.msra.mxu0 %v2625
  %3432 = vmatpush.bf16.msra.mxu0 %v2618
  %3433 = vmatpush.bf16.msra.mxu0 %v2611
  %3434 = vmatpush.bf16.msra.mxu0 %v2604
  %3435 = vmatpush.bf16.msra.mxu0 %v2597
  %3436 = vmatpush.bf16.msra.mxu0 %v2590
  %3437 = vmatmul.bf16.gmra.mxu0 %v646
  %v3438 = vpop.f32.mrf.mxu0
  %v3439 = vadd.f32 %v3426, %v3438
  %v3440 = vpop.f32.mrf.mxu0
  %3441 = vdwg.mxu0
  %3442 = vmatpush.bf16.msra.mxu0 %v2695
  %3443 = vmatpush.bf16.msra.mxu0 %v2688
  %3444 = vmatpush.bf16.msra.mxu0 %v2681
  %3445 = vmatpush.bf16.msra.mxu0 %v2674
  %3446 = vmatpush.bf16.msra.mxu0 %v2667
  %3447 = vmatpush.bf16.msra.mxu0 %v2660
  %3448 = vmatpush.bf16.msra.mxu0 %v2653
  %3449 = vmatpush.bf16.msra.mxu0 %v2646
  %3450 = vmatmul.bf16.gmra.mxu0 %v647
  %v3451 = vpop.f32.mrf.mxu0
  %v3452 = vadd.f32 %v3439, %v3451
  %v3453 = vpop.f32.mrf.mxu0
  %3454 = vdwg.mxu0
  %3455 = vmatpush.bf16.msra.mxu0 %v2751
  %3456 = vmatpush.bf16.msra.mxu0 %v2744
  %3457 = vmatpush.bf16.msra.mxu0 %v2737
  %3458 = vmatpush.bf16.msra.mxu0 %v2730
  %3459 = vmatpush.bf16.msra.mxu0 %v2723
  %3460 = vmatpush.bf16.msra.mxu0 %v2716
  %3461 = vmatpush.bf16.msra.mxu0 %v2709
  %3462 = vmatpush.bf16.msra.mxu0 %v2702
  %3463 = vmatmul.bf16.gmra.mxu0 %v648
  %v3464 = vpop.f32.mrf.mxu0
  %v3465 = vadd.f32 %v3452, %v3464
  %v3466 = vpop.f32.mrf.mxu0
  %3467 = vdwg.mxu0
  %3468 = vmatpush.bf16.msra.mxu0 %v2807
  %3469 = vmatpush.bf16.msra.mxu0 %v2800
  %3470 = vmatpush.bf16.msra.mxu0 %v2793
  %3471 = vmatpush.bf16.msra.mxu0 %v2786
  %3472 = vmatpush.bf16.msra.mxu0 %v2779
  %3473 = vmatpush.bf16.msra.mxu0 %v2772
  %3474 = vmatpush.bf16.msra.mxu0 %v2765
  %3475 = vmatpush.bf16.msra.mxu0 %v2758
  %3476 = vmatmul.bf16.gmra.mxu0 %v649
  %v3477 = vpop.f32.mrf.mxu0
  %v3478 = vadd.f32 %v3465, %v3477
  %v3479 = vpop.f32.mrf.mxu0
  %3480 = vdwg.mxu0
  %3481 = vmatpush.bf16.msra.mxu0 0
  %3482 = vmatpush.bf16.msra.mxu0 0
  %3483 = vmatpush.bf16.msra.mxu0 0
  %3484 = vmatpush.bf16.msra.mxu0 0
  %3485 = vmatpush.bf16.msra.mxu0 0
  %3486 = vmatpush.bf16.msra.mxu0 %v2828
  %3487 = vmatpush.bf16.msra.mxu0 %v2821
  %3488 = vmatpush.bf16.msra.mxu0 %v2814
  %3489 = vmatmul.bf16.gmra.mxu0 %v3362
  %v3490 = vpop.f32.mrf.mxu0
  %v3491 = vadd.f32 %v3478, %v3490
  %v3492 = vpop.f32.mrf.mxu0
  %3493 = vdwg.mxu0
  %3494 = vmatpush.bf16.msra.mxu0 %v2360
  %3495 = vmatpush.bf16.msra.mxu0 %v2353
  %3496 = vmatpush.bf16.msra.mxu0 %v2346
  %3497 = vmatpush.bf16.msra.mxu0 %v2339
  %3498 = vmatpush.bf16.msra.mxu0 %v2332
  %3499 = vmatpush.bf16.msra.mxu0 %v2325
  %3500 = vmatpush.bf16.msra.mxu0 %v2318
  %3501 = vmatpush.bf16.msra.mxu0 %v2311
  %3502 = vmatmul.bf16.gmra.mxu0 %v641
  %v3503 = vpop.f32.mrf.mxu0
  %v3504 = vadd.f32 %v624, %v3503
  %v3505 = vpop.f32.mrf.mxu0
  %3506 = vdwg.mxu0
  %3507 = vmatpush.bf16.msra.mxu0 %v2416
  %3508 = vmatpush.bf16.msra.mxu0 %v2409
  %3509 = vmatpush.bf16.msra.mxu0 %v2402
  %3510 = vmatpush.bf16.msra.mxu0 %v2395
  %3511 = vmatpush.bf16.msra.mxu0 %v2388
  %3512 = vmatpush.bf16.msra.mxu0 %v2381
  %3513 = vmatpush.bf16.msra.mxu0 %v2374
  %3514 = vmatpush.bf16.msra.mxu0 %v2367
  %3515 = vmatmul.bf16.gmra.mxu0 %v642
  %v3516 = vpop.f32.mrf.mxu0
  %v3517 = vadd.f32 %v3504, %v3516
  %v3518 = vpop.f32.mrf.mxu0
  %3519 = vdwg.mxu0
  %3520 = vmatpush.bf16.msra.mxu0 %v2472
  %3521 = vmatpush.bf16.msra.mxu0 %v2465
  %3522 = vmatpush.bf16.msra.mxu0 %v2458
  %3523 = vmatpush.bf16.msra.mxu0 %v2451
  %3524 = vmatpush.bf16.msra.mxu0 %v2444
  %3525 = vmatpush.bf16.msra.mxu0 %v2437
  %3526 = vmatpush.bf16.msra.mxu0 %v2430
  %3527 = vmatpush.bf16.msra.mxu0 %v2423
  %3528 = vmatmul.bf16.gmra.mxu0 %v643
  %v3529 = vpop.f32.mrf.mxu0
  %v3530 = vadd.f32 %v3517, %v3529
  %v3531 = vpop.f32.mrf.mxu0
  %3532 = vdwg.mxu0
  %3533 = vmatpush.bf16.msra.mxu0 %v2528
  %3534 = vmatpush.bf16.msra.mxu0 %v2521
  %3535 = vmatpush.bf16.msra.mxu0 %v2514
  %3536 = vmatpush.bf16.msra.mxu0 %v2507
  %3537 = vmatpush.bf16.msra.mxu0 %v2500
  %3538 = vmatpush.bf16.msra.mxu0 %v2493
  %3539 = vmatpush.bf16.msra.mxu0 %v2486
  %3540 = vmatpush.bf16.msra.mxu0 %v2479
  %3541 = vmatmul.bf16.gmra.mxu0 %v644
  %v3542 = vpop.f32.mrf.mxu0
  %v3543 = vadd.f32 %v3530, %v3542
  %v3544 = vpop.f32.mrf.mxu0
  %3545 = vdwg.mxu0
  %3546 = vmatpush.bf16.msra.mxu0 %v2584
  %3547 = vmatpush.bf16.msra.mxu0 %v2577
  %3548 = vmatpush.bf16.msra.mxu0 %v2570
  %3549 = vmatpush.bf16.msra.mxu0 %v2563
  %3550 = vmatpush.bf16.msra.mxu0 %v2556
  %3551 = vmatpush.bf16.msra.mxu0 %v2549
  %3552 = vmatpush.bf16.msra.mxu0 %v2542
  %3553 = vmatpush.bf16.msra.mxu0 %v2535
  %3554 = vmatmul.bf16.gmra.mxu0 %v645
  %v3555 = vpop.f32.mrf.mxu0
  %v3556 = vadd.f32 %v3543, %v3555
  %v3557 = vpop.f32.mrf.mxu0
  %3558 = vdwg.mxu0
  %3559 = vmatpush.bf16.msra.mxu0 %v2640
  %3560 = vmatpush.bf16.msra.mxu0 %v2633
  %3561 = vmatpush.bf16.msra.mxu0 %v2626
  %3562 = vmatpush.bf16.msra.mxu0 %v2619
  %3563 = vmatpush.bf16.msra.mxu0 %v2612
  %3564 = vmatpush.bf16.msra.mxu0 %v2605
  %3565 = vmatpush.bf16.msra.mxu0 %v2598
  %3566 = vmatpush.bf16.msra.mxu0 %v2591
  %3567 = vmatmul.bf16.gmra.mxu0 %v646
  %v3568 = vpop.f32.mrf.mxu0
  %v3569 = vadd.f32 %v3556, %v3568
  %v3570 = vpop.f32.mrf.mxu0
  %3571 = vdwg.mxu0
  %3572 = vmatpush.bf16.msra.mxu0 %v2696
  %3573 = vmatpush.bf16.msra.mxu0 %v2689
  %3574 = vmatpush.bf16.msra.mxu0 %v2682
  %3575 = vmatpush.bf16.msra.mxu0 %v2675
  %3576 = vmatpush.bf16.msra.mxu0 %v2668
  %3577 = vmatpush.bf16.msra.mxu0 %v2661
  %3578 = vmatpush.bf16.msra.mxu0 %v2654
  %3579 = vmatpush.bf16.msra.mxu0 %v2647
  %3580 = vmatmul.bf16.gmra.mxu0 %v647
  %v3581 = vpop.f32.mrf.mxu0
  %v3582 = vadd.f32 %v3569, %v3581
  %v3583 = vpop.f32.mrf.mxu0
  %3584 = vdwg.mxu0
  %3585 = vmatpush.bf16.msra.mxu0 %v2752
  %3586 = vmatpush.bf16.msra.mxu0 %v2745
  %3587 = vmatpush.bf16.msra.mxu0 %v2738
  %3588 = vmatpush.bf16.msra.mxu0 %v2731
  %3589 = vmatpush.bf16.msra.mxu0 %v2724
  %3590 = vmatpush.bf16.msra.mxu0 %v2717
  %3591 = vmatpush.bf16.msra.mxu0 %v2710
  %3592 = vmatpush.bf16.msra.mxu0 %v2703
  %3593 = vmatmul.bf16.gmra.mxu0 %v648
  %v3594 = vpop.f32.mrf.mxu0
  %v3595 = vadd.f32 %v3582, %v3594
  %v3596 = vpop.f32.mrf.mxu0
  %3597 = vdwg.mxu0
  %3598 = vmatpush.bf16.msra.mxu0 %v2808
  %3599 = vmatpush.bf16.msra.mxu0 %v2801
  %3600 = vmatpush.bf16.msra.mxu0 %v2794
  %3601 = vmatpush.bf16.msra.mxu0 %v2787
  %3602 = vmatpush.bf16.msra.mxu0 %v2780
  %3603 = vmatpush.bf16.msra.mxu0 %v2773
  %3604 = vmatpush.bf16.msra.mxu0 %v2766
  %3605 = vmatpush.bf16.msra.mxu0 %v2759
  %3606 = vmatmul.bf16.gmra.mxu0 %v649
  %v3607 = vpop.f32.mrf.mxu0
  %v3608 = vadd.f32 %v3595, %v3607
  %v3609 = vpop.f32.mrf.mxu0
  %3610 = vdwg.mxu0
  %3611 = vmatpush.bf16.msra.mxu0 0
  %3612 = vmatpush.bf16.msra.mxu0 0
  %3613 = vmatpush.bf16.msra.mxu0 0
  %3614 = vmatpush.bf16.msra.mxu0 0
  %3615 = vmatpush.bf16.msra.mxu0 0
  %3616 = vmatpush.bf16.msra.mxu0 %v2829
  %3617 = vmatpush.bf16.msra.mxu0 %v2822
  %3618 = vmatpush.bf16.msra.mxu0 %v2815
  %3619 = vmatmul.bf16.gmra.mxu0 %v3362
  %v3620 = vpop.f32.mrf.mxu0
  %v3621 = vadd.f32 %v3608, %v3620
  %v3622 = vpop.f32.mrf.mxu0
  %3623 = vdwg.mxu0
  %3624 = vmatpush.bf16.msra.mxu0 %v2361
  %3625 = vmatpush.bf16.msra.mxu0 %v2354
  %3626 = vmatpush.bf16.msra.mxu0 %v2347
  %3627 = vmatpush.bf16.msra.mxu0 %v2340
  %3628 = vmatpush.bf16.msra.mxu0 %v2333
  %3629 = vmatpush.bf16.msra.mxu0 %v2326
  %3630 = vmatpush.bf16.msra.mxu0 %v2319
  %3631 = vmatpush.bf16.msra.mxu0 %v2312
  %3632 = vmatmul.bf16.gmra.mxu0 %v641
  %v3633 = vpop.f32.mrf.mxu0
  %v3634 = vadd.f32 %v624, %v3633
  %v3635 = vpop.f32.mrf.mxu0
  %3636 = vdwg.mxu0
  %3637 = vmatpush.bf16.msra.mxu0 %v2417
  %3638 = vmatpush.bf16.msra.mxu0 %v2410
  %3639 = vmatpush.bf16.msra.mxu0 %v2403
  %3640 = vmatpush.bf16.msra.mxu0 %v2396
  %3641 = vmatpush.bf16.msra.mxu0 %v2389
  %3642 = vmatpush.bf16.msra.mxu0 %v2382
  %3643 = vmatpush.bf16.msra.mxu0 %v2375
  %3644 = vmatpush.bf16.msra.mxu0 %v2368
  %3645 = vmatmul.bf16.gmra.mxu0 %v642
  %v3646 = vpop.f32.mrf.mxu0
  %v3647 = vadd.f32 %v3634, %v3646
  %v3648 = vpop.f32.mrf.mxu0
  %3649 = vdwg.mxu0
  %3650 = vmatpush.bf16.msra.mxu0 %v2473
  %3651 = vmatpush.bf16.msra.mxu0 %v2466
  %3652 = vmatpush.bf16.msra.mxu0 %v2459
  %3653 = vmatpush.bf16.msra.mxu0 %v2452
  %3654 = vmatpush.bf16.msra.mxu0 %v2445
  %3655 = vmatpush.bf16.msra.mxu0 %v2438
  %3656 = vmatpush.bf16.msra.mxu0 %v2431
  %3657 = vmatpush.bf16.msra.mxu0 %v2424
  %3658 = vmatmul.bf16.gmra.mxu0 %v643
  %v3659 = vpop.f32.mrf.mxu0
  %v3660 = vadd.f32 %v3647, %v3659
  %v3661 = vpop.f32.mrf.mxu0
  %3662 = vdwg.mxu0
  %3663 = vmatpush.bf16.msra.mxu0 %v2529
  %3664 = vmatpush.bf16.msra.mxu0 %v2522
  %3665 = vmatpush.bf16.msra.mxu0 %v2515
  %3666 = vmatpush.bf16.msra.mxu0 %v2508
  %3667 = vmatpush.bf16.msra.mxu0 %v2501
  %3668 = vmatpush.bf16.msra.mxu0 %v2494
  %3669 = vmatpush.bf16.msra.mxu0 %v2487
  %3670 = vmatpush.bf16.msra.mxu0 %v2480
  %3671 = vmatmul.bf16.gmra.mxu0 %v644
  %v3672 = vpop.f32.mrf.mxu0
  %v3673 = vadd.f32 %v3660, %v3672
  %v3674 = vpop.f32.mrf.mxu0
  %3675 = vdwg.mxu0
  %3676 = vmatpush.bf16.msra.mxu0 %v2585
  %3677 = vmatpush.bf16.msra.mxu0 %v2578
  %3678 = vmatpush.bf16.msra.mxu0 %v2571
  %3679 = vmatpush.bf16.msra.mxu0 %v2564
  %3680 = vmatpush.bf16.msra.mxu0 %v2557
  %3681 = vmatpush.bf16.msra.mxu0 %v2550
  %3682 = vmatpush.bf16.msra.mxu0 %v2543
  %3683 = vmatpush.bf16.msra.mxu0 %v2536
  %3684 = vmatmul.bf16.gmra.mxu0 %v645
  %v3685 = vpop.f32.mrf.mxu0
  %v3686 = vadd.f32 %v3673, %v3685
  %v3687 = vpop.f32.mrf.mxu0
  %3688 = vdwg.mxu0
  %3689 = vmatpush.bf16.msra.mxu0 %v2641
  %3690 = vmatpush.bf16.msra.mxu0 %v2634
  %3691 = vmatpush.bf16.msra.mxu0 %v2627
  %3692 = vmatpush.bf16.msra.mxu0 %v2620
  %3693 = vmatpush.bf16.msra.mxu0 %v2613
  %3694 = vmatpush.bf16.msra.mxu0 %v2606
  %3695 = vmatpush.bf16.msra.mxu0 %v2599
  %3696 = vmatpush.bf16.msra.mxu0 %v2592
  %3697 = vmatmul.bf16.gmra.mxu0 %v646
  %v3698 = vpop.f32.mrf.mxu0
  %v3699 = vadd.f32 %v3686, %v3698
  %v3700 = vpop.f32.mrf.mxu0
  %3701 = vdwg.mxu0
  %3702 = vmatpush.bf16.msra.mxu0 %v2697
  %3703 = vmatpush.bf16.msra.mxu0 %v2690
  %3704 = vmatpush.bf16.msra.mxu0 %v2683
  %3705 = vmatpush.bf16.msra.mxu0 %v2676
  %3706 = vmatpush.bf16.msra.mxu0 %v2669
  %3707 = vmatpush.bf16.msra.mxu0 %v2662
  %3708 = vmatpush.bf16.msra.mxu0 %v2655
  %3709 = vmatpush.bf16.msra.mxu0 %v2648
  %3710 = vmatmul.bf16.gmra.mxu0 %v647
  %v3711 = vpop.f32.mrf.mxu0
  %v3712 = vadd.f32 %v3699, %v3711
  %v3713 = vpop.f32.mrf.mxu0
  %3714 = vdwg.mxu0
  %3715 = vmatpush.bf16.msra.mxu0 %v2753
  %3716 = vmatpush.bf16.msra.mxu0 %v2746
  %3717 = vmatpush.bf16.msra.mxu0 %v2739
  %3718 = vmatpush.bf16.msra.mxu0 %v2732
  %3719 = vmatpush.bf16.msra.mxu0 %v2725
  %3720 = vmatpush.bf16.msra.mxu0 %v2718
  %3721 = vmatpush.bf16.msra.mxu0 %v2711
  %3722 = vmatpush.bf16.msra.mxu0 %v2704
  %3723 = vmatmul.bf16.gmra.mxu0 %v648
  %v3724 = vpop.f32.mrf.mxu0
  %v3725 = vadd.f32 %v3712, %v3724
  %v3726 = vpop.f32.mrf.mxu0
  %3727 = vdwg.mxu0
  %3728 = vmatpush.bf16.msra.mxu0 %v2809
  %3729 = vmatpush.bf16.msra.mxu0 %v2802
  %3730 = vmatpush.bf16.msra.mxu0 %v2795
  %3731 = vmatpush.bf16.msra.mxu0 %v2788
  %3732 = vmatpush.bf16.msra.mxu0 %v2781
  %3733 = vmatpush.bf16.msra.mxu0 %v2774
  %3734 = vmatpush.bf16.msra.mxu0 %v2767
  %3735 = vmatpush.bf16.msra.mxu0 %v2760
  %3736 = vmatmul.bf16.gmra.mxu0 %v649
  %v3737 = vpop.f32.mrf.mxu0
  %v3738 = vadd.f32 %v3725, %v3737
  %v3739 = vpop.f32.mrf.mxu0
  %3740 = vdwg.mxu0
  %3741 = vmatpush.bf16.msra.mxu0 0
  %3742 = vmatpush.bf16.msra.mxu0 0
  %3743 = vmatpush.bf16.msra.mxu0 0
  %3744 = vmatpush.bf16.msra.mxu0 0
  %3745 = vmatpush.bf16.msra.mxu0 0
  %3746 = vmatpush.bf16.msra.mxu0 %v2830
  %3747 = vmatpush.bf16.msra.mxu0 %v2823
  %3748 = vmatpush.bf16.msra.mxu0 %v2816
  %3749 = vmatmul.bf16.gmra.mxu0 %v3362
  %v3750 = vpop.f32.mrf.mxu0
  %v3751 = vadd.f32 %v3738, %v3750
  %v3752 = vpop.f32.mrf.mxu0
  %3753 = vdwg.mxu0
  %3754 = vmatpush.bf16.msra.mxu0 %v2362
  %3755 = vmatpush.bf16.msra.mxu0 %v2355
  %3756 = vmatpush.bf16.msra.mxu0 %v2348
  %3757 = vmatpush.bf16.msra.mxu0 %v2341
  %3758 = vmatpush.bf16.msra.mxu0 %v2334
  %3759 = vmatpush.bf16.msra.mxu0 %v2327
  %3760 = vmatpush.bf16.msra.mxu0 %v2320
  %3761 = vmatpush.bf16.msra.mxu0 %v2313
  %3762 = vmatmul.bf16.gmra.mxu0 %v641
  %v3763 = vpop.f32.mrf.mxu0
  %v3764 = vadd.f32 %v624, %v3763
  %v3765 = vpop.f32.mrf.mxu0
  %3766 = vdwg.mxu0
  %3767 = vmatpush.bf16.msra.mxu0 %v2418
  %3768 = vmatpush.bf16.msra.mxu0 %v2411
  %3769 = vmatpush.bf16.msra.mxu0 %v2404
  %3770 = vmatpush.bf16.msra.mxu0 %v2397
  %3771 = vmatpush.bf16.msra.mxu0 %v2390
  %3772 = vmatpush.bf16.msra.mxu0 %v2383
  %3773 = vmatpush.bf16.msra.mxu0 %v2376
  %3774 = vmatpush.bf16.msra.mxu0 %v2369
  %3775 = vmatmul.bf16.gmra.mxu0 %v642
  %v3776 = vpop.f32.mrf.mxu0
  %v3777 = vadd.f32 %v3764, %v3776
  %v3778 = vpop.f32.mrf.mxu0
  %3779 = vdwg.mxu0
  %3780 = vmatpush.bf16.msra.mxu0 %v2474
  %3781 = vmatpush.bf16.msra.mxu0 %v2467
  %3782 = vmatpush.bf16.msra.mxu0 %v2460
  %3783 = vmatpush.bf16.msra.mxu0 %v2453
  %3784 = vmatpush.bf16.msra.mxu0 %v2446
  %3785 = vmatpush.bf16.msra.mxu0 %v2439
  %3786 = vmatpush.bf16.msra.mxu0 %v2432
  %3787 = vmatpush.bf16.msra.mxu0 %v2425
  %3788 = vmatmul.bf16.gmra.mxu0 %v643
  %v3789 = vpop.f32.mrf.mxu0
  %v3790 = vadd.f32 %v3777, %v3789
  %v3791 = vpop.f32.mrf.mxu0
  %3792 = vdwg.mxu0
  %3793 = vmatpush.bf16.msra.mxu0 %v2530
  %3794 = vmatpush.bf16.msra.mxu0 %v2523
  %3795 = vmatpush.bf16.msra.mxu0 %v2516
  %3796 = vmatpush.bf16.msra.mxu0 %v2509
  %3797 = vmatpush.bf16.msra.mxu0 %v2502
  %3798 = vmatpush.bf16.msra.mxu0 %v2495
  %3799 = vmatpush.bf16.msra.mxu0 %v2488
  %3800 = vmatpush.bf16.msra.mxu0 %v2481
  %3801 = vmatmul.bf16.gmra.mxu0 %v644
  %v3802 = vpop.f32.mrf.mxu0
  %v3803 = vadd.f32 %v3790, %v3802
  %v3804 = vpop.f32.mrf.mxu0
  %3805 = vdwg.mxu0
  %3806 = vmatpush.bf16.msra.mxu0 %v2586
  %3807 = vmatpush.bf16.msra.mxu0 %v2579
  %3808 = vmatpush.bf16.msra.mxu0 %v2572
  %3809 = vmatpush.bf16.msra.mxu0 %v2565
  %3810 = vmatpush.bf16.msra.mxu0 %v2558
  %3811 = vmatpush.bf16.msra.mxu0 %v2551
  %3812 = vmatpush.bf16.msra.mxu0 %v2544
  %3813 = vmatpush.bf16.msra.mxu0 %v2537
  %3814 = vmatmul.bf16.gmra.mxu0 %v645
  %v3815 = vpop.f32.mrf.mxu0
  %v3816 = vadd.f32 %v3803, %v3815
  %v3817 = vpop.f32.mrf.mxu0
  %3818 = vdwg.mxu0
  %3819 = vmatpush.bf16.msra.mxu0 %v2642
  %3820 = vmatpush.bf16.msra.mxu0 %v2635
  %3821 = vmatpush.bf16.msra.mxu0 %v2628
  %3822 = vmatpush.bf16.msra.mxu0 %v2621
  %3823 = vmatpush.bf16.msra.mxu0 %v2614
  %3824 = vmatpush.bf16.msra.mxu0 %v2607
  %3825 = vmatpush.bf16.msra.mxu0 %v2600
  %3826 = vmatpush.bf16.msra.mxu0 %v2593
  %3827 = vmatmul.bf16.gmra.mxu0 %v646
  %v3828 = vpop.f32.mrf.mxu0
  %v3829 = vadd.f32 %v3816, %v3828
  %v3830 = vpop.f32.mrf.mxu0
  %3831 = vdwg.mxu0
  %3832 = vmatpush.bf16.msra.mxu0 %v2698
  %3833 = vmatpush.bf16.msra.mxu0 %v2691
  %3834 = vmatpush.bf16.msra.mxu0 %v2684
  %3835 = vmatpush.bf16.msra.mxu0 %v2677
  %3836 = vmatpush.bf16.msra.mxu0 %v2670
  %3837 = vmatpush.bf16.msra.mxu0 %v2663
  %3838 = vmatpush.bf16.msra.mxu0 %v2656
  %3839 = vmatpush.bf16.msra.mxu0 %v2649
  %3840 = vmatmul.bf16.gmra.mxu0 %v647
  %v3841 = vpop.f32.mrf.mxu0
  %v3842 = vadd.f32 %v3829, %v3841
  %v3843 = vpop.f32.mrf.mxu0
  %3844 = vdwg.mxu0
  %3845 = vmatpush.bf16.msra.mxu0 %v2754
  %3846 = vmatpush.bf16.msra.mxu0 %v2747
  %3847 = vmatpush.bf16.msra.mxu0 %v2740
  %3848 = vmatpush.bf16.msra.mxu0 %v2733
  %3849 = vmatpush.bf16.msra.mxu0 %v2726
  %3850 = vmatpush.bf16.msra.mxu0 %v2719
  %3851 = vmatpush.bf16.msra.mxu0 %v2712
  %3852 = vmatpush.bf16.msra.mxu0 %v2705
  %3853 = vmatmul.bf16.gmra.mxu0 %v648
  %v3854 = vpop.f32.mrf.mxu0
  %v3855 = vadd.f32 %v3842, %v3854
  %v3856 = vpop.f32.mrf.mxu0
  %3857 = vdwg.mxu0
  %3858 = vmatpush.bf16.msra.mxu0 %v2810
  %3859 = vmatpush.bf16.msra.mxu0 %v2803
  %3860 = vmatpush.bf16.msra.mxu0 %v2796
  %3861 = vmatpush.bf16.msra.mxu0 %v2789
  %3862 = vmatpush.bf16.msra.mxu0 %v2782
  %3863 = vmatpush.bf16.msra.mxu0 %v2775
  %3864 = vmatpush.bf16.msra.mxu0 %v2768
  %3865 = vmatpush.bf16.msra.mxu0 %v2761
  %3866 = vmatmul.bf16.gmra.mxu0 %v649
  %v3867 = vpop.f32.mrf.mxu0
  %v3868 = vadd.f32 %v3855, %v3867
  %v3869 = vpop.f32.mrf.mxu0
  %3870 = vdwg.mxu0
  %3871 = vmatpush.bf16.msra.mxu0 0
  %3872 = vmatpush.bf16.msra.mxu0 0
  %3873 = vmatpush.bf16.msra.mxu0 0
  %3874 = vmatpush.bf16.msra.mxu0 0
  %3875 = vmatpush.bf16.msra.mxu0 0
  %3876 = vmatpush.bf16.msra.mxu0 %v2831
  %3877 = vmatpush.bf16.msra.mxu0 %v2824
  %3878 = vmatpush.bf16.msra.mxu0 %v2817
  %3879 = vmatmul.bf16.gmra.mxu0 %v3362
  %v3880 = vpop.f32.mrf.mxu0
  %v3881 = vadd.f32 %v3868, %v3880
  %v3882 = vpop.f32.mrf.mxu0
  %3883 = vdwg.mxu0
  %3884 = vmatpush.bf16.msra.mxu0 %v2363
  %3885 = vmatpush.bf16.msra.mxu0 %v2356
  %3886 = vmatpush.bf16.msra.mxu0 %v2349
  %3887 = vmatpush.bf16.msra.mxu0 %v2342
  %3888 = vmatpush.bf16.msra.mxu0 %v2335
  %3889 = vmatpush.bf16.msra.mxu0 %v2328
  %3890 = vmatpush.bf16.msra.mxu0 %v2321
  %3891 = vmatpush.bf16.msra.mxu0 %v2314
  %3892 = vmatmul.bf16.gmra.mxu0 %v641
  %v3893 = vpop.f32.mrf.mxu0
  %v3894 = vadd.f32 %v624, %v3893
  %v3895 = vpop.f32.mrf.mxu0
  %3896 = vdwg.mxu0
  %3897 = vmatpush.bf16.msra.mxu0 %v2419
  %3898 = vmatpush.bf16.msra.mxu0 %v2412
  %3899 = vmatpush.bf16.msra.mxu0 %v2405
  %3900 = vmatpush.bf16.msra.mxu0 %v2398
  %3901 = vmatpush.bf16.msra.mxu0 %v2391
  %3902 = vmatpush.bf16.msra.mxu0 %v2384
  %3903 = vmatpush.bf16.msra.mxu0 %v2377
  %3904 = vmatpush.bf16.msra.mxu0 %v2370
  %3905 = vmatmul.bf16.gmra.mxu0 %v642
  %v3906 = vpop.f32.mrf.mxu0
  %v3907 = vadd.f32 %v3894, %v3906
  %v3908 = vpop.f32.mrf.mxu0
  %3909 = vdwg.mxu0
  %3910 = vmatpush.bf16.msra.mxu0 %v2475
  %3911 = vmatpush.bf16.msra.mxu0 %v2468
  %3912 = vmatpush.bf16.msra.mxu0 %v2461
  %3913 = vmatpush.bf16.msra.mxu0 %v2454
  %3914 = vmatpush.bf16.msra.mxu0 %v2447
  %3915 = vmatpush.bf16.msra.mxu0 %v2440
  %3916 = vmatpush.bf16.msra.mxu0 %v2433
  %3917 = vmatpush.bf16.msra.mxu0 %v2426
  %3918 = vmatmul.bf16.gmra.mxu0 %v643
  %v3919 = vpop.f32.mrf.mxu0
  %v3920 = vadd.f32 %v3907, %v3919
  %v3921 = vpop.f32.mrf.mxu0
  %3922 = vdwg.mxu0
  %3923 = vmatpush.bf16.msra.mxu0 %v2531
  %3924 = vmatpush.bf16.msra.mxu0 %v2524
  %3925 = vmatpush.bf16.msra.mxu0 %v2517
  %3926 = vmatpush.bf16.msra.mxu0 %v2510
  %3927 = vmatpush.bf16.msra.mxu0 %v2503
  %3928 = vmatpush.bf16.msra.mxu0 %v2496
  %3929 = vmatpush.bf16.msra.mxu0 %v2489
  %3930 = vmatpush.bf16.msra.mxu0 %v2482
  %3931 = vmatmul.bf16.gmra.mxu0 %v644
  %v3932 = vpop.f32.mrf.mxu0
  %v3933 = vadd.f32 %v3920, %v3932
  %v3934 = vpop.f32.mrf.mxu0
  %3935 = vdwg.mxu0
  %3936 = vmatpush.bf16.msra.mxu0 %v2587
  %3937 = vmatpush.bf16.msra.mxu0 %v2580
  %3938 = vmatpush.bf16.msra.mxu0 %v2573
  %3939 = vmatpush.bf16.msra.mxu0 %v2566
  %3940 = vmatpush.bf16.msra.mxu0 %v2559
  %3941 = vmatpush.bf16.msra.mxu0 %v2552
  %3942 = vmatpush.bf16.msra.mxu0 %v2545
  %3943 = vmatpush.bf16.msra.mxu0 %v2538
  %3944 = vmatmul.bf16.gmra.mxu0 %v645
  %v3945 = vpop.f32.mrf.mxu0
  %v3946 = vadd.f32 %v3933, %v3945
  %v3947 = vpop.f32.mrf.mxu0
  %3948 = vdwg.mxu0
  %3949 = vmatpush.bf16.msra.mxu0 %v2643
  %3950 = vmatpush.bf16.msra.mxu0 %v2636
  %3951 = vmatpush.bf16.msra.mxu0 %v2629
  %3952 = vmatpush.bf16.msra.mxu0 %v2622
  %3953 = vmatpush.bf16.msra.mxu0 %v2615
  %3954 = vmatpush.bf16.msra.mxu0 %v2608
  %3955 = vmatpush.bf16.msra.mxu0 %v2601
  %3956 = vmatpush.bf16.msra.mxu0 %v2594
  %3957 = vmatmul.bf16.gmra.mxu0 %v646
  %v3958 = vpop.f32.mrf.mxu0
  %v3959 = vadd.f32 %v3946, %v3958
  %v3960 = vpop.f32.mrf.mxu0
  %3961 = vdwg.mxu0
  %3962 = vmatpush.bf16.msra.mxu0 %v2699
  %3963 = vmatpush.bf16.msra.mxu0 %v2692
  %3964 = vmatpush.bf16.msra.mxu0 %v2685
  %3965 = vmatpush.bf16.msra.mxu0 %v2678
  %3966 = vmatpush.bf16.msra.mxu0 %v2671
  %3967 = vmatpush.bf16.msra.mxu0 %v2664
  %3968 = vmatpush.bf16.msra.mxu0 %v2657
  %3969 = vmatpush.bf16.msra.mxu0 %v2650
  %3970 = vmatmul.bf16.gmra.mxu0 %v647
  %v3971 = vpop.f32.mrf.mxu0
  %v3972 = vadd.f32 %v3959, %v3971
  %v3973 = vpop.f32.mrf.mxu0
  %3974 = vdwg.mxu0
  %3975 = vmatpush.bf16.msra.mxu0 %v2755
  %3976 = vmatpush.bf16.msra.mxu0 %v2748
  %3977 = vmatpush.bf16.msra.mxu0 %v2741
  %3978 = vmatpush.bf16.msra.mxu0 %v2734
  %3979 = vmatpush.bf16.msra.mxu0 %v2727
  %3980 = vmatpush.bf16.msra.mxu0 %v2720
  %3981 = vmatpush.bf16.msra.mxu0 %v2713
  %3982 = vmatpush.bf16.msra.mxu0 %v2706
  %3983 = vmatmul.bf16.gmra.mxu0 %v648
  %v3984 = vpop.f32.mrf.mxu0
  %v3985 = vadd.f32 %v3972, %v3984
  %v3986 = vpop.f32.mrf.mxu0
  %3987 = vdwg.mxu0
  %3988 = vmatpush.bf16.msra.mxu0 %v2811
  %3989 = vmatpush.bf16.msra.mxu0 %v2804
  %3990 = vmatpush.bf16.msra.mxu0 %v2797
  %3991 = vmatpush.bf16.msra.mxu0 %v2790
  %3992 = vmatpush.bf16.msra.mxu0 %v2783
  %3993 = vmatpush.bf16.msra.mxu0 %v2776
  %3994 = vmatpush.bf16.msra.mxu0 %v2769
  %3995 = vmatpush.bf16.msra.mxu0 %v2762
  %3996 = vmatmul.bf16.gmra.mxu0 %v649
  %v3997 = vpop.f32.mrf.mxu0
  %v3998 = vadd.f32 %v3985, %v3997
  %v3999 = vpop.f32.mrf.mxu0
  %4000 = vdwg.mxu0
  %4001 = vmatpush.bf16.msra.mxu0 0
  %4002 = vmatpush.bf16.msra.mxu0 0
  %4003 = vmatpush.bf16.msra.mxu0 0
  %4004 = vmatpush.bf16.msra.mxu0 0
  %4005 = vmatpush.bf16.msra.mxu0 0
  %4006 = vmatpush.bf16.msra.mxu0 %v2832
  %4007 = vmatpush.bf16.msra.mxu0 %v2825
  %4008 = vmatpush.bf16.msra.mxu0 %v2818
  %4009 = vmatmul.bf16.gmra.mxu0 %v3362
  %v4010 = vpop.f32.mrf.mxu0
  %v4011 = vadd.f32 %v3998, %v4010
  %v4012 = vpop.f32.mrf.mxu0
  %4013 = vdwg.mxu0
  %4014 = vmatpush.bf16.msra.mxu0 %v2364
  %4015 = vmatpush.bf16.msra.mxu0 %v2357
  %4016 = vmatpush.bf16.msra.mxu0 %v2350
  %4017 = vmatpush.bf16.msra.mxu0 %v2343
  %4018 = vmatpush.bf16.msra.mxu0 %v2336
  %4019 = vmatpush.bf16.msra.mxu0 %v2329
  %4020 = vmatpush.bf16.msra.mxu0 %v2322
  %4021 = vmatpush.bf16.msra.mxu0 %v2315
  %4022 = vmatmul.bf16.gmra.mxu0 %v641
  %v4023 = vpop.f32.mrf.mxu0
  %v4024 = vadd.f32 %v624, %v4023
  %v4025 = vpop.f32.mrf.mxu0
  %4026 = vdwg.mxu0
  %4027 = vmatpush.bf16.msra.mxu0 %v2420
  %4028 = vmatpush.bf16.msra.mxu0 %v2413
  %4029 = vmatpush.bf16.msra.mxu0 %v2406
  %4030 = vmatpush.bf16.msra.mxu0 %v2399
  %4031 = vmatpush.bf16.msra.mxu0 %v2392
  %4032 = vmatpush.bf16.msra.mxu0 %v2385
  %4033 = vmatpush.bf16.msra.mxu0 %v2378
  %4034 = vmatpush.bf16.msra.mxu0 %v2371
  %4035 = vmatmul.bf16.gmra.mxu0 %v642
  %v4036 = vpop.f32.mrf.mxu0
  %v4037 = vadd.f32 %v4024, %v4036
  %v4038 = vpop.f32.mrf.mxu0
  %4039 = vdwg.mxu0
  %4040 = vmatpush.bf16.msra.mxu0 %v2476
  %4041 = vmatpush.bf16.msra.mxu0 %v2469
  %4042 = vmatpush.bf16.msra.mxu0 %v2462
  %4043 = vmatpush.bf16.msra.mxu0 %v2455
  %4044 = vmatpush.bf16.msra.mxu0 %v2448
  %4045 = vmatpush.bf16.msra.mxu0 %v2441
  %4046 = vmatpush.bf16.msra.mxu0 %v2434
  %4047 = vmatpush.bf16.msra.mxu0 %v2427
  %4048 = vmatmul.bf16.gmra.mxu0 %v643
  %v4049 = vpop.f32.mrf.mxu0
  %v4050 = vadd.f32 %v4037, %v4049
  %v4051 = vpop.f32.mrf.mxu0
  %4052 = vdwg.mxu0
  %4053 = vmatpush.bf16.msra.mxu0 %v2532
  %4054 = vmatpush.bf16.msra.mxu0 %v2525
  %4055 = vmatpush.bf16.msra.mxu0 %v2518
  %4056 = vmatpush.bf16.msra.mxu0 %v2511
  %4057 = vmatpush.bf16.msra.mxu0 %v2504
  %4058 = vmatpush.bf16.msra.mxu0 %v2497
  %4059 = vmatpush.bf16.msra.mxu0 %v2490
  %4060 = vmatpush.bf16.msra.mxu0 %v2483
  %4061 = vmatmul.bf16.gmra.mxu0 %v644
  %v4062 = vpop.f32.mrf.mxu0
  %v4063 = vadd.f32 %v4050, %v4062
  %v4064 = vpop.f32.mrf.mxu0
  %4065 = vdwg.mxu0
  %4066 = vmatpush.bf16.msra.mxu0 %v2588
  %4067 = vmatpush.bf16.msra.mxu0 %v2581
  %4068 = vmatpush.bf16.msra.mxu0 %v2574
  %4069 = vmatpush.bf16.msra.mxu0 %v2567
  %4070 = vmatpush.bf16.msra.mxu0 %v2560
  %4071 = vmatpush.bf16.msra.mxu0 %v2553
  %4072 = vmatpush.bf16.msra.mxu0 %v2546
  %4073 = vmatpush.bf16.msra.mxu0 %v2539
  %4074 = vmatmul.bf16.gmra.mxu0 %v645
  %v4075 = vpop.f32.mrf.mxu0
  %v4076 = vadd.f32 %v4063, %v4075
  %v4077 = vpop.f32.mrf.mxu0
  %4078 = vdwg.mxu0
  %4079 = vmatpush.bf16.msra.mxu0 %v2644
  %4080 = vmatpush.bf16.msra.mxu0 %v2637
  %4081 = vmatpush.bf16.msra.mxu0 %v2630
  %4082 = vmatpush.bf16.msra.mxu0 %v2623
  %4083 = vmatpush.bf16.msra.mxu0 %v2616
  %4084 = vmatpush.bf16.msra.mxu0 %v2609
  %4085 = vmatpush.bf16.msra.mxu0 %v2602
  %4086 = vmatpush.bf16.msra.mxu0 %v2595
  %4087 = vmatmul.bf16.gmra.mxu0 %v646
  %v4088 = vpop.f32.mrf.mxu0
  %v4089 = vadd.f32 %v4076, %v4088
  %v4090 = vpop.f32.mrf.mxu0
  %4091 = vdwg.mxu0
  %4092 = vmatpush.bf16.msra.mxu0 %v2700
  %4093 = vmatpush.bf16.msra.mxu0 %v2693
  %4094 = vmatpush.bf16.msra.mxu0 %v2686
  %4095 = vmatpush.bf16.msra.mxu0 %v2679
  %4096 = vmatpush.bf16.msra.mxu0 %v2672
  %4097 = vmatpush.bf16.msra.mxu0 %v2665
  %4098 = vmatpush.bf16.msra.mxu0 %v2658
  %4099 = vmatpush.bf16.msra.mxu0 %v2651
  %4100 = vmatmul.bf16.gmra.mxu0 %v647
  %v4101 = vpop.f32.mrf.mxu0
  %v4102 = vadd.f32 %v4089, %v4101
  %v4103 = vpop.f32.mrf.mxu0
  %4104 = vdwg.mxu0
  %4105 = vmatpush.bf16.msra.mxu0 %v2756
  %4106 = vmatpush.bf16.msra.mxu0 %v2749
  %4107 = vmatpush.bf16.msra.mxu0 %v2742
  %4108 = vmatpush.bf16.msra.mxu0 %v2735
  %4109 = vmatpush.bf16.msra.mxu0 %v2728
  %4110 = vmatpush.bf16.msra.mxu0 %v2721
  %4111 = vmatpush.bf16.msra.mxu0 %v2714
  %4112 = vmatpush.bf16.msra.mxu0 %v2707
  %4113 = vmatmul.bf16.gmra.mxu0 %v648
  %v4114 = vpop.f32.mrf.mxu0
  %v4115 = vadd.f32 %v4102, %v4114
  %v4116 = vpop.f32.mrf.mxu0
  %4117 = vdwg.mxu0
  %4118 = vmatpush.bf16.msra.mxu0 %v2812
  %4119 = vmatpush.bf16.msra.mxu0 %v2805
  %4120 = vmatpush.bf16.msra.mxu0 %v2798
  %4121 = vmatpush.bf16.msra.mxu0 %v2791
  %4122 = vmatpush.bf16.msra.mxu0 %v2784
  %4123 = vmatpush.bf16.msra.mxu0 %v2777
  %4124 = vmatpush.bf16.msra.mxu0 %v2770
  %4125 = vmatpush.bf16.msra.mxu0 %v2763
  %4126 = vmatmul.bf16.gmra.mxu0 %v649
  %v4127 = vpop.f32.mrf.mxu0
  %v4128 = vadd.f32 %v4115, %v4127
  %v4129 = vpop.f32.mrf.mxu0
  %4130 = vdwg.mxu0
  %4131 = vmatpush.bf16.msra.mxu0 0
  %4132 = vmatpush.bf16.msra.mxu0 0
  %4133 = vmatpush.bf16.msra.mxu0 0
  %4134 = vmatpush.bf16.msra.mxu0 0
  %4135 = vmatpush.bf16.msra.mxu0 0
  %4136 = vmatpush.bf16.msra.mxu0 %v2833
  %4137 = vmatpush.bf16.msra.mxu0 %v2826
  %4138 = vmatpush.bf16.msra.mxu0 %v2819
  %4139 = vmatmul.bf16.gmra.mxu0 %v3362
  %v4140 = vpop.f32.mrf.mxu0
  %v4141 = vadd.f32 %v4128, %v4140
  %v4142 = vpop.f32.mrf.mxu0
  %4143 = vdwg.mxu0
  %4144 = vmatpush.bf16.msra.mxu0 %v2365
  %4145 = vmatpush.bf16.msra.mxu0 %v2358
  %4146 = vmatpush.bf16.msra.mxu0 %v2351
  %4147 = vmatpush.bf16.msra.mxu0 %v2344
  %4148 = vmatpush.bf16.msra.mxu0 %v2337
  %4149 = vmatpush.bf16.msra.mxu0 %v2330
  %4150 = vmatpush.bf16.msra.mxu0 %v2323
  %4151 = vmatpush.bf16.msra.mxu0 %v2316
  %4152 = vmatmul.bf16.gmra.mxu0 %v641
  %v4153 = vpop.f32.mrf.mxu0
  %v4154 = vadd.f32 %v624, %v4153
  %v4155 = vpop.f32.mrf.mxu0
  %4156 = vdwg.mxu0
  %4157 = vmatpush.bf16.msra.mxu0 %v2421
  %4158 = vmatpush.bf16.msra.mxu0 %v2414
  %4159 = vmatpush.bf16.msra.mxu0 %v2407
  %4160 = vmatpush.bf16.msra.mxu0 %v2400
  %4161 = vmatpush.bf16.msra.mxu0 %v2393
  %4162 = vmatpush.bf16.msra.mxu0 %v2386
  %4163 = vmatpush.bf16.msra.mxu0 %v2379
  %4164 = vmatpush.bf16.msra.mxu0 %v2372
  %4165 = vmatmul.bf16.gmra.mxu0 %v642
  %v4166 = vpop.f32.mrf.mxu0
  %v4167 = vadd.f32 %v4154, %v4166
  %v4168 = vpop.f32.mrf.mxu0
  %4169 = vdwg.mxu0
  %4170 = vmatpush.bf16.msra.mxu0 %v2477
  %4171 = vmatpush.bf16.msra.mxu0 %v2470
  %4172 = vmatpush.bf16.msra.mxu0 %v2463
  %4173 = vmatpush.bf16.msra.mxu0 %v2456
  %4174 = vmatpush.bf16.msra.mxu0 %v2449
  %4175 = vmatpush.bf16.msra.mxu0 %v2442
  %4176 = vmatpush.bf16.msra.mxu0 %v2435
  %4177 = vmatpush.bf16.msra.mxu0 %v2428
  %4178 = vmatmul.bf16.gmra.mxu0 %v643
  %v4179 = vpop.f32.mrf.mxu0
  %v4180 = vadd.f32 %v4167, %v4179
  %v4181 = vpop.f32.mrf.mxu0
  %4182 = vdwg.mxu0
  %4183 = vmatpush.bf16.msra.mxu0 %v2533
  %4184 = vmatpush.bf16.msra.mxu0 %v2526
  %4185 = vmatpush.bf16.msra.mxu0 %v2519
  %4186 = vmatpush.bf16.msra.mxu0 %v2512
  %4187 = vmatpush.bf16.msra.mxu0 %v2505
  %4188 = vmatpush.bf16.msra.mxu0 %v2498
  %4189 = vmatpush.bf16.msra.mxu0 %v2491
  %4190 = vmatpush.bf16.msra.mxu0 %v2484
  %4191 = vmatmul.bf16.gmra.mxu0 %v644
  %v4192 = vpop.f32.mrf.mxu0
  %v4193 = vadd.f32 %v4180, %v4192
  %v4194 = vpop.f32.mrf.mxu0
  %4195 = vdwg.mxu0
  %4196 = vmatpush.bf16.msra.mxu0 %v2589
  %4197 = vmatpush.bf16.msra.mxu0 %v2582
  %4198 = vmatpush.bf16.msra.mxu0 %v2575
  %4199 = vmatpush.bf16.msra.mxu0 %v2568
  %4200 = vmatpush.bf16.msra.mxu0 %v2561
  %4201 = vmatpush.bf16.msra.mxu0 %v2554
  %4202 = vmatpush.bf16.msra.mxu0 %v2547
  %4203 = vmatpush.bf16.msra.mxu0 %v2540
  %4204 = vmatmul.bf16.gmra.mxu0 %v645
  %v4205 = vpop.f32.mrf.mxu0
  %v4206 = vadd.f32 %v4193, %v4205
  %v4207 = vpop.f32.mrf.mxu0
  %4208 = vdwg.mxu0
  %4209 = vmatpush.bf16.msra.mxu0 %v2645
  %4210 = vmatpush.bf16.msra.mxu0 %v2638
  %4211 = vmatpush.bf16.msra.mxu0 %v2631
  %4212 = vmatpush.bf16.msra.mxu0 %v2624
  %4213 = vmatpush.bf16.msra.mxu0 %v2617
  %4214 = vmatpush.bf16.msra.mxu0 %v2610
  %4215 = vmatpush.bf16.msra.mxu0 %v2603
  %4216 = vmatpush.bf16.msra.mxu0 %v2596
  %4217 = vmatmul.bf16.gmra.mxu0 %v646
  %v4218 = vpop.f32.mrf.mxu0
  %v4219 = vadd.f32 %v4206, %v4218
  %v4220 = vpop.f32.mrf.mxu0
  %4221 = vdwg.mxu0
  %4222 = vmatpush.bf16.msra.mxu0 %v2701
  %4223 = vmatpush.bf16.msra.mxu0 %v2694
  %4224 = vmatpush.bf16.msra.mxu0 %v2687
  %4225 = vmatpush.bf16.msra.mxu0 %v2680
  %4226 = vmatpush.bf16.msra.mxu0 %v2673
  %4227 = vmatpush.bf16.msra.mxu0 %v2666
  %4228 = vmatpush.bf16.msra.mxu0 %v2659
  %4229 = vmatpush.bf16.msra.mxu0 %v2652
  %4230 = vmatmul.bf16.gmra.mxu0 %v647
  %v4231 = vpop.f32.mrf.mxu0
  %v4232 = vadd.f32 %v4219, %v4231
  %v4233 = vpop.f32.mrf.mxu0
  %4234 = vdwg.mxu0
  %4235 = vmatpush.bf16.msra.mxu0 %v2757
  %4236 = vmatpush.bf16.msra.mxu0 %v2750
  %4237 = vmatpush.bf16.msra.mxu0 %v2743
  %4238 = vmatpush.bf16.msra.mxu0 %v2736
  %4239 = vmatpush.bf16.msra.mxu0 %v2729
  %4240 = vmatpush.bf16.msra.mxu0 %v2722
  %4241 = vmatpush.bf16.msra.mxu0 %v2715
  %4242 = vmatpush.bf16.msra.mxu0 %v2708
  %4243 = vmatmul.bf16.gmra.mxu0 %v648
  %v4244 = vpop.f32.mrf.mxu0
  %v4245 = vadd.f32 %v4232, %v4244
  %v4246 = vpop.f32.mrf.mxu0
  %4247 = vdwg.mxu0
  %4248 = vmatpush.bf16.msra.mxu0 %v2813
  %4249 = vmatpush.bf16.msra.mxu0 %v2806
  %4250 = vmatpush.bf16.msra.mxu0 %v2799
  %4251 = vmatpush.bf16.msra.mxu0 %v2792
  %4252 = vmatpush.bf16.msra.mxu0 %v2785
  %4253 = vmatpush.bf16.msra.mxu0 %v2778
  %4254 = vmatpush.bf16.msra.mxu0 %v2771
  %4255 = vmatpush.bf16.msra.mxu0 %v2764
  %4256 = vmatmul.bf16.gmra.mxu0 %v649
  %v4257 = vpop.f32.mrf.mxu0
  %v4258 = vadd.f32 %v4245, %v4257
  %v4259 = vpop.f32.mrf.mxu0
  %4260 = vdwg.mxu0
  %4261 = vmatpush.bf16.msra.mxu0 0
  %4262 = vmatpush.bf16.msra.mxu0 0
  %4263 = vmatpush.bf16.msra.mxu0 0
  %4264 = vmatpush.bf16.msra.mxu0 0
  %4265 = vmatpush.bf16.msra.mxu0 0
  %4266 = vmatpush.bf16.msra.mxu0 %v2834
  %4267 = vmatpush.bf16.msra.mxu0 %v2827
  %4268 = vmatpush.bf16.msra.mxu0 %v2820
  %4269 = vmatmul.bf16.gmra.mxu0 %v3362
  %v4270 = vpop.f32.mrf.mxu0
  %v4271 = vadd.f32 %v4258, %v4270
  %v4272 = vpop.f32.mrf.mxu0
  %4273 = vdwg.mxu0
  %v4274 = vmax.f32 %v3491, 0.0
  %v4275 = vmax.f32 %v3621, 0.0
  %v4276 = vmax.f32 %v3751, 0.0
  %v4277 = vmax.f32 %v3881, 0.0
  %v4278 = vmax.f32 %v4011, 0.0
  %v4279 = vmax.f32 %v4141, 0.0
  %v4280 = vmax.f32 %v4271, 0.0
  %v4281 = vpack.c.bf16 %v4275, %v4274
  %v4282 = vpack.c.bf16 %v4277, %v4276
  %v4283 = vpack.c.bf16 %v4279, %v4278
  %v4284 = vpack.c.bf16 %v4280, %v4280
  %4285 = vst [vmem:[%s3] sm:$0xff] %v4281
  %4286 = vst [vmem:[%s3 + $0x8] sm:$0xff] %v4282
  %4287 = vst [vmem:[%s3 + $0x10] sm:$0xff] %v4283
  %vm4288 = vcmask 928768
  %4289 = vst.msk [vmem:[%s3 + $0x18] sm:$0xf] %vm4288, %v4284
  // Predicated region
  $region14: #{autoencoder_forward.8} parent=0 // pred_check
    _
  $region15: #{autoencoder_forward.8} parent=0 // pred_check_branch
    %4291 = sbr.rel (0) target = $region17
  $region16: #{autoencoder_forward.8} parent=0 // pred_region
    _
  $region17: #{autoencoder_forward.8} parent=0 // pred_fallthru
    _
  // Predicated region
  $region18: #{autoencoder_forward.8} parent=0 // pred_check
    _
  $region19: #{autoencoder_forward.8} parent=0 // pred_check_branch
    %4293 = sbr.rel (0) target = $region21
  $region20: #{autoencoder_forward.8} parent=0 // pred_region
    _
  $region21: #{autoencoder_forward.8} parent=0 // pred_fallthru
    _

</llo_original>
